<compile_context>
chip_gen: v5e
topology: v5e:2x2
jax: 0.10.0
libtpu: 0.0.40
codegen_flags: <defaults>
</compile_context>

<pallas_src>
import functools

import jax
import jax.numpy as jnp
from jax.experimental import pallas as pl
from jax.experimental.pallas import tpu as pltpu


def _layernorm(x, gamma, beta, eps=1e-5):
    mu = jnp.mean(x, axis=-1, keepdims=True)
    var = jnp.mean((x - mu) ** 2, axis=-1, keepdims=True)
    return (x - mu) * jax.lax.rsqrt(var + eps) * gamma + beta


def block_kernel(x_ref,
                 ln1g_ref, ln1b_ref,
                 w_qkv_ref,
                 ln2g_ref, ln2b_ref,
                 w1_ref, b1_ref, w2_ref, b2_ref,
                 out_ref,
                 *, n_heads, head_size, block_b, seq_len):
    f32 = jnp.float32
    bf16 = jnp.bfloat16
    T = seq_len
    hs = head_size
    Hhs = n_heads * hs

    # Current row block: block_b batch elements x T tokens -> (R, E), R = Bb*T.
    x = x_ref[...].astype(f32)

    # ---- LayerNorm 1 (f32) ----
    y = _layernorm(x, ln1g_ref[...], ln1b_ref[...])

    # ---- Fused QKV projection: one wide bf16 matmul, f32 accumulate ----
    # Columns: [ Q(h0..hH-1) | K(h0..hH-1) | V(h0..hH-1) ], each head hs wide.
    # The 1/sqrt(hs) softmax scale is pre-folded into the Q columns.
    qkv = jnp.dot(y.astype(bf16), w_qkv_ref[...],
                  preferred_element_type=f32)               # (R, 3*H*hs)

    # Causal mask built once, shared across heads.
    row = jax.lax.broadcasted_iota(jnp.int32, (block_b, T, T), 1)
    col = jax.lax.broadcasted_iota(jnp.int32, (block_b, T, T), 2)
    causal = row >= col

    # ---- Attention: batched over batch dim; heads summed (MultiHead sums).
    # hs == 128 here -> each per-head column slice starts on a 128-lane
    # boundary and is a free static window.
    # TODO(synk): if hs % 128 != 0, pad each per-head slice of w_qkv to the
    #             next 128-lane multiple (or batch heads into one einsum).
    attn = None
    for h in range(n_heads):                                # tiny static loop
        q = qkv[:, h * hs:(h + 1) * hs].reshape(block_b, T, hs).astype(bf16)
        k = qkv[:, Hhs + h * hs:Hhs + (h + 1) * hs].reshape(
            block_b, T, hs).astype(bf16)
        v = qkv[:, 2 * Hhs + h * hs:2 * Hhs + (h + 1) * hs].reshape(
            block_b, T, hs).astype(bf16)

        # Contracts last dims -> no explicit K transpose materialized.
        s = jnp.einsum("btd,bsd->bts", q, k,
                       preferred_element_type=f32)          # (Bb, T, T)
        s = jnp.where(causal, s, -1e30)
        s = s - jnp.max(s, axis=-1, keepdims=True)
        p = jnp.exp(s)
        # approx reciprocal rides the EUP slot; ~1e-3 rel error — acceptable
        # for this inference path (documented per review).
        p = p * pl.reciprocal(jnp.sum(p, axis=-1, keepdims=True), approx=True)

        o_h = jnp.einsum("bts,bsd->btd", p.astype(bf16), v,
                         preferred_element_type=f32)        # (Bb, T, hs)
        attn = o_h if attn is None else attn + o_h

    # Residual 1 (Dropout identity at inference). Requires head_size == E.
    y2 = attn.reshape(block_b * T, hs) + x                  # (R, E)

    # ---- LayerNorm 2 ----
    z = _layernorm(y2, ln2g_ref[...], ln2b_ref[...])

    # ---- FFN: Linear -> ReLU -> Linear; residual on post-LN2 activation z
    # (exactly what the PyTorch forward does).
    h1 = jnp.dot(z.astype(bf16), w1_ref[...],
                 preferred_element_type=f32) + b1_ref[...]
    h1 = jnp.maximum(h1, 0.0)
    ffn = jnp.dot(h1.astype(bf16), w2_ref[...],
                  preferred_element_type=f32) + b2_ref[...]

    out_ref[...] = (ffn + z).astype(out_ref.dtype)


def pack_block_params(params, *, n_heads, head_size):
    """One-time packing (hoisted out of the per-call path):
    fuse per-head Q/K/V into a single (E, 3*H*hs) bf16 matrix with the
    1/sqrt(hs) scale folded into the Q columns; cast FFN weights to bf16."""
    E = params["w1"].shape[0]
    f32, bf16 = jnp.float32, jnp.bfloat16

    def flat(w):  # (H, E, hs) -> (E, H*hs), head-major columns
        return w.transpose(1, 0, 2).reshape(E, n_heads * head_size)

    scale = head_size ** (-0.5)
    w_qkv = jnp.concatenate(
        [flat(params["wq"].astype(f32) * scale),     # scale folded into Q
         flat(params["wk"].astype(f32)),
         flat(params["wv"].astype(f32))], axis=-1).astype(bf16)
    return {
        "ln1_g": params["ln1_g"], "ln1_b": params["ln1_b"],
        "w_qkv": w_qkv,
        "ln2_g": params["ln2_g"], "ln2_b": params["ln2_b"],
        "w1": params["w1"].astype(bf16), "b1": params["b1"],
        "w2": params["w2"].astype(bf16), "b2": params["b2"],
    }


def _const_spec(shape):
    nd = len(shape)
    return pl.BlockSpec(shape, lambda i, _nd=nd: (0,) * _nd)


def _pick_block_b(B, T, E, hidden, n_heads, head_size,
                  vmem_budget_bytes=48 * 1024 * 1024):
    """Largest divisor of B whose per-step footprint fits the budget.
    Prefers a single grid step (amortizes the ~0.35us/step overhead).
    48 MiB leaves headroom under v7x's 64 MiB VMEM; v5e/v6e have 128 MiB."""
    def step_bytes(bb):
        R = bb * T
        io = 2 * 2 * R * E * 4                                   # x + out, dbl-buffered
        w = 2 * 2 * (E * 3 * n_heads * head_size + 2 * E * hidden)
        tmp = R * (3 * n_heads * head_size + hidden + 4 * E) * 4  # qkv/acts (f32)
        sc = 4 * bb * T * T * 4                                   # score temporaries
        return io + w + tmp + sc

    bb = B
    while bb > 1:
        rows_ok = (bb == B) or ((bb * T) % 8 == 0)
        if rows_ok and step_bytes(bb) <= vmem_budget_bytes:
            return bb
        nb = bb - 1
        while nb > 1 and B % nb:
            nb -= 1
        bb = nb
    return 1


def block_forward(x, packed, *, n_heads, head_size, block_b=None):
    B, T, E = x.shape
    assert head_size == E, (
        "Block's residual (attn + x) requires head_size == n_embedding "
        f"(got head_size={head_size}, n_embedding={E})")
    hidden = packed["w1"].shape[1]

    if block_b is None:
        block_b = _pick_block_b(B, T, E, hidden, n_heads, head_size)
    assert B % block_b == 0, "batch must be divisible by block_b"
    R = block_b * T
    assert R == B * T or R % 8 == 0, "partial row blocks must be 8-row aligned"

    x2 = x.reshape(B * T, E)

    kernel = functools.partial(block_kernel, n_heads=n_heads,
                               head_size=head_size, block_b=block_b, seq_len=T)

    # Advisory cost for XLA scheduling around the custom call.
    flops = (2 * B * T * E * 3 * n_heads * head_size    # fused QKV
             + 4 * n_heads * B * T * T * head_size      # QK^T and PV
             + 4 * B * T * E * hidden)                  # FFN
    transcendentals = n_heads * B * T * T               # softmax exps
    bytes_accessed = (2 * 4 * B * T * E
                      + 2 * (E * 3 * n_heads * head_size + 2 * E * hidden)
                      + 4 * (4 * E + hidden))
    cost = pl.CostEstimate(flops=flops, transcendentals=transcendentals,
                           bytes_accessed=bytes_accessed)

    out2 = pl.pallas_call(
        kernel,
        out_shape=jax.ShapeDtypeStruct((B * T, E), x.dtype),
        grid=(B // block_b,),
        in_specs=[
            pl.BlockSpec((R, E), lambda i: (i, 0)),           # x rows (lane-dense)
            _const_spec((1, E)), _const_spec((1, E)),         # ln1 gamma/beta
            _const_spec((E, 3 * n_heads * head_size)),        # fused W_qkv (bf16)
            _const_spec((1, E)), _const_spec((1, E)),         # ln2 gamma/beta
            _const_spec((E, hidden)), _const_spec((1, hidden)),  # FFN W1, b1
            _const_spec((hidden, E)), _const_spec((1, E)),       # FFN W2, b2
        ],
        out_specs=pl.BlockSpec((R, E), lambda i: (i, 0)),
        compiler_params=pltpu.CompilerParams(
            dimension_semantics=("parallel",)),
        cost_estimate=cost,
    )(x2,
      packed["ln1_g"], packed["ln1_b"],
      packed["w_qkv"],
      packed["ln2_g"], packed["ln2_b"],
      packed["w1"], packed["b1"], packed["w2"], packed["b2"])

    return out2.reshape(B, T, E)


def block_reference(x, params, *, n_heads, head_size):
    """Pure-JAX f32 reference mirroring the PyTorch forward (dropout=identity)."""
    f32 = jnp.float32
    hi = jax.lax.Precision.HIGHEST
    xf = x.astype(f32)
    y = _layernorm(xf, params["ln1_g"].astype(f32), params["ln1_b"].astype(f32))
    B, T, E = x.shape
    causal = jnp.tril(jnp.ones((T, T), bool))
    scale = head_size ** (-0.5)
    attn = jnp.zeros((B, T, head_size), f32)
    for h in range(n_heads):
        Q = jnp.einsum("bte,ed->btd", y, params["wq"][h].astype(f32), precision=hi)
        K = jnp.einsum("bte,ed->btd", y, params["wk"][h].astype(f32), precision=hi)
        V = jnp.einsum("bte,ed->btd", y, params["wv"][h].astype(f32), precision=hi)
        A = jnp.einsum("btd,bsd->bts", Q, K, precision=hi) * scale
        A = jnp.where(causal[None], A, -jnp.inf)
        A = jax.nn.softmax(A, axis=-1)
        attn = attn + jnp.einsum("bts,bsd->btd", A, V, precision=hi)
    y2 = attn + xf
    z = _layernorm(y2, params["ln2_g"].astype(f32), params["ln2_b"].astype(f32))
    h1 = jnp.maximum(
        jnp.einsum("bte,eh->bth", z, params["w1"].astype(f32), precision=hi)
        + params["b1"].astype(f32), 0.0)
    out = (jnp.einsum("bth,he->bte", h1, params["w2"].astype(f32), precision=hi)
           + params["b2"].astype(f32) + z)
    return out.astype(x.dtype)


def make_params(key, n_embedding, n_heads, head_size, factor=4):
    ks = jax.random.split(key, 8)
    hidden = n_embedding * factor
    s = 0.05
    bf16 = jnp.bfloat16
    return {
        "ln1_g": jnp.ones((1, n_embedding), jnp.float32),
        "ln1_b": jnp.zeros((1, n_embedding), jnp.float32),
        "wq": (s * jax.random.normal(ks[0], (n_heads, n_embedding, head_size),
                                     jnp.float32)).astype(bf16),
        "wk": (s * jax.random.normal(ks[1], (n_heads, n_embedding, head_size),
                                     jnp.float32)).astype(bf16),
        "wv": (s * jax.random.normal(ks[2], (n_heads, n_embedding, head_size),
                                     jnp.float32)).astype(bf16),
        "ln2_g": jnp.ones((1, n_embedding), jnp.float32),
        "ln2_b": jnp.zeros((1, n_embedding), jnp.float32),
        "w1": (s * jax.random.normal(ks[3], (n_embedding, hidden),
                                     jnp.float32)).astype(bf16),
        "b1": s * jax.random.normal(ks[4], (1, hidden), jnp.float32),
        "w2": (s * jax.random.normal(ks[5], (hidden, n_embedding),
                                     jnp.float32)).astype(bf16),
        "b2": s * jax.random.normal(ks[6], (1, n_embedding), jnp.float32),
    }


if __name__ == "__main__":
    # Demo config: Block(n=32, n_embedding=128, n_heads=2, head_size=128,
    # dropout=0.0); x: [B=8, T=32, E=128].  head_size == n_embedding is
    # required by the module's `multi_head(y) + x` residual; E = hs = 128
    # makes every x/out block and per-head QKV slice lane-dense, and
    # block_b = B gives a single grid step with M = 256 matmul rows.
    B, T, E = 8, 32, 128
    n_heads, head_size = 2, E

    key = jax.random.PRNGKey(0)
    kx, kp = jax.random.split(key)
    x = jax.random.normal(kx, (B, T, E), jnp.float32)
    params = make_params(kp, E, n_heads, head_size)

    # One-time weight packing (scale folded into Q columns), then a jitted
    # forward so nothing is re-packed per call.
    packed = pack_block_params(params, n_heads=n_heads, head_size=head_size)
    fwd = jax.jit(functools.partial(block_forward, n_heads=n_heads,
                                    head_size=head_size))

    out = jax.block_until_ready(fwd(x, packed))

    ref = block_reference(x, params, n_heads=n_heads, head_size=head_size)
    assert out.shape == (B, T, E)
    err = float(jnp.max(jnp.abs(out - ref)))
    # Kernel uses bf16 matmul operands (f32 accumulate) vs. an f32
    # HIGHEST-precision reference; error grows ~sqrt(contraction length)
    # (E=128, hidden=512), so allow a few 1e-2.
    assert jnp.allclose(out, ref, atol=4e-2, rtol=4e-2), (
        f"mismatch vs reference, max abs err = {err}")

    print("KERNEL_OK")
</pallas_src>

<mosaic_0001>
module attributes {stable_mosaic.version = 11 : i64} {
  func.func @block_kernel(%arg0: i32, %arg1: memref<256x128xf32, #tpu.memory_space<vmem>>, %arg2: memref<1x128xf32, #tpu.memory_space<vmem>>, %arg3: memref<1x128xf32, #tpu.memory_space<vmem>>, %arg4: memref<128x768xbf16, #tpu.memory_space<vmem>>, %arg5: memref<1x128xf32, #tpu.memory_space<vmem>>, %arg6: memref<1x128xf32, #tpu.memory_space<vmem>>, %arg7: memref<128x512xbf16, #tpu.memory_space<vmem>>, %arg8: memref<1x512xf32, #tpu.memory_space<vmem>>, %arg9: memref<512x128xbf16, #tpu.memory_space<vmem>>, %arg10: memref<1x128xf32, #tpu.memory_space<vmem>>, %arg11: memref<256x128xf32, #tpu.memory_space<vmem>>) attributes {dimension_semantics = [#tpu.dimension_semantics<parallel>], iteration_bounds = array<i64: 1>, scalar_prefetch = 0 : i64, scratch_operands = 0 : i64, tpu.core_type = #tpu.core_type<tc>, window_params = [{transform_indices = @transform_0, window_bounds = array<i64: 256, 128>}, {pipeline_mode = #tpu.pipeline_mode<synchronous>, transform_indices = @transform_1, window_bounds = array<i64: 1, 128>}, {pipeline_mode = #tpu.pipeline_mode<synchronous>, transform_indices = @transform_2, window_bounds = array<i64: 1, 128>}, {pipeline_mode = #tpu.pipeline_mode<synchronous>, transform_indices = @transform_3, window_bounds = array<i64: 128, 768>}, {pipeline_mode = #tpu.pipeline_mode<synchronous>, transform_indices = @transform_4, window_bounds = array<i64: 1, 128>}, {pipeline_mode = #tpu.pipeline_mode<synchronous>, transform_indices = @transform_5, window_bounds = array<i64: 1, 128>}, {pipeline_mode = #tpu.pipeline_mode<synchronous>, transform_indices = @transform_6, window_bounds = array<i64: 128, 512>}, {pipeline_mode = #tpu.pipeline_mode<synchronous>, transform_indices = @transform_7, window_bounds = array<i64: 1, 512>}, {pipeline_mode = #tpu.pipeline_mode<synchronous>, transform_indices = @transform_8, window_bounds = array<i64: 512, 128>}, {pipeline_mode = #tpu.pipeline_mode<synchronous>, transform_indices = @transform_9, window_bounds = array<i64: 1, 128>}, {transform_indices = @transform_10, window_bounds = array<i64: 256, 128>}]} {
    %c0 = arith.constant 0 : index
    %c0_0 = arith.constant 0 : index
    %0 = vector.load %arg1[%c0, %c0_0] : memref<256x128xf32, #tpu.memory_space<vmem>>, vector<256x128xf32>
    %c0_1 = arith.constant 0 : index
    %c0_2 = arith.constant 0 : index
    %1 = vector.load %arg2[%c0_1, %c0_2] : memref<1x128xf32, #tpu.memory_space<vmem>>, vector<1x128xf32>
    %c0_3 = arith.constant 0 : index
    %c0_4 = arith.constant 0 : index
    %2 = vector.load %arg3[%c0_3, %c0_4] : memref<1x128xf32, #tpu.memory_space<vmem>>, vector<1x128xf32>
    %cst = arith.constant dense<0.000000e+00> : vector<256xf32>
    %3 = vector.multi_reduction <add>, %0, %cst [1] : vector<256x128xf32> to vector<256xf32>
    %4 = vector.shape_cast %3 : vector<256xf32> to vector<256x1xf32>
    %cst_5 = arith.constant 1.280000e+02 : f32
    %5 = vector.broadcast %cst_5 : f32 to vector<256x1xf32>
    %6 = arith.divf %4, %5 : vector<256x1xf32>
    %7 = vector.broadcast %6 : vector<256x1xf32> to vector<256x128xf32>
    %8 = arith.subf %0, %7 : vector<256x128xf32>
    %9 = arith.mulf %8, %8 : vector<256x128xf32>
    %cst_6 = arith.constant dense<0.000000e+00> : vector<256xf32>
    %10 = vector.multi_reduction <add>, %9, %cst_6 [1] : vector<256x128xf32> to vector<256xf32>
    %11 = vector.shape_cast %10 : vector<256xf32> to vector<256x1xf32>
    %cst_7 = arith.constant 1.280000e+02 : f32
    %12 = vector.broadcast %cst_7 : f32 to vector<256x1xf32>
    %13 = arith.divf %11, %12 : vector<256x1xf32>
    %14 = vector.broadcast %6 : vector<256x1xf32> to vector<256x128xf32>
    %15 = arith.subf %0, %14 : vector<256x128xf32>
    %cst_8 = arith.constant 9.99999974E-6 : f32
    %16 = vector.broadcast %cst_8 : f32 to vector<256x1xf32>
    %17 = arith.addf %13, %16 : vector<256x1xf32>
    %18 = math.rsqrt %17 : vector<256x1xf32>
    %19 = vector.broadcast %18 : vector<256x1xf32> to vector<256x128xf32>
    %20 = arith.mulf %15, %19 : vector<256x128xf32>
    %21 = vector.broadcast %1 : vector<1x128xf32> to vector<256x128xf32>
    %22 = arith.mulf %20, %21 : vector<256x128xf32>
    %23 = vector.broadcast %2 : vector<1x128xf32> to vector<256x128xf32>
    %24 = arith.addf %22, %23 : vector<256x128xf32>
    %25 = arith.truncf %24 : vector<256x128xf32> to vector<256x128xbf16>
    %c0_9 = arith.constant 0 : index
    %c0_10 = arith.constant 0 : index
    %26 = vector.load %arg4[%c0_9, %c0_10] : memref<128x768xbf16, #tpu.memory_space<vmem>>, vector<128x768xbf16>
    %cst_11 = arith.constant dense<0.000000e+00> : vector<256x768xf32>
    %27 = tpu.matmul %25, %26, %cst_11 {dimension_numbers = #tpu.dot_dimension_numbers<[1], [0], [0], [1], [0, 0, 1, 1], [], []>} : vector<256x128xbf16>, vector<128x768xbf16>, vector<256x768xf32> -> vector<256x768xf32>
    %28 = tpu.iota {dimensions = array<i32: 1>} : vector<8x32x32xi32>
    %29 = tpu.iota {dimensions = array<i32: 2>} : vector<8x32x32xi32>
    %30 = arith.cmpi sge, %28, %29 : vector<8x32x32xi32>
    %31 = vector.extract_strided_slice %27 {offsets = [0, 0], sizes = [256, 128], strides = [1, 1]} : vector<256x768xf32> to vector<256x128xf32>
    %32 = vector.shape_cast %31 : vector<256x128xf32> to vector<8x32x128xf32>
    %33 = arith.truncf %32 : vector<8x32x128xf32> to vector<8x32x128xbf16>
    %34 = vector.extract_strided_slice %27 {offsets = [0, 256], sizes = [256, 128], strides = [1, 1]} : vector<256x768xf32> to vector<256x128xf32>
    %35 = vector.shape_cast %34 : vector<256x128xf32> to vector<8x32x128xf32>
    %36 = arith.truncf %35 : vector<8x32x128xf32> to vector<8x32x128xbf16>
    %37 = vector.extract_strided_slice %27 {offsets = [0, 512], sizes = [256, 128], strides = [1, 1]} : vector<256x768xf32> to vector<256x128xf32>
    %38 = vector.shape_cast %37 : vector<256x128xf32> to vector<8x32x128xf32>
    %39 = arith.truncf %38 : vector<8x32x128xf32> to vector<8x32x128xbf16>
    "tpu.trace_start"() <{level = 10 : i32, message = "btd,bsd->bts"}> : () -> ()
    %cst_12 = arith.constant dense<0.000000e+00> : vector<8x32x32xf32>
    %40 = tpu.matmul %33, %36, %cst_12 {dimension_numbers = #tpu.dot_dimension_numbers<[2], [2], [1], [1], [0, 0, 0, 1, 1, 1], [0], [0]>} : vector<8x32x128xbf16>, vector<8x32x128xbf16>, vector<8x32x32xf32> -> vector<8x32x32xf32>
    %cst_13 = arith.constant -1.000000e+30 : f32
    "tpu.trace_stop"() : () -> ()
    %41 = vector.broadcast %cst_13 : f32 to vector<8x32x32xf32>
    %42 = arith.select %30, %40, %41 : vector<8x32x32xi1>, vector<8x32x32xf32>
    %cst_14 = arith.constant dense<0xFF800000> : vector<8x32xf32>
    %43 = vector.multi_reduction <maximumf>, %42, %cst_14 [2] : vector<8x32x32xf32> to vector<8x32xf32>
    %44 = vector.shape_cast %43 : vector<8x32xf32> to vector<8x32x1xf32>
    %45 = vector.broadcast %44 : vector<8x32x1xf32> to vector<8x32x32xf32>
    %46 = arith.subf %42, %45 : vector<8x32x32xf32>
    %47 = math.exp %46 : vector<8x32x32xf32>
    %cst_15 = arith.constant dense<0.000000e+00> : vector<8x32xf32>
    %48 = vector.multi_reduction <add>, %47, %cst_15 [2] : vector<8x32x32xf32> to vector<8x32xf32>
    %49 = vector.shape_cast %48 : vector<8x32xf32> to vector<8x32x1xf32>
    %50 = tpu.reciprocal %49 {approx = true} : vector<8x32x1xf32> -> vector<8x32x1xf32>
    %51 = vector.broadcast %50 : vector<8x32x1xf32> to vector<8x32x32xf32>
    %52 = arith.mulf %47, %51 : vector<8x32x32xf32>
    %53 = arith.truncf %52 : vector<8x32x32xf32> to vector<8x32x32xbf16>
    "tpu.trace_start"() <{level = 10 : i32, message = "bts,bsd->btd"}> : () -> ()
    %cst_16 = arith.constant dense<0.000000e+00> : vector<8x32x128xf32>
    %54 = tpu.matmul %53, %39, %cst_16 {dimension_numbers = #tpu.dot_dimension_numbers<[2], [1], [1], [2], [0, 0, 0, 1, 1, 2], [0], [0]>} : vector<8x32x32xbf16>, vector<8x32x128xbf16>, vector<8x32x128xf32> -> vector<8x32x128xf32>
    "tpu.trace_stop"() : () -> ()
    %55 = vector.extract_strided_slice %27 {offsets = [0, 128], sizes = [256, 128], strides = [1, 1]} : vector<256x768xf32> to vector<256x128xf32>
    %56 = vector.shape_cast %55 : vector<256x128xf32> to vector<8x32x128xf32>
    %57 = arith.truncf %56 : vector<8x32x128xf32> to vector<8x32x128xbf16>
    %58 = vector.extract_strided_slice %27 {offsets = [0, 384], sizes = [256, 128], strides = [1, 1]} : vector<256x768xf32> to vector<256x128xf32>
    %59 = vector.shape_cast %58 : vector<256x128xf32> to vector<8x32x128xf32>
    %60 = arith.truncf %59 : vector<8x32x128xf32> to vector<8x32x128xbf16>
    %61 = vector.extract_strided_slice %27 {offsets = [0, 640], sizes = [256, 128], strides = [1, 1]} : vector<256x768xf32> to vector<256x128xf32>
    %62 = vector.shape_cast %61 : vector<256x128xf32> to vector<8x32x128xf32>
    %63 = arith.truncf %62 : vector<8x32x128xf32> to vector<8x32x128xbf16>
    "tpu.trace_start"() <{level = 10 : i32, message = "btd,bsd->bts"}> : () -> ()
    %cst_17 = arith.constant dense<0.000000e+00> : vector<8x32x32xf32>
    %64 = tpu.matmul %57, %60, %cst_17 {dimension_numbers = #tpu.dot_dimension_numbers<[2], [2], [1], [1], [0, 0, 0, 1, 1, 1], [0], [0]>} : vector<8x32x128xbf16>, vector<8x32x128xbf16>, vector<8x32x32xf32> -> vector<8x32x32xf32>
    %cst_18 = arith.constant -1.000000e+30 : f32
    "tpu.trace_stop"() : () -> ()
    %65 = vector.broadcast %cst_18 : f32 to vector<8x32x32xf32>
    %66 = arith.select %30, %64, %65 : vector<8x32x32xi1>, vector<8x32x32xf32>
    %cst_19 = arith.constant dense<0xFF800000> : vector<8x32xf32>
    %67 = vector.multi_reduction <maximumf>, %66, %cst_19 [2] : vector<8x32x32xf32> to vector<8x32xf32>
    %68 = vector.shape_cast %67 : vector<8x32xf32> to vector<8x32x1xf32>
    %69 = vector.broadcast %68 : vector<8x32x1xf32> to vector<8x32x32xf32>
    %70 = arith.subf %66, %69 : vector<8x32x32xf32>
    %71 = math.exp %70 : vector<8x32x32xf32>
    %cst_20 = arith.constant dense<0.000000e+00> : vector<8x32xf32>
    %72 = vector.multi_reduction <add>, %71, %cst_20 [2] : vector<8x32x32xf32> to vector<8x32xf32>
    %73 = vector.shape_cast %72 : vector<8x32xf32> to vector<8x32x1xf32>
    %74 = tpu.reciprocal %73 {approx = true} : vector<8x32x1xf32> -> vector<8x32x1xf32>
    %75 = vector.broadcast %74 : vector<8x32x1xf32> to vector<8x32x32xf32>
    %76 = arith.mulf %71, %75 : vector<8x32x32xf32>
    %77 = arith.truncf %76 : vector<8x32x32xf32> to vector<8x32x32xbf16>
    "tpu.trace_start"() <{level = 10 : i32, message = "bts,bsd->btd"}> : () -> ()
    %cst_21 = arith.constant dense<0.000000e+00> : vector<8x32x128xf32>
    %78 = tpu.matmul %77, %63, %cst_21 {dimension_numbers = #tpu.dot_dimension_numbers<[2], [1], [1], [2], [0, 0, 0, 1, 1, 2], [0], [0]>} : vector<8x32x32xbf16>, vector<8x32x128xbf16>, vector<8x32x128xf32> -> vector<8x32x128xf32>
    "tpu.trace_stop"() : () -> ()
    %79 = arith.addf %54, %78 : vector<8x32x128xf32>
    %80 = vector.shape_cast %79 : vector<8x32x128xf32> to vector<256x128xf32>
    %81 = arith.addf %80, %0 : vector<256x128xf32>
    %c0_22 = arith.constant 0 : index
    %c0_23 = arith.constant 0 : index
    %82 = vector.load %arg5[%c0_22, %c0_23] : memref<1x128xf32, #tpu.memory_space<vmem>>, vector<1x128xf32>
    %c0_24 = arith.constant 0 : index
    %c0_25 = arith.constant 0 : index
    %83 = vector.load %arg6[%c0_24, %c0_25] : memref<1x128xf32, #tpu.memory_space<vmem>>, vector<1x128xf32>
    %cst_26 = arith.constant dense<0.000000e+00> : vector<256xf32>
    %84 = vector.multi_reduction <add>, %81, %cst_26 [1] : vector<256x128xf32> to vector<256xf32>
    %85 = vector.shape_cast %84 : vector<256xf32> to vector<256x1xf32>
    %cst_27 = arith.constant 1.280000e+02 : f32
    %86 = vector.broadcast %cst_27 : f32 to vector<256x1xf32>
    %87 = arith.divf %85, %86 : vector<256x1xf32>
    %88 = vector.broadcast %87 : vector<256x1xf32> to vector<256x128xf32>
    %89 = arith.subf %81, %88 : vector<256x128xf32>
    %90 = arith.mulf %89, %89 : vector<256x128xf32>
    %cst_28 = arith.constant dense<0.000000e+00> : vector<256xf32>
    %91 = vector.multi_reduction <add>, %90, %cst_28 [1] : vector<256x128xf32> to vector<256xf32>
    %92 = vector.shape_cast %91 : vector<256xf32> to vector<256x1xf32>
    %cst_29 = arith.constant 1.280000e+02 : f32
    %93 = vector.broadcast %cst_29 : f32 to vector<256x1xf32>
    %94 = arith.divf %92, %93 : vector<256x1xf32>
    %95 = vector.broadcast %87 : vector<256x1xf32> to vector<256x128xf32>
    %96 = arith.subf %81, %95 : vector<256x128xf32>
    %cst_30 = arith.constant 9.99999974E-6 : f32
    %97 = vector.broadcast %cst_30 : f32 to vector<256x1xf32>
    %98 = arith.addf %94, %97 : vector<256x1xf32>
    %99 = math.rsqrt %98 : vector<256x1xf32>
    %100 = vector.broadcast %99 : vector<256x1xf32> to vector<256x128xf32>
    %101 = arith.mulf %96, %100 : vector<256x128xf32>
    %102 = vector.broadcast %82 : vector<1x128xf32> to vector<256x128xf32>
    %103 = arith.mulf %101, %102 : vector<256x128xf32>
    %104 = vector.broadcast %83 : vector<1x128xf32> to vector<256x128xf32>
    %105 = arith.addf %103, %104 : vector<256x128xf32>
    %106 = arith.truncf %105 : vector<256x128xf32> to vector<256x128xbf16>
    %c0_31 = arith.constant 0 : index
    %c0_32 = arith.constant 0 : index
    %107 = vector.load %arg7[%c0_31, %c0_32] : memref<128x512xbf16, #tpu.memory_space<vmem>>, vector<128x512xbf16>
    %cst_33 = arith.constant dense<0.000000e+00> : vector<256x512xf32>
    %108 = tpu.matmul %106, %107, %cst_33 {dimension_numbers = #tpu.dot_dimension_numbers<[1], [0], [0], [1], [0, 0, 1, 1], [], []>} : vector<256x128xbf16>, vector<128x512xbf16>, vector<256x512xf32> -> vector<256x512xf32>
    %c0_34 = arith.constant 0 : index
    %c0_35 = arith.constant 0 : index
    %109 = vector.load %arg8[%c0_34, %c0_35] : memref<1x512xf32, #tpu.memory_space<vmem>>, vector<1x512xf32>
    %110 = vector.broadcast %109 : vector<1x512xf32> to vector<256x512xf32>
    %111 = arith.addf %108, %110 : vector<256x512xf32>
    %cst_36 = arith.constant 0.000000e+00 : f32
    %112 = vector.broadcast %cst_36 : f32 to vector<256x512xf32>
    %113 = arith.maximumf %111, %112 : vector<256x512xf32>
    %114 = arith.truncf %113 : vector<256x512xf32> to vector<256x512xbf16>
    %c0_37 = arith.constant 0 : index
    %c0_38 = arith.constant 0 : index
    %115 = vector.load %arg9[%c0_37, %c0_38] : memref<512x128xbf16, #tpu.memory_space<vmem>>, vector<512x128xbf16>
    %cst_39 = arith.constant dense<0.000000e+00> : vector<256x128xf32>
    %116 = tpu.matmul %114, %115, %cst_39 {dimension_numbers = #tpu.dot_dimension_numbers<[1], [0], [0], [1], [0, 0, 1, 1], [], []>} : vector<256x512xbf16>, vector<512x128xbf16>, vector<256x128xf32> -> vector<256x128xf32>
    %c0_40 = arith.constant 0 : index
    %c0_41 = arith.constant 0 : index
    %117 = vector.load %arg10[%c0_40, %c0_41] : memref<1x128xf32, #tpu.memory_space<vmem>>, vector<1x128xf32>
    %118 = vector.broadcast %117 : vector<1x128xf32> to vector<256x128xf32>
    %119 = arith.addf %116, %118 : vector<256x128xf32>
    %120 = arith.addf %119, %105 : vector<256x128xf32>
    %c0_42 = arith.constant 0 : index
    %c0_43 = arith.constant 0 : index
    %121 = vector.load %arg11[%c0_42, %c0_43] : memref<256x128xf32, #tpu.memory_space<vmem>>, vector<256x128xf32>
    tpu.vector_store %arg11[%c0_42, %c0_43], %120 {strides = array<i32>} : memref<256x128xf32, #tpu.memory_space<vmem>>, vector<256x128xf32>,
    return
  }
  func.func @transform_0(%arg0: i32) -> (i32, i32) {
    %c0_i32 = arith.constant 0 : i32
    %c0_i32_0 = arith.constant 0 : i32
    return %arg0, %c0_i32 : i32, i32
  }
  func.func @transform_1(%arg0: i32) -> (i32, i32) {
    %c0_i32 = arith.constant 0 : i32
    %c0_i32_0 = arith.constant 0 : i32
    %c0_i32_1 = arith.constant 0 : i32
    return %c0_i32, %c0_i32_0 : i32, i32
  }
  func.func @transform_2(%arg0: i32) -> (i32, i32) {
    %c0_i32 = arith.constant 0 : i32
    %c0_i32_0 = arith.constant 0 : i32
    %c0_i32_1 = arith.constant 0 : i32
    return %c0_i32, %c0_i32_0 : i32, i32
  }
  func.func @transform_3(%arg0: i32) -> (i32, i32) {
    %c0_i32 = arith.constant 0 : i32
    %c0_i32_0 = arith.constant 0 : i32
    %c0_i32_1 = arith.constant 0 : i32
    return %c0_i32, %c0_i32_0 : i32, i32
  }
  func.func @transform_4(%arg0: i32) -> (i32, i32) {
    %c0_i32 = arith.constant 0 : i32
    %c0_i32_0 = arith.constant 0 : i32
    %c0_i32_1 = arith.constant 0 : i32
    return %c0_i32, %c0_i32_0 : i32, i32
  }
  func.func @transform_5(%arg0: i32) -> (i32, i32) {
    %c0_i32 = arith.constant 0 : i32
    %c0_i32_0 = arith.constant 0 : i32
    %c0_i32_1 = arith.constant 0 : i32
    return %c0_i32, %c0_i32_0 : i32, i32
  }
  func.func @transform_6(%arg0: i32) -> (i32, i32) {
    %c0_i32 = arith.constant 0 : i32
    %c0_i32_0 = arith.constant 0 : i32
    %c0_i32_1 = arith.constant 0 : i32
    return %c0_i32, %c0_i32_0 : i32, i32
  }
  func.func @transform_7(%arg0: i32) -> (i32, i32) {
    %c0_i32 = arith.constant 0 : i32
    %c0_i32_0 = arith.constant 0 : i32
    %c0_i32_1 = arith.constant 0 : i32
    return %c0_i32, %c0_i32_0 : i32, i32
  }
  func.func @transform_8(%arg0: i32) -> (i32, i32) {
    %c0_i32 = arith.constant 0 : i32
    %c0_i32_0 = arith.constant 0 : i32
    %c0_i32_1 = arith.constant 0 : i32
    return %c0_i32, %c0_i32_0 : i32, i32
  }
  func.func @transform_9(%arg0: i32) -> (i32, i32) {
    %c0_i32 = arith.constant 0 : i32
    %c0_i32_0 = arith.constant 0 : i32
    %c0_i32_1 = arith.constant 0 : i32
    return %c0_i32, %c0_i32_0 : i32, i32
  }
  func.func @transform_10(%arg0: i32) -> (i32, i32) {
    %c0_i32 = arith.constant 0 : i32
    %c0_i32_0 = arith.constant 0 : i32
    return %arg0, %c0_i32 : i32, i32
  }
}

</mosaic_0001>

<llo_original>
// kernel: block_forward.1
$region0: #{block_forward.1}
  #allocation0 [shape = 'u32[]', space=smem, size = 0x4, offset = 0x4, fixed_abs, tag = 'smem constant byte address 0x4 - core index']
  #allocation1 [shape = 'u32[72,128]{1,0:T(1,128)}', space=vmem, size = 0x9000, scoped, tag = 'internal scratch']
  %s0 = inlined_call_operand.hbm [shape: f32[256,128], index: 0, kind: input, shape index: {}]
  %s1 = inlined_call_operand.vmem [shape: f32[1,128], index: 1, kind: input, shape index: {}]
  %s2 = inlined_call_operand.vmem [shape: f32[1,128], index: 2, kind: input, shape index: {}]
  %s3 = inlined_call_operand.hbm [shape: bf16[128,768], index: 3, kind: input, shape index: {}]
  %s4 = inlined_call_operand.vmem [shape: f32[1,128], index: 4, kind: input, shape index: {}]
  %s5 = inlined_call_operand.vmem [shape: f32[1,128], index: 5, kind: input, shape index: {}]
  %s6 = inlined_call_operand.hbm [shape: bf16[128,512], index: 6, kind: input, shape index: {}]
  %s7 = inlined_call_operand.hbm [shape: f32[1,512], index: 7, kind: input, shape index: {}]
  %s8 = inlined_call_operand.hbm [shape: bf16[512,128], index: 8, kind: input, shape index: {}]
  %s9 = inlined_call_operand.hbm [shape: f32[1,128], index: 9, kind: input, shape index: {}]
  %s10 = inlined_call_operand.hbm [shape: f32[256,128], index: 10, kind: output, shape index: {}]
  %s11 = sld [smem:[#allocation0]]
  $region74: #{block_forward.1} parent=0
    _
  %s13 = ssub.s32 1, %s11
  %s14 = scalar_select 0, %s13, %s11
  $region1: #{block_forward.1} parent=0
    #allocation2 [shape = 'u8[131072]{0}', space=vmem, size = 0x20000, scoped, tag = 'input window, operand 0, single buffered']
    #allocation3 [shape = 's32[1]{0}', space=sflag, size = 0x4, scoped, tag = 'scoped memory for block_forward.1']
    #allocation4 [shape = 's32[1]{0}', space=sflag, size = 0x4, scoped, tag = 'scoped memory for block_forward.1']
    #allocation5 [shape = 'u8[196608]{0}', space=vmem, size = 0x30000, scoped, tag = 'input window, operand 3, single buffered']
    #allocation6 [shape = 's32[1]{0}', space=sflag, size = 0x4, scoped, tag = 'scoped memory for block_forward.1']
    #allocation7 [shape = 'u8[131072]{0}', space=vmem, size = 0x20000, scoped, tag = 'input window, operand 6, single buffered']
    #allocation8 [shape = 'u8[2048]{0}', space=vmem, size = 0x800, scoped, tag = 'input window, operand 7, single buffered']
    #allocation9 [shape = 's32[1]{0}', space=sflag, size = 0x4, scoped, tag = 'scoped memory for block_forward.1']
    #allocation10 [shape = 'u8[131072]{0}', space=vmem, size = 0x20000, scoped, tag = 'input window, operand 8, single buffered']
    #allocation11 [shape = 'u8[512]{0}', space=vmem, size = 0x400, scoped, tag = 'input window, operand 9, single buffered']
    #allocation12 [shape = 's32[1]{0}', space=sflag, size = 0x4, scoped, tag = 'scoped memory for block_forward.1']
    #allocation13 [shape = 'u8[131072]{0}', space=vmem, size = 0x20000, scoped, tag = 'output window, operand 0, single buffered']
    %15 = vsyncpa [#allocation3], 0
    %16 = vsyncpa [#allocation6], 0
    %17 = vsyncpa [#allocation9], 0
    %18 = vsyncpa [#allocation12], 0
    %19 = vsyncpa [#allocation4], 0
    // Predicated region
    $region2: #{block_forward.1} parent=1 // pred_check
      _
    $region3: #{block_forward.1} parent=1 // pred_check_branch
      %21 = sbr.rel (0) target = $region5
    $region4: #{block_forward.1} parent=1 // pred_region
      %23 = vsyncadd [#allocation3], 0
      %s24 = sshll.u32 %s0, 4
      %s25 = int_to_ptr.hbm [resolvable:$true] %s24
      %s26 = sshll.u32 [#allocation2], 4
      %s27 = int_to_ptr.vmem [resolvable:$true] %s26
      %32 = dma.hbm_to_vmem [thread:$0]  %s25, 4096, %s27, [#allocation3], 128, 128, 8
    $region5: #{block_forward.1} parent=1 // pred_fallthru
      _
    // Predicated region
    $region6: #{block_forward.1} parent=1 // pred_check
      _
    $region7: #{block_forward.1} parent=1 // pred_check_branch
      %34 = sbr.rel (0) target = $region9
    $region8: #{block_forward.1} parent=1 // pred_region
      _
    $region9: #{block_forward.1} parent=1 // pred_fallthru
      _
    // Predicated region
    $region10: #{block_forward.1} parent=1 // pred_check
      _
    $region11: #{block_forward.1} parent=1 // pred_check_branch
      %36 = sbr.rel (0) target = $region13
    $region12: #{block_forward.1} parent=1 // pred_region
      _
    $region13: #{block_forward.1} parent=1 // pred_fallthru
      _
    // Predicated region
    $region14: #{block_forward.1} parent=1 // pred_check
      _
    $region15: #{block_forward.1} parent=1 // pred_check_branch
      %38 = sbr.rel (0) target = $region17
    $region16: #{block_forward.1} parent=1 // pred_region
      %40 = vsyncadd [#allocation6], 0
      %s41 = sshll.u32 %s3, 4
      %s42 = int_to_ptr.hbm [resolvable:$true] %s41
      %s43 = sshll.u32 [#allocation5], 4
      %s44 = int_to_ptr.vmem [resolvable:$true] %s43
      %49 = dma.hbm_to_vmem [thread:$0]  %s42, 6144, %s44, [#allocation6], 384, 384, 24
    $region17: #{block_forward.1} parent=1 // pred_fallthru
      _
    // Predicated region
    $region18: #{block_forward.1} parent=1 // pred_check
      _
    $region19: #{block_forward.1} parent=1 // pred_check_branch
      %51 = sbr.rel (0) target = $region21
    $region20: #{block_forward.1} parent=1 // pred_region
      _
    $region21: #{block_forward.1} parent=1 // pred_fallthru
      _
    // Predicated region
    $region22: #{block_forward.1} parent=1 // pred_check
      _
    $region23: #{block_forward.1} parent=1 // pred_check_branch
      %53 = sbr.rel (0) target = $region25
    $region24: #{block_forward.1} parent=1 // pred_region
      _
    $region25: #{block_forward.1} parent=1 // pred_fallthru
      _
    // Predicated region
    $region26: #{block_forward.1} parent=1 // pred_check
      _
    $region27: #{block_forward.1} parent=1 // pred_check_branch
      %55 = sbr.rel (0) target = $region29
    $region28: #{block_forward.1} parent=1 // pred_region
      %57 = vsyncadd [#allocation6], 0
      %s58 = sshll.u32 %s6, 4
      %s59 = int_to_ptr.hbm [resolvable:$true] %s58
      %s60 = sshll.u32 [#allocation7], 4
      %s61 = int_to_ptr.vmem [resolvable:$true] %s60
      %66 = dma.hbm_to_vmem [thread:$0]  %s59, 4096, %s61, [#allocation6], 256, 256, 16
    $region29: #{block_forward.1} parent=1 // pred_fallthru
      _
    // Predicated region
    $region30: #{block_forward.1} parent=1 // pred_check
      _
    $region31: #{block_forward.1} parent=1 // pred_check_branch
      %68 = sbr.rel (0) target = $region33
    $region32: #{block_forward.1} parent=1 // pred_region
      %70 = vsyncadd [#allocation9], 0
      %s72 = sshll.u32 %s7, 4
      %s73 = int_to_ptr.hbm [resolvable:$true] %s72
      %s74 = sshll.u32 [#allocation8], 4
      %s75 = int_to_ptr.vmem [resolvable:$true] %s74
      %77 = dma.hbm_to_vmem [thread:$0]  %s73, 64, %s75, [#allocation9]
    $region33: #{block_forward.1} parent=1 // pred_fallthru
      _
    // Predicated region
    $region34: #{block_forward.1} parent=1 // pred_check
      _
    $region35: #{block_forward.1} parent=1 // pred_check_branch
      %79 = sbr.rel (0) target = $region37
    $region36: #{block_forward.1} parent=1 // pred_region
      %81 = vsyncadd [#allocation9], 0
      %s82 = sshll.u32 %s8, 4
      %s83 = int_to_ptr.hbm [resolvable:$true] %s82
      %s84 = sshll.u32 [#allocation10], 4
      %s85 = int_to_ptr.vmem [resolvable:$true] %s84
      %90 = dma.hbm_to_vmem [thread:$0]  %s83, 4096, %s85, [#allocation9], 64, 64, 4
    $region37: #{block_forward.1} parent=1 // pred_fallthru
      _
    // Predicated region
    $region38: #{block_forward.1} parent=1 // pred_check
      _
    $region39: #{block_forward.1} parent=1 // pred_check_branch
      %92 = sbr.rel (0) target = $region41
    $region40: #{block_forward.1} parent=1 // pred_region
      %94 = vsyncadd [#allocation12], 0
      %s96 = sshll.u32 %s9, 4
      %s97 = int_to_ptr.hbm [resolvable:$true] %s96
      %s98 = sshll.u32 [#allocation11], 4
      %s99 = int_to_ptr.vmem [resolvable:$true] %s98
      %101 = dma.hbm_to_vmem [thread:$0]  %s97, 16, %s99, [#allocation12]
    $region41: #{block_forward.1} parent=1 // pred_fallthru
      _
    // Predicated region
    $region42: #{block_forward.1} parent=1 // pred_check
      _
    $region43: #{block_forward.1} parent=1 // pred_check_branch
      %103 = sbr.rel (0) target = $region45
    $region44: #{block_forward.1} parent=1 // pred_region
      %105 = dma.done [#allocation3], 4096
    $region45: #{block_forward.1} parent=1 // pred_fallthru
      _
    // Predicated region
    $region46: #{block_forward.1} parent=1 // pred_check
      _
    $region47: #{block_forward.1} parent=1 // pred_check_branch
      %107 = sbr.rel (0) target = $region49
    $region48: #{block_forward.1} parent=1 // pred_region
      %109 = dma.done [#allocation6], 6144
    $region49: #{block_forward.1} parent=1 // pred_fallthru
      _
    // Predicated region
    $region50: #{block_forward.1} parent=1 // pred_check
      _
    $region51: #{block_forward.1} parent=1 // pred_check_branch
      %111 = sbr.rel (0) target = $region53
    $region52: #{block_forward.1} parent=1 // pred_region
      %113 = dma.done [#allocation6], 4096
    $region53: #{block_forward.1} parent=1 // pred_fallthru
      _
    // Predicated region
    $region54: #{block_forward.1} parent=1 // pred_check
      _
    $region55: #{block_forward.1} parent=1 // pred_check_branch
      %115 = sbr.rel (0) target = $region57
    $region56: #{block_forward.1} parent=1 // pred_region
      %117 = dma.done [#allocation9], 64
    $region57: #{block_forward.1} parent=1 // pred_fallthru
      _
    // Predicated region
    $region58: #{block_forward.1} parent=1 // pred_check
      _
    $region59: #{block_forward.1} parent=1 // pred_check_branch
      %119 = sbr.rel (0) target = $region61
    $region60: #{block_forward.1} parent=1 // pred_region
      %121 = dma.done [#allocation9], 4096
    $region61: #{block_forward.1} parent=1 // pred_fallthru
      _
    // Predicated region
    $region62: #{block_forward.1} parent=1 // pred_check
      _
    $region63: #{block_forward.1} parent=1 // pred_check_branch
      %123 = sbr.rel (0) target = $region65
    $region64: #{block_forward.1} parent=1 // pred_region
      %125 = dma.done [#allocation12], 16
    $region65: #{block_forward.1} parent=1 // pred_fallthru
      _
    %v127 = vld [vmem:[#allocation2] sm:$0xff]
    %v128 = vld [vmem:[#allocation2 + $0x8] sm:$0xff]
    %v129 = vld [vmem:[#allocation2 + $0x10] sm:$0xff]
    %v130 = vld [vmem:[#allocation2 + $0x18] sm:$0xff]
    %v131 = vld [vmem:[#allocation2 + $0x20] sm:$0xff]
    %v132 = vld [vmem:[#allocation2 + $0x28] sm:$0xff]
    %v133 = vld [vmem:[#allocation2 + $0x30] sm:$0xff]
    %v134 = vld [vmem:[#allocation2 + $0x38] sm:$0xff]
    %v135 = vld [vmem:[#allocation2 + $0x40] sm:$0xff]
    %v136 = vld [vmem:[#allocation2 + $0x48] sm:$0xff]
    %v137 = vld [vmem:[#allocation2 + $0x50] sm:$0xff]
    %v138 = vld [vmem:[#allocation2 + $0x58] sm:$0xff]
    %v139 = vld [vmem:[#allocation2 + $0x60] sm:$0xff]
    %v140 = vld [vmem:[#allocation2 + $0x68] sm:$0xff]
    %v141 = vld [vmem:[#allocation2 + $0x70] sm:$0xff]
    %v142 = vld [vmem:[#allocation2 + $0x78] sm:$0xff]
    %v143 = vld [vmem:[#allocation2 + $0x80] sm:$0xff]
    %v144 = vld [vmem:[#allocation2 + $0x88] sm:$0xff]
    %v145 = vld [vmem:[#allocation2 + $0x90] sm:$0xff]
    %v146 = vld [vmem:[#allocation2 + $0x98] sm:$0xff]
    %v147 = vld [vmem:[#allocation2 + $0xa0] sm:$0xff]
    %v148 = vld [vmem:[#allocation2 + $0xa8] sm:$0xff]
    %v149 = vld [vmem:[#allocation2 + $0xb0] sm:$0xff]
    %v150 = vld [vmem:[#allocation2 + $0xb8] sm:$0xff]
    %v151 = vld [vmem:[#allocation2 + $0xc0] sm:$0xff]
    %v152 = vld [vmem:[#allocation2 + $0xc8] sm:$0xff]
    %v153 = vld [vmem:[#allocation2 + $0xd0] sm:$0xff]
    %v154 = vld [vmem:[#allocation2 + $0xd8] sm:$0xff]
    %v155 = vld [vmem:[#allocation2 + $0xe0] sm:$0xff]
    %v156 = vld [vmem:[#allocation2 + $0xe8] sm:$0xff]
    %v157 = vld [vmem:[#allocation2 + $0xf0] sm:$0xff]
    %v158 = vld [vmem:[#allocation2 + $0xf8] sm:$0xff]
    %v159 = vld [vmem:[%s1] sm:$0x1]
    %v160 = vld [vmem:[%s2] sm:$0x1]
    %161 = vadd.xlane.f32.xlu0 %v127
    %v162 = vpop.xlane.xlu0 %161
    %163 = vadd.xlane.f32.xlu0 %v128
    %v164 = vpop.xlane.xlu0 %163
    %165 = vadd.xlane.f32.xlu0 %v129
    %v166 = vpop.xlane.xlu0 %165
    %167 = vadd.xlane.f32.xlu0 %v130
    %v168 = vpop.xlane.xlu0 %167
    %169 = vadd.xlane.f32.xlu0 %v131
    %v170 = vpop.xlane.xlu0 %169
    %171 = vadd.xlane.f32.xlu0 %v132
    %v172 = vpop.xlane.xlu0 %171
    %173 = vadd.xlane.f32.xlu0 %v133
    %v174 = vpop.xlane.xlu0 %173
    %175 = vadd.xlane.f32.xlu0 %v134
    %v176 = vpop.xlane.xlu0 %175
    %177 = vadd.xlane.f32.xlu0 %v135
    %v178 = vpop.xlane.xlu0 %177
    %179 = vadd.xlane.f32.xlu0 %v136
    %v180 = vpop.xlane.xlu0 %179
    %181 = vadd.xlane.f32.xlu0 %v137
    %v182 = vpop.xlane.xlu0 %181
    %183 = vadd.xlane.f32.xlu0 %v138
    %v184 = vpop.xlane.xlu0 %183
    %185 = vadd.xlane.f32.xlu0 %v139
    %v186 = vpop.xlane.xlu0 %185
    %187 = vadd.xlane.f32.xlu0 %v140
    %v188 = vpop.xlane.xlu0 %187
    %189 = vadd.xlane.f32.xlu0 %v141
    %v190 = vpop.xlane.xlu0 %189
    %191 = vadd.xlane.f32.xlu0 %v142
    %v192 = vpop.xlane.xlu0 %191
    %193 = vadd.xlane.f32.xlu0 %v143
    %v194 = vpop.xlane.xlu0 %193
    %195 = vadd.xlane.f32.xlu0 %v144
    %v196 = vpop.xlane.xlu0 %195
    %197 = vadd.xlane.f32.xlu0 %v145
    %v198 = vpop.xlane.xlu0 %197
    %199 = vadd.xlane.f32.xlu0 %v146
    %v200 = vpop.xlane.xlu0 %199
    %201 = vadd.xlane.f32.xlu0 %v147
    %v202 = vpop.xlane.xlu0 %201
    %203 = vadd.xlane.f32.xlu0 %v148
    %v204 = vpop.xlane.xlu0 %203
    %205 = vadd.xlane.f32.xlu0 %v149
    %v206 = vpop.xlane.xlu0 %205
    %207 = vadd.xlane.f32.xlu0 %v150
    %v208 = vpop.xlane.xlu0 %207
    %209 = vadd.xlane.f32.xlu0 %v151
    %v210 = vpop.xlane.xlu0 %209
    %211 = vadd.xlane.f32.xlu0 %v152
    %v212 = vpop.xlane.xlu0 %211
    %213 = vadd.xlane.f32.xlu0 %v153
    %v214 = vpop.xlane.xlu0 %213
    %215 = vadd.xlane.f32.xlu0 %v154
    %v216 = vpop.xlane.xlu0 %215
    %217 = vadd.xlane.f32.xlu0 %v155
    %v218 = vpop.xlane.xlu0 %217
    %219 = vadd.xlane.f32.xlu0 %v156
    %v220 = vpop.xlane.xlu0 %219
    %221 = vadd.xlane.f32.xlu0 %v157
    %v222 = vpop.xlane.xlu0 %221
    %223 = vadd.xlane.f32.xlu0 %v158
    %v224 = vpop.xlane.xlu0 %223
    %v225 = vrcp.pop 128.0
    %v226 = vmul.f32 128.0, %v225
    %v227 = vsub.f32 1.0, %v226
    %v228 = vmul.f32 %v225, %v227
    %v229 = vadd.f32 %v225, %v228
    %vm230 = vweird.f32 %v225
    %v231 = vsel %vm230, %v225, %v229
    %v232 = vmul.f32 %v162, %v231
    %v233 = vmul.f32 %v164, %v231
    %v234 = vmul.f32 %v166, %v231
    %v235 = vmul.f32 %v168, %v231
    %v236 = vmul.f32 %v170, %v231
    %v237 = vmul.f32 %v172, %v231
    %v238 = vmul.f32 %v174, %v231
    %v239 = vmul.f32 %v176, %v231
    %v240 = vmul.f32 %v178, %v231
    %v241 = vmul.f32 %v180, %v231
    %v242 = vmul.f32 %v182, %v231
    %v243 = vmul.f32 %v184, %v231
    %v244 = vmul.f32 %v186, %v231
    %v245 = vmul.f32 %v188, %v231
    %v246 = vmul.f32 %v190, %v231
    %v247 = vmul.f32 %v192, %v231
    %v248 = vmul.f32 %v194, %v231
    %v249 = vmul.f32 %v196, %v231
    %v250 = vmul.f32 %v198, %v231
    %v251 = vmul.f32 %v200, %v231
    %v252 = vmul.f32 %v202, %v231
    %v253 = vmul.f32 %v204, %v231
    %v254 = vmul.f32 %v206, %v231
    %v255 = vmul.f32 %v208, %v231
    %v256 = vmul.f32 %v210, %v231
    %v257 = vmul.f32 %v212, %v231
    %v258 = vmul.f32 %v214, %v231
    %v259 = vmul.f32 %v216, %v231
    %v260 = vmul.f32 %v218, %v231
    %v261 = vmul.f32 %v220, %v231
    %v262 = vmul.f32 %v222, %v231
    %v263 = vmul.f32 %v224, %v231
    %v264 = vsub.f32 %v127, %v232
    %v265 = vsub.f32 %v128, %v233
    %v266 = vsub.f32 %v129, %v234
    %v267 = vsub.f32 %v130, %v235
    %v268 = vsub.f32 %v131, %v236
    %v269 = vsub.f32 %v132, %v237
    %v270 = vsub.f32 %v133, %v238
    %v271 = vsub.f32 %v134, %v239
    %v272 = vsub.f32 %v135, %v240
    %v273 = vsub.f32 %v136, %v241
    %v274 = vsub.f32 %v137, %v242
    %v275 = vsub.f32 %v138, %v243
    %v276 = vsub.f32 %v139, %v244
    %v277 = vsub.f32 %v140, %v245
    %v278 = vsub.f32 %v141, %v246
    %v279 = vsub.f32 %v142, %v247
    %v280 = vsub.f32 %v143, %v248
    %v281 = vsub.f32 %v144, %v249
    %v282 = vsub.f32 %v145, %v250
    %v283 = vsub.f32 %v146, %v251
    %v284 = vsub.f32 %v147, %v252
    %v285 = vsub.f32 %v148, %v253
    %v286 = vsub.f32 %v149, %v254
    %v287 = vsub.f32 %v150, %v255
    %v288 = vsub.f32 %v151, %v256
    %v289 = vsub.f32 %v152, %v257
    %v290 = vsub.f32 %v153, %v258
    %v291 = vsub.f32 %v154, %v259
    %v292 = vsub.f32 %v155, %v260
    %v293 = vsub.f32 %v156, %v261
    %v294 = vsub.f32 %v157, %v262
    %v295 = vsub.f32 %v158, %v263
    %v296 = vmul.f32 %v264, %v264
    %v297 = vmul.f32 %v265, %v265
    %v298 = vmul.f32 %v266, %v266
    %v299 = vmul.f32 %v267, %v267
    %v300 = vmul.f32 %v268, %v268
    %v301 = vmul.f32 %v269, %v269
    %v302 = vmul.f32 %v270, %v270
    %v303 = vmul.f32 %v271, %v271
    %v304 = vmul.f32 %v272, %v272
    %v305 = vmul.f32 %v273, %v273
    %v306 = vmul.f32 %v274, %v274
    %v307 = vmul.f32 %v275, %v275
    %v308 = vmul.f32 %v276, %v276
    %v309 = vmul.f32 %v277, %v277
    %v310 = vmul.f32 %v278, %v278
    %v311 = vmul.f32 %v279, %v279
    %v312 = vmul.f32 %v280, %v280
    %v313 = vmul.f32 %v281, %v281
    %v314 = vmul.f32 %v282, %v282
    %v315 = vmul.f32 %v283, %v283
    %v316 = vmul.f32 %v284, %v284
    %v317 = vmul.f32 %v285, %v285
    %v318 = vmul.f32 %v286, %v286
    %v319 = vmul.f32 %v287, %v287
    %v320 = vmul.f32 %v288, %v288
    %v321 = vmul.f32 %v289, %v289
    %v322 = vmul.f32 %v290, %v290
    %v323 = vmul.f32 %v291, %v291
    %v324 = vmul.f32 %v292, %v292
    %v325 = vmul.f32 %v293, %v293
    %v326 = vmul.f32 %v294, %v294
    %v327 = vmul.f32 %v295, %v295
    %328 = vadd.xlane.f32.xlu0 %v296
    %v329 = vpop.xlane.xlu0 %328
    %330 = vadd.xlane.f32.xlu0 %v297
    %v331 = vpop.xlane.xlu0 %330
    %332 = vadd.xlane.f32.xlu0 %v298
    %v333 = vpop.xlane.xlu0 %332
    %334 = vadd.xlane.f32.xlu0 %v299
    %v335 = vpop.xlane.xlu0 %334
    %336 = vadd.xlane.f32.xlu0 %v300
    %v337 = vpop.xlane.xlu0 %336
    %338 = vadd.xlane.f32.xlu0 %v301
    %v339 = vpop.xlane.xlu0 %338
    %340 = vadd.xlane.f32.xlu0 %v302
    %v341 = vpop.xlane.xlu0 %340
    %342 = vadd.xlane.f32.xlu0 %v303
    %v343 = vpop.xlane.xlu0 %342
    %344 = vadd.xlane.f32.xlu0 %v304
    %v345 = vpop.xlane.xlu0 %344
    %346 = vadd.xlane.f32.xlu0 %v305
    %v347 = vpop.xlane.xlu0 %346
    %348 = vadd.xlane.f32.xlu0 %v306
    %v349 = vpop.xlane.xlu0 %348
    %350 = vadd.xlane.f32.xlu0 %v307
    %v351 = vpop.xlane.xlu0 %350
    %352 = vadd.xlane.f32.xlu0 %v308
    %v353 = vpop.xlane.xlu0 %352
    %354 = vadd.xlane.f32.xlu0 %v309
    %v355 = vpop.xlane.xlu0 %354
    %356 = vadd.xlane.f32.xlu0 %v310
    %v357 = vpop.xlane.xlu0 %356
    %358 = vadd.xlane.f32.xlu0 %v311
    %v359 = vpop.xlane.xlu0 %358
    %360 = vadd.xlane.f32.xlu0 %v312
    %v361 = vpop.xlane.xlu0 %360
    %362 = vadd.xlane.f32.xlu0 %v313
    %v363 = vpop.xlane.xlu0 %362
    %364 = vadd.xlane.f32.xlu0 %v314
    %v365 = vpop.xlane.xlu0 %364
    %366 = vadd.xlane.f32.xlu0 %v315
    %v367 = vpop.xlane.xlu0 %366
    %368 = vadd.xlane.f32.xlu0 %v316
    %v369 = vpop.xlane.xlu0 %368
    %370 = vadd.xlane.f32.xlu0 %v317
    %v371 = vpop.xlane.xlu0 %370
    %372 = vadd.xlane.f32.xlu0 %v318
    %v373 = vpop.xlane.xlu0 %372
    %374 = vadd.xlane.f32.xlu0 %v319
    %v375 = vpop.xlane.xlu0 %374
    %376 = vadd.xlane.f32.xlu0 %v320
    %v377 = vpop.xlane.xlu0 %376
    %378 = vadd.xlane.f32.xlu0 %v321
    %v379 = vpop.xlane.xlu0 %378
    %380 = vadd.xlane.f32.xlu0 %v322
    %v381 = vpop.xlane.xlu0 %380
    %382 = vadd.xlane.f32.xlu0 %v323
    %v383 = vpop.xlane.xlu0 %382
    %384 = vadd.xlane.f32.xlu0 %v324
    %v385 = vpop.xlane.xlu0 %384
    %386 = vadd.xlane.f32.xlu0 %v325
    %v387 = vpop.xlane.xlu0 %386
    %388 = vadd.xlane.f32.xlu0 %v326
    %v389 = vpop.xlane.xlu0 %388
    %390 = vadd.xlane.f32.xlu0 %v327
    %v391 = vpop.xlane.xlu0 %390
    %v392 = vmul.f32 %v329, %v231
    %v393 = vmul.f32 %v331, %v231
    %v394 = vmul.f32 %v333, %v231
    %v395 = vmul.f32 %v335, %v231
    %v396 = vmul.f32 %v337, %v231
    %v397 = vmul.f32 %v339, %v231
    %v398 = vmul.f32 %v341, %v231
    %v399 = vmul.f32 %v343, %v231
    %v400 = vmul.f32 %v345, %v231
    %v401 = vmul.f32 %v347, %v231
    %v402 = vmul.f32 %v349, %v231
    %v403 = vmul.f32 %v351, %v231
    %v404 = vmul.f32 %v353, %v231
    %v405 = vmul.f32 %v355, %v231
    %v406 = vmul.f32 %v357, %v231
    %v407 = vmul.f32 %v359, %v231
    %v408 = vmul.f32 %v361, %v231
    %v409 = vmul.f32 %v363, %v231
    %v410 = vmul.f32 %v365, %v231
    %v411 = vmul.f32 %v367, %v231
    %v412 = vmul.f32 %v369, %v231
    %v413 = vmul.f32 %v371, %v231
    %v414 = vmul.f32 %v373, %v231
    %v415 = vmul.f32 %v375, %v231
    %v416 = vmul.f32 %v377, %v231
    %v417 = vmul.f32 %v379, %v231
    %v418 = vmul.f32 %v381, %v231
    %v419 = vmul.f32 %v383, %v231
    %v420 = vmul.f32 %v385, %v231
    %v421 = vmul.f32 %v387, %v231
    %v422 = vmul.f32 %v389, %v231
    %v423 = vmul.f32 %v391, %v231
    %v424 = vadd.f32 %v392, 1e-05
    %v425 = vadd.f32 %v393, 1e-05
    %v426 = vadd.f32 %v394, 1e-05
    %v427 = vadd.f32 %v395, 1e-05
    %v428 = vadd.f32 %v396, 1e-05
    %v429 = vadd.f32 %v397, 1e-05
    %v430 = vadd.f32 %v398, 1e-05
    %v431 = vadd.f32 %v399, 1e-05
    %v432 = vadd.f32 %v400, 1e-05
    %v433 = vadd.f32 %v401, 1e-05
    %v434 = vadd.f32 %v402, 1e-05
    %v435 = vadd.f32 %v403, 1e-05
    %v436 = vadd.f32 %v404, 1e-05
    %v437 = vadd.f32 %v405, 1e-05
    %v438 = vadd.f32 %v406, 1e-05
    %v439 = vadd.f32 %v407, 1e-05
    %v440 = vadd.f32 %v408, 1e-05
    %v441 = vadd.f32 %v409, 1e-05
    %v442 = vadd.f32 %v410, 1e-05
    %v443 = vadd.f32 %v411, 1e-05
    %v444 = vadd.f32 %v412, 1e-05
    %v445 = vadd.f32 %v413, 1e-05
    %v446 = vadd.f32 %v414, 1e-05
    %v447 = vadd.f32 %v415, 1e-05
    %v448 = vadd.f32 %v416, 1e-05
    %v449 = vadd.f32 %v417, 1e-05
    %v450 = vadd.f32 %v418, 1e-05
    %v451 = vadd.f32 %v419, 1e-05
    %v452 = vadd.f32 %v420, 1e-05
    %v453 = vadd.f32 %v421, 1e-05
    %v454 = vadd.f32 %v422, 1e-05
    %v455 = vadd.f32 %v423, 1e-05
    %v456 = vrsqrt.pop %v424
    %v457 = vmul.f32 %v456, %v424
    %v458 = vmul.f32 %v457, %v456
    %v459 = vmul.f32 0.5, %v458
    %v460 = vsub.f32 1.5, %v459
    %v461 = vmul.f32 %v456, %v460
    %vm462 = vweird.f32 %v424
    %vm463 = vweird.f32 %v456
    %vm464 = vmor %vm462, %vm463
    %v465 = vsel %vm464, %v456, %v461
    %v466 = vrsqrt.pop %v425
    %v467 = vmul.f32 %v466, %v425
    %v468 = vmul.f32 %v467, %v466
    %v469 = vmul.f32 0.5, %v468
    %v470 = vsub.f32 1.5, %v469
    %v471 = vmul.f32 %v466, %v470
    %vm472 = vweird.f32 %v425
    %vm473 = vweird.f32 %v466
    %vm474 = vmor %vm472, %vm473
    %v475 = vsel %vm474, %v466, %v471
    %v476 = vrsqrt.pop %v426
    %v477 = vmul.f32 %v476, %v426
    %v478 = vmul.f32 %v477, %v476
    %v479 = vmul.f32 0.5, %v478
    %v480 = vsub.f32 1.5, %v479
    %v481 = vmul.f32 %v476, %v480
    %vm482 = vweird.f32 %v426
    %vm483 = vweird.f32 %v476
    %vm484 = vmor %vm482, %vm483
    %v485 = vsel %vm484, %v476, %v481
    %v486 = vrsqrt.pop %v427
    %v487 = vmul.f32 %v486, %v427
    %v488 = vmul.f32 %v487, %v486
    %v489 = vmul.f32 0.5, %v488
    %v490 = vsub.f32 1.5, %v489
    %v491 = vmul.f32 %v486, %v490
    %vm492 = vweird.f32 %v427
    %vm493 = vweird.f32 %v486
    %vm494 = vmor %vm492, %vm493
    %v495 = vsel %vm494, %v486, %v491
    %v496 = vrsqrt.pop %v428
    %v497 = vmul.f32 %v496, %v428
    %v498 = vmul.f32 %v497, %v496
    %v499 = vmul.f32 0.5, %v498
    %v500 = vsub.f32 1.5, %v499
    %v501 = vmul.f32 %v496, %v500
    %vm502 = vweird.f32 %v428
    %vm503 = vweird.f32 %v496
    %vm504 = vmor %vm502, %vm503
    %v505 = vsel %vm504, %v496, %v501
    %v506 = vrsqrt.pop %v429
    %v507 = vmul.f32 %v506, %v429
    %v508 = vmul.f32 %v507, %v506
    %v509 = vmul.f32 0.5, %v508
    %v510 = vsub.f32 1.5, %v509
    %v511 = vmul.f32 %v506, %v510
    %vm512 = vweird.f32 %v429
    %vm513 = vweird.f32 %v506
    %vm514 = vmor %vm512, %vm513
    %v515 = vsel %vm514, %v506, %v511
    %v516 = vrsqrt.pop %v430
    %v517 = vmul.f32 %v516, %v430
    %v518 = vmul.f32 %v517, %v516
    %v519 = vmul.f32 0.5, %v518
    %v520 = vsub.f32 1.5, %v519
    %v521 = vmul.f32 %v516, %v520
    %vm522 = vweird.f32 %v430
    %vm523 = vweird.f32 %v516
    %vm524 = vmor %vm522, %vm523
    %v525 = vsel %vm524, %v516, %v521
    %v526 = vrsqrt.pop %v431
    %v527 = vmul.f32 %v526, %v431
    %v528 = vmul.f32 %v527, %v526
    %v529 = vmul.f32 0.5, %v528
    %v530 = vsub.f32 1.5, %v529
    %v531 = vmul.f32 %v526, %v530
    %vm532 = vweird.f32 %v431
    %vm533 = vweird.f32 %v526
    %vm534 = vmor %vm532, %vm533
    %v535 = vsel %vm534, %v526, %v531
    %v536 = vrsqrt.pop %v432
    %v537 = vmul.f32 %v536, %v432
    %v538 = vmul.f32 %v537, %v536
    %v539 = vmul.f32 0.5, %v538
    %v540 = vsub.f32 1.5, %v539
    %v541 = vmul.f32 %v536, %v540
    %vm542 = vweird.f32 %v432
    %vm543 = vweird.f32 %v536
    %vm544 = vmor %vm542, %vm543
    %v545 = vsel %vm544, %v536, %v541
    %v546 = vrsqrt.pop %v433
    %v547 = vmul.f32 %v546, %v433
    %v548 = vmul.f32 %v547, %v546
    %v549 = vmul.f32 0.5, %v548
    %v550 = vsub.f32 1.5, %v549
    %v551 = vmul.f32 %v546, %v550
    %vm552 = vweird.f32 %v433
    %vm553 = vweird.f32 %v546
    %vm554 = vmor %vm552, %vm553
    %v555 = vsel %vm554, %v546, %v551
    %v556 = vrsqrt.pop %v434
    %v557 = vmul.f32 %v556, %v434
    %v558 = vmul.f32 %v557, %v556
    %v559 = vmul.f32 0.5, %v558
    %v560 = vsub.f32 1.5, %v559
    %v561 = vmul.f32 %v556, %v560
    %vm562 = vweird.f32 %v434
    %vm563 = vweird.f32 %v556
    %vm564 = vmor %vm562, %vm563
    %v565 = vsel %vm564, %v556, %v561
    %v566 = vrsqrt.pop %v435
    %v567 = vmul.f32 %v566, %v435
    %v568 = vmul.f32 %v567, %v566
    %v569 = vmul.f32 0.5, %v568
    %v570 = vsub.f32 1.5, %v569
    %v571 = vmul.f32 %v566, %v570
    %vm572 = vweird.f32 %v435
    %vm573 = vweird.f32 %v566
    %vm574 = vmor %vm572, %vm573
    %v575 = vsel %vm574, %v566, %v571
    %v576 = vrsqrt.pop %v436
    %v577 = vmul.f32 %v576, %v436
    %v578 = vmul.f32 %v577, %v576
    %v579 = vmul.f32 0.5, %v578
    %v580 = vsub.f32 1.5, %v579
    %v581 = vmul.f32 %v576, %v580
    %vm582 = vweird.f32 %v436
    %vm583 = vweird.f32 %v576
    %vm584 = vmor %vm582, %vm583
    %v585 = vsel %vm584, %v576, %v581
    %v586 = vrsqrt.pop %v437
    %v587 = vmul.f32 %v586, %v437
    %v588 = vmul.f32 %v587, %v586
    %v589 = vmul.f32 0.5, %v588
    %v590 = vsub.f32 1.5, %v589
    %v591 = vmul.f32 %v586, %v590
    %vm592 = vweird.f32 %v437
    %vm593 = vweird.f32 %v586
    %vm594 = vmor %vm592, %vm593
    %v595 = vsel %vm594, %v586, %v591
    %v596 = vrsqrt.pop %v438
    %v597 = vmul.f32 %v596, %v438
    %v598 = vmul.f32 %v597, %v596
    %v599 = vmul.f32 0.5, %v598
    %v600 = vsub.f32 1.5, %v599
    %v601 = vmul.f32 %v596, %v600
    %vm602 = vweird.f32 %v438
    %vm603 = vweird.f32 %v596
    %vm604 = vmor %vm602, %vm603
    %v605 = vsel %vm604, %v596, %v601
    %v606 = vrsqrt.pop %v439
    %v607 = vmul.f32 %v606, %v439
    %v608 = vmul.f32 %v607, %v606
    %v609 = vmul.f32 0.5, %v608
    %v610 = vsub.f32 1.5, %v609
    %v611 = vmul.f32 %v606, %v610
    %vm612 = vweird.f32 %v439
    %vm613 = vweird.f32 %v606
    %vm614 = vmor %vm612, %vm613
    %v615 = vsel %vm614, %v606, %v611
    %v616 = vrsqrt.pop %v440
    %v617 = vmul.f32 %v616, %v440
    %v618 = vmul.f32 %v617, %v616
    %v619 = vmul.f32 0.5, %v618
    %v620 = vsub.f32 1.5, %v619
    %v621 = vmul.f32 %v616, %v620
    %vm622 = vweird.f32 %v440
    %vm623 = vweird.f32 %v616
    %vm624 = vmor %vm622, %vm623
    %v625 = vsel %vm624, %v616, %v621
    %v626 = vrsqrt.pop %v441
    %v627 = vmul.f32 %v626, %v441
    %v628 = vmul.f32 %v627, %v626
    %v629 = vmul.f32 0.5, %v628
    %v630 = vsub.f32 1.5, %v629
    %v631 = vmul.f32 %v626, %v630
    %vm632 = vweird.f32 %v441
    %vm633 = vweird.f32 %v626
    %vm634 = vmor %vm632, %vm633
    %v635 = vsel %vm634, %v626, %v631
    %v636 = vrsqrt.pop %v442
    %v637 = vmul.f32 %v636, %v442
    %v638 = vmul.f32 %v637, %v636
    %v639 = vmul.f32 0.5, %v638
    %v640 = vsub.f32 1.5, %v639
    %v641 = vmul.f32 %v636, %v640
    %vm642 = vweird.f32 %v442
    %vm643 = vweird.f32 %v636
    %vm644 = vmor %vm642, %vm643
    %v645 = vsel %vm644, %v636, %v641
    %v646 = vrsqrt.pop %v443
    %v647 = vmul.f32 %v646, %v443
    %v648 = vmul.f32 %v647, %v646
    %v649 = vmul.f32 0.5, %v648
    %v650 = vsub.f32 1.5, %v649
    %v651 = vmul.f32 %v646, %v650
    %vm652 = vweird.f32 %v443
    %vm653 = vweird.f32 %v646
    %vm654 = vmor %vm652, %vm653
    %v655 = vsel %vm654, %v646, %v651
    %v656 = vrsqrt.pop %v444
    %v657 = vmul.f32 %v656, %v444
    %v658 = vmul.f32 %v657, %v656
    %v659 = vmul.f32 0.5, %v658
    %v660 = vsub.f32 1.5, %v659
    %v661 = vmul.f32 %v656, %v660
    %vm662 = vweird.f32 %v444
    %vm663 = vweird.f32 %v656
    %vm664 = vmor %vm662, %vm663
    %v665 = vsel %vm664, %v656, %v661
    %v666 = vrsqrt.pop %v445
    %v667 = vmul.f32 %v666, %v445
    %v668 = vmul.f32 %v667, %v666
    %v669 = vmul.f32 0.5, %v668
    %v670 = vsub.f32 1.5, %v669
    %v671 = vmul.f32 %v666, %v670
    %vm672 = vweird.f32 %v445
    %vm673 = vweird.f32 %v666
    %vm674 = vmor %vm672, %vm673
    %v675 = vsel %vm674, %v666, %v671
    %v676 = vrsqrt.pop %v446
    %v677 = vmul.f32 %v676, %v446
    %v678 = vmul.f32 %v677, %v676
    %v679 = vmul.f32 0.5, %v678
    %v680 = vsub.f32 1.5, %v679
    %v681 = vmul.f32 %v676, %v680
    %vm682 = vweird.f32 %v446
    %vm683 = vweird.f32 %v676
    %vm684 = vmor %vm682, %vm683
    %v685 = vsel %vm684, %v676, %v681
    %v686 = vrsqrt.pop %v447
    %v687 = vmul.f32 %v686, %v447
    %v688 = vmul.f32 %v687, %v686
    %v689 = vmul.f32 0.5, %v688
    %v690 = vsub.f32 1.5, %v689
    %v691 = vmul.f32 %v686, %v690
    %vm692 = vweird.f32 %v447
    %vm693 = vweird.f32 %v686
    %vm694 = vmor %vm692, %vm693
    %v695 = vsel %vm694, %v686, %v691
    %v696 = vrsqrt.pop %v448
    %v697 = vmul.f32 %v696, %v448
    %v698 = vmul.f32 %v697, %v696
    %v699 = vmul.f32 0.5, %v698
    %v700 = vsub.f32 1.5, %v699
    %v701 = vmul.f32 %v696, %v700
    %vm702 = vweird.f32 %v448
    %vm703 = vweird.f32 %v696
    %vm704 = vmor %vm702, %vm703
    %v705 = vsel %vm704, %v696, %v701
    %v706 = vrsqrt.pop %v449
    %v707 = vmul.f32 %v706, %v449
    %v708 = vmul.f32 %v707, %v706
    %v709 = vmul.f32 0.5, %v708
    %v710 = vsub.f32 1.5, %v709
    %v711 = vmul.f32 %v706, %v710
    %vm712 = vweird.f32 %v449
    %vm713 = vweird.f32 %v706
    %vm714 = vmor %vm712, %vm713
    %v715 = vsel %vm714, %v706, %v711
    %v716 = vrsqrt.pop %v450
    %v717 = vmul.f32 %v716, %v450
    %v718 = vmul.f32 %v717, %v716
    %v719 = vmul.f32 0.5, %v718
    %v720 = vsub.f32 1.5, %v719
    %v721 = vmul.f32 %v716, %v720
    %vm722 = vweird.f32 %v450
    %vm723 = vweird.f32 %v716
    %vm724 = vmor %vm722, %vm723
    %v725 = vsel %vm724, %v716, %v721
    %v726 = vrsqrt.pop %v451
    %v727 = vmul.f32 %v726, %v451
    %v728 = vmul.f32 %v727, %v726
    %v729 = vmul.f32 0.5, %v728
    %v730 = vsub.f32 1.5, %v729
    %v731 = vmul.f32 %v726, %v730
    %vm732 = vweird.f32 %v451
    %vm733 = vweird.f32 %v726
    %vm734 = vmor %vm732, %vm733
    %v735 = vsel %vm734, %v726, %v731
    %v736 = vrsqrt.pop %v452
    %v737 = vmul.f32 %v736, %v452
    %v738 = vmul.f32 %v737, %v736
    %v739 = vmul.f32 0.5, %v738
    %v740 = vsub.f32 1.5, %v739
    %v741 = vmul.f32 %v736, %v740
    %vm742 = vweird.f32 %v452
    %vm743 = vweird.f32 %v736
    %vm744 = vmor %vm742, %vm743
    %v745 = vsel %vm744, %v736, %v741
    %v746 = vrsqrt.pop %v453
    %v747 = vmul.f32 %v746, %v453
    %v748 = vmul.f32 %v747, %v746
    %v749 = vmul.f32 0.5, %v748
    %v750 = vsub.f32 1.5, %v749
    %v751 = vmul.f32 %v746, %v750
    %vm752 = vweird.f32 %v453
    %vm753 = vweird.f32 %v746
    %vm754 = vmor %vm752, %vm753
    %v755 = vsel %vm754, %v746, %v751
    %v756 = vrsqrt.pop %v454
    %v757 = vmul.f32 %v756, %v454
    %v758 = vmul.f32 %v757, %v756
    %v759 = vmul.f32 0.5, %v758
    %v760 = vsub.f32 1.5, %v759
    %v761 = vmul.f32 %v756, %v760
    %vm762 = vweird.f32 %v454
    %vm763 = vweird.f32 %v756
    %vm764 = vmor %vm762, %vm763
    %v765 = vsel %vm764, %v756, %v761
    %v766 = vrsqrt.pop %v455
    %v767 = vmul.f32 %v766, %v455
    %v768 = vmul.f32 %v767, %v766
    %v769 = vmul.f32 0.5, %v768
    %v770 = vsub.f32 1.5, %v769
    %v771 = vmul.f32 %v766, %v770
    %vm772 = vweird.f32 %v455
    %vm773 = vweird.f32 %v766
    %vm774 = vmor %vm772, %vm773
    %v775 = vsel %vm774, %v766, %v771
    %v776 = vmul.f32 %v264, %v465
    %v777 = vmul.f32 %v265, %v475
    %v778 = vmul.f32 %v266, %v485
    %v779 = vmul.f32 %v267, %v495
    %v780 = vmul.f32 %v268, %v505
    %v781 = vmul.f32 %v269, %v515
    %v782 = vmul.f32 %v270, %v525
    %v783 = vmul.f32 %v271, %v535
    %v784 = vmul.f32 %v272, %v545
    %v785 = vmul.f32 %v273, %v555
    %v786 = vmul.f32 %v274, %v565
    %v787 = vmul.f32 %v275, %v575
    %v788 = vmul.f32 %v276, %v585
    %v789 = vmul.f32 %v277, %v595
    %v790 = vmul.f32 %v278, %v605
    %v791 = vmul.f32 %v279, %v615
    %v792 = vmul.f32 %v280, %v625
    %v793 = vmul.f32 %v281, %v635
    %v794 = vmul.f32 %v282, %v645
    %v795 = vmul.f32 %v283, %v655
    %v796 = vmul.f32 %v284, %v665
    %v797 = vmul.f32 %v285, %v675
    %v798 = vmul.f32 %v286, %v685
    %v799 = vmul.f32 %v287, %v695
    %v800 = vmul.f32 %v288, %v705
    %v801 = vmul.f32 %v289, %v715
    %v802 = vmul.f32 %v290, %v725
    %v803 = vmul.f32 %v291, %v735
    %v804 = vmul.f32 %v292, %v745
    %v805 = vmul.f32 %v293, %v755
    %v806 = vmul.f32 %v294, %v765
    %v807 = vmul.f32 %v295, %v775
    %v809 = vperm.slane %v159, 0
    %v811 = vmul.f32 %v776, %v809
    %v812 = vmul.f32 %v777, %v809
    %v813 = vmul.f32 %v778, %v809
    %v814 = vmul.f32 %v779, %v809
    %v815 = vmul.f32 %v780, %v809
    %v816 = vmul.f32 %v781, %v809
    %v817 = vmul.f32 %v782, %v809
    %v818 = vmul.f32 %v783, %v809
    %v819 = vmul.f32 %v784, %v809
    %v820 = vmul.f32 %v785, %v809
    %v821 = vmul.f32 %v786, %v809
    %v822 = vmul.f32 %v787, %v809
    %v823 = vmul.f32 %v788, %v809
    %v824 = vmul.f32 %v789, %v809
    %v825 = vmul.f32 %v790, %v809
    %v826 = vmul.f32 %v791, %v809
    %v827 = vmul.f32 %v792, %v809
    %v828 = vmul.f32 %v793, %v809
    %v829 = vmul.f32 %v794, %v809
    %v830 = vmul.f32 %v795, %v809
    %v831 = vmul.f32 %v796, %v809
    %v832 = vmul.f32 %v797, %v809
    %v833 = vmul.f32 %v798, %v809
    %v834 = vmul.f32 %v799, %v809
    %v835 = vmul.f32 %v800, %v809
    %v836 = vmul.f32 %v801, %v809
    %v837 = vmul.f32 %v802, %v809
    %v838 = vmul.f32 %v803, %v809
    %v839 = vmul.f32 %v804, %v809
    %v840 = vmul.f32 %v805, %v809
    %v841 = vmul.f32 %v806, %v809
    %v842 = vmul.f32 %v807, %v809
    %v844 = vperm.slane %v160, 0
    %v846 = vadd.f32 %v811, %v844
    %v847 = vadd.f32 %v812, %v844
    %v848 = vadd.f32 %v813, %v844
    %v849 = vadd.f32 %v814, %v844
    %v850 = vadd.f32 %v815, %v844
    %v851 = vadd.f32 %v816, %v844
    %v852 = vadd.f32 %v817, %v844
    %v853 = vadd.f32 %v818, %v844
    %v854 = vadd.f32 %v819, %v844
    %v855 = vadd.f32 %v820, %v844
    %v856 = vadd.f32 %v821, %v844
    %v857 = vadd.f32 %v822, %v844
    %v858 = vadd.f32 %v823, %v844
    %v859 = vadd.f32 %v824, %v844
    %v860 = vadd.f32 %v825, %v844
    %v861 = vadd.f32 %v826, %v844
    %v862 = vadd.f32 %v827, %v844
    %v863 = vadd.f32 %v828, %v844
    %v864 = vadd.f32 %v829, %v844
    %v865 = vadd.f32 %v830, %v844
    %v866 = vadd.f32 %v831, %v844
    %v867 = vadd.f32 %v832, %v844
    %v868 = vadd.f32 %v833, %v844
    %v869 = vadd.f32 %v834, %v844
    %v870 = vadd.f32 %v835, %v844
    %v871 = vadd.f32 %v836, %v844
    %v872 = vadd.f32 %v837, %v844
    %v873 = vadd.f32 %v838, %v844
    %v874 = vadd.f32 %v839, %v844
    %v875 = vadd.f32 %v840, %v844
    %v876 = vadd.f32 %v841, %v844
    %v877 = vadd.f32 %v842, %v844
    %v878 = vpack.c.bf16 %v847, %v846
    %v879 = vpack.c.bf16 %v849, %v848
    %v880 = vpack.c.bf16 %v851, %v850
    %v881 = vpack.c.bf16 %v853, %v852
    %v882 = vpack.c.bf16 %v855, %v854
    %v883 = vpack.c.bf16 %v857, %v856
    %v884 = vpack.c.bf16 %v859, %v858
    %v885 = vpack.c.bf16 %v861, %v860
    %v886 = vpack.c.bf16 %v863, %v862
    %v887 = vpack.c.bf16 %v865, %v864
    %v888 = vpack.c.bf16 %v867, %v866
    %v889 = vpack.c.bf16 %v869, %v868
    %v890 = vpack.c.bf16 %v871, %v870
    %v891 = vpack.c.bf16 %v873, %v872
    %v892 = vpack.c.bf16 %v875, %v874
    %v893 = vpack.c.bf16 %v877, %v876
    %v894 = vld [vmem:[#allocation5] sm:$0xff]
    %v895 = vld [vmem:[#allocation5 + $0x8] sm:$0xff]
    %v896 = vld [vmem:[#allocation5 + $0x10] sm:$0xff]
    %v897 = vld [vmem:[#allocation5 + $0x18] sm:$0xff]
    %v898 = vld [vmem:[#allocation5 + $0x20] sm:$0xff]
    %v899 = vld [vmem:[#allocation5 + $0x28] sm:$0xff]
    %v900 = vld [vmem:[#allocation5 + $0x30] sm:$0xff]
    %v901 = vld [vmem:[#allocation5 + $0x38] sm:$0xff]
    %v902 = vld [vmem:[#allocation5 + $0x40] sm:$0xff]
    %v903 = vld [vmem:[#allocation5 + $0x48] sm:$0xff]
    %v904 = vld [vmem:[#allocation5 + $0x50] sm:$0xff]
    %v905 = vld [vmem:[#allocation5 + $0x58] sm:$0xff]
    %v906 = vld [vmem:[#allocation5 + $0x60] sm:$0xff]
    %v907 = vld [vmem:[#allocation5 + $0x68] sm:$0xff]
    %v908 = vld [vmem:[#allocation5 + $0x70] sm:$0xff]
    %v909 = vld [vmem:[#allocation5 + $0x78] sm:$0xff]
    %v910 = vld [vmem:[#allocation5 + $0x80] sm:$0xff]
    %v911 = vld [vmem:[#allocation5 + $0x88] sm:$0xff]
    %v912 = vld [vmem:[#allocation5 + $0x90] sm:$0xff]
    %v913 = vld [vmem:[#allocation5 + $0x98] sm:$0xff]
    %v914 = vld [vmem:[#allocation5 + $0xa0] sm:$0xff]
    %v915 = vld [vmem:[#allocation5 + $0xa8] sm:$0xff]
    %v916 = vld [vmem:[#allocation5 + $0xb0] sm:$0xff]
    %v917 = vld [vmem:[#allocation5 + $0xb8] sm:$0xff]
    %v918 = vld [vmem:[#allocation5 + $0xc0] sm:$0xff]
    %v919 = vld [vmem:[#allocation5 + $0xc8] sm:$0xff]
    %v920 = vld [vmem:[#allocation5 + $0xd0] sm:$0xff]
    %v921 = vld [vmem:[#allocation5 + $0xd8] sm:$0xff]
    %v922 = vld [vmem:[#allocation5 + $0xe0] sm:$0xff]
    %v923 = vld [vmem:[#allocation5 + $0xe8] sm:$0xff]
    %v924 = vld [vmem:[#allocation5 + $0xf0] sm:$0xff]
    %v925 = vld [vmem:[#allocation5 + $0xf8] sm:$0xff]
    %v926 = vld [vmem:[#allocation5 + $0x100] sm:$0xff]
    %v927 = vld [vmem:[#allocation5 + $0x108] sm:$0xff]
    %v928 = vld [vmem:[#allocation5 + $0x110] sm:$0xff]
    %v929 = vld [vmem:[#allocation5 + $0x118] sm:$0xff]
    %v930 = vld [vmem:[#allocation5 + $0x120] sm:$0xff]
    %v931 = vld [vmem:[#allocation5 + $0x128] sm:$0xff]
    %v932 = vld [vmem:[#allocation5 + $0x130] sm:$0xff]
    %v933 = vld [vmem:[#allocation5 + $0x138] sm:$0xff]
    %v934 = vld [vmem:[#allocation5 + $0x140] sm:$0xff]
    %v935 = vld [vmem:[#allocation5 + $0x148] sm:$0xff]
    %v936 = vld [vmem:[#allocation5 + $0x150] sm:$0xff]
    %v937 = vld [vmem:[#allocation5 + $0x158] sm:$0xff]
    %v938 = vld [vmem:[#allocation5 + $0x160] sm:$0xff]
    %v939 = vld [vmem:[#allocation5 + $0x168] sm:$0xff]
    %v940 = vld [vmem:[#allocation5 + $0x170] sm:$0xff]
    %v941 = vld [vmem:[#allocation5 + $0x178] sm:$0xff]
    %v990 = vunpack.c.l.b16 %v894
    %v991 = vunpack.c.h.b16 %v894
    %v992 = vunpack.c.l.b16 %v895
    %v993 = vunpack.c.h.b16 %v895
    %v994 = vunpack.c.l.b16 %v896
    %v995 = vunpack.c.h.b16 %v896
    %v996 = vunpack.c.l.b16 %v897
    %v997 = vunpack.c.h.b16 %v897
    %v998 = vunpack.c.l.b16 %v898
    %v999 = vunpack.c.h.b16 %v898
    %v1000 = vunpack.c.l.b16 %v899
    %v1001 = vunpack.c.h.b16 %v899
    %v1002 = vunpack.c.l.b16 %v900
    %v1003 = vunpack.c.h.b16 %v900
    %v1004 = vunpack.c.l.b16 %v901
    %v1005 = vunpack.c.h.b16 %v901
    %v1006 = vunpack.c.l.b16 %v902
    %v1007 = vunpack.c.h.b16 %v902
    %v1008 = vunpack.c.l.b16 %v903
    %v1009 = vunpack.c.h.b16 %v903
    %v1010 = vunpack.c.l.b16 %v904
    %v1011 = vunpack.c.h.b16 %v904
    %v1012 = vunpack.c.l.b16 %v905
    %v1013 = vunpack.c.h.b16 %v905
    %v1014 = vunpack.c.l.b16 %v906
    %v1015 = vunpack.c.h.b16 %v906
    %v1016 = vunpack.c.l.b16 %v907
    %v1017 = vunpack.c.h.b16 %v907
    %v1018 = vunpack.c.l.b16 %v908
    %v1019 = vunpack.c.h.b16 %v908
    %v1020 = vunpack.c.l.b16 %v909
    %v1021 = vunpack.c.h.b16 %v909
    %v1022 = vunpack.c.l.b16 %v910
    %v1023 = vunpack.c.h.b16 %v910
    %v1024 = vunpack.c.l.b16 %v911
    %v1025 = vunpack.c.h.b16 %v911
    %v1026 = vunpack.c.l.b16 %v912
    %v1027 = vunpack.c.h.b16 %v912
    %v1028 = vunpack.c.l.b16 %v913
    %v1029 = vunpack.c.h.b16 %v913
    %v1030 = vunpack.c.l.b16 %v914
    %v1031 = vunpack.c.h.b16 %v914
    %v1032 = vunpack.c.l.b16 %v915
    %v1033 = vunpack.c.h.b16 %v915
    %v1034 = vunpack.c.l.b16 %v916
    %v1035 = vunpack.c.h.b16 %v916
    %v1036 = vunpack.c.l.b16 %v917
    %v1037 = vunpack.c.h.b16 %v917
    %v1038 = vunpack.c.l.b16 %v918
    %v1039 = vunpack.c.h.b16 %v918
    %v1040 = vunpack.c.l.b16 %v919
    %v1041 = vunpack.c.h.b16 %v919
    %v1042 = vunpack.c.l.b16 %v920
    %v1043 = vunpack.c.h.b16 %v920
    %v1044 = vunpack.c.l.b16 %v921
    %v1045 = vunpack.c.h.b16 %v921
    %v1046 = vunpack.c.l.b16 %v922
    %v1047 = vunpack.c.h.b16 %v922
    %v1048 = vunpack.c.l.b16 %v923
    %v1049 = vunpack.c.h.b16 %v923
    %v1050 = vunpack.c.l.b16 %v924
    %v1051 = vunpack.c.h.b16 %v924
    %v1052 = vunpack.c.l.b16 %v925
    %v1053 = vunpack.c.h.b16 %v925
    %v1054 = vunpack.c.l.b16 %v926
    %v1055 = vunpack.c.h.b16 %v926
    %v1056 = vunpack.c.l.b16 %v927
    %v1057 = vunpack.c.h.b16 %v927
    %v1058 = vunpack.c.l.b16 %v928
    %v1059 = vunpack.c.h.b16 %v928
    %v1060 = vunpack.c.l.b16 %v929
    %v1061 = vunpack.c.h.b16 %v929
    %v1062 = vunpack.c.l.b16 %v930
    %v1063 = vunpack.c.h.b16 %v930
    %v1064 = vunpack.c.l.b16 %v931
    %v1065 = vunpack.c.h.b16 %v931
    %v1066 = vunpack.c.l.b16 %v932
    %v1067 = vunpack.c.h.b16 %v932
    %v1068 = vunpack.c.l.b16 %v933
    %v1069 = vunpack.c.h.b16 %v933
    %v1070 = vunpack.c.l.b16 %v934
    %v1071 = vunpack.c.h.b16 %v934
    %v1072 = vunpack.c.l.b16 %v935
    %v1073 = vunpack.c.h.b16 %v935
    %v1074 = vunpack.c.l.b16 %v936
    %v1075 = vunpack.c.h.b16 %v936
    %v1076 = vunpack.c.l.b16 %v937
    %v1077 = vunpack.c.h.b16 %v937
    %v1078 = vunpack.c.l.b16 %v938
    %v1079 = vunpack.c.h.b16 %v938
    %v1080 = vunpack.c.l.b16 %v939
    %v1081 = vunpack.c.h.b16 %v939
    %v1082 = vunpack.c.l.b16 %v940
    %v1083 = vunpack.c.h.b16 %v940
    %v1084 = vunpack.c.l.b16 %v941
    %v1085 = vunpack.c.h.b16 %v941
    %v1086 = vpack.c.b16 %v996, %v990
    %v1087 = vpack.c.b16 %v997, %v991
    %v1088 = vpack.c.b16 %v998, %v992
    %v1089 = vpack.c.b16 %v999, %v993
    %v1090 = vpack.c.b16 %v1000, %v994
    %v1091 = vpack.c.b16 %v1001, %v995
    %v1092 = vpack.c.b16 %v1008, %v1002
    %v1093 = vpack.c.b16 %v1009, %v1003
    %v1094 = vpack.c.b16 %v1010, %v1004
    %v1095 = vpack.c.b16 %v1011, %v1005
    %v1096 = vpack.c.b16 %v1012, %v1006
    %v1097 = vpack.c.b16 %v1013, %v1007
    %v1098 = vpack.c.b16 %v1020, %v1014
    %v1099 = vpack.c.b16 %v1021, %v1015
    %v1100 = vpack.c.b16 %v1022, %v1016
    %v1101 = vpack.c.b16 %v1023, %v1017
    %v1102 = vpack.c.b16 %v1024, %v1018
    %v1103 = vpack.c.b16 %v1025, %v1019
    %v1104 = vpack.c.b16 %v1032, %v1026
    %v1105 = vpack.c.b16 %v1033, %v1027
    %v1106 = vpack.c.b16 %v1034, %v1028
    %v1107 = vpack.c.b16 %v1035, %v1029
    %v1108 = vpack.c.b16 %v1036, %v1030
    %v1109 = vpack.c.b16 %v1037, %v1031
    %v1110 = vpack.c.b16 %v1044, %v1038
    %v1111 = vpack.c.b16 %v1045, %v1039
    %v1112 = vpack.c.b16 %v1046, %v1040
    %v1113 = vpack.c.b16 %v1047, %v1041
    %v1114 = vpack.c.b16 %v1048, %v1042
    %v1115 = vpack.c.b16 %v1049, %v1043
    %v1116 = vpack.c.b16 %v1056, %v1050
    %v1117 = vpack.c.b16 %v1057, %v1051
    %v1118 = vpack.c.b16 %v1058, %v1052
    %v1119 = vpack.c.b16 %v1059, %v1053
    %v1120 = vpack.c.b16 %v1060, %v1054
    %v1121 = vpack.c.b16 %v1061, %v1055
    %v1122 = vpack.c.b16 %v1068, %v1062
    %v1123 = vpack.c.b16 %v1069, %v1063
    %v1124 = vpack.c.b16 %v1070, %v1064
    %v1125 = vpack.c.b16 %v1071, %v1065
    %v1126 = vpack.c.b16 %v1072, %v1066
    %v1127 = vpack.c.b16 %v1073, %v1067
    %v1128 = vpack.c.b16 %v1080, %v1074
    %v1129 = vpack.c.b16 %v1081, %v1075
    %v1130 = vpack.c.b16 %v1082, %v1076
    %v1131 = vpack.c.b16 %v1083, %v1077
    %v1132 = vpack.c.b16 %v1084, %v1078
    %v1133 = vpack.c.b16 %v1085, %v1079
    %1182 = vmatpush.bf16.msra.mxu0 %v1128
    %1183 = vmatpush.bf16.msra.mxu0 %v1122
    %1184 = vmatpush.bf16.msra.mxu0 %v1116
    %1185 = vmatpush.bf16.msra.mxu0 %v1110
    %1186 = vmatpush.bf16.msra.mxu0 %v1104
    %1187 = vmatpush.bf16.msra.mxu0 %v1098
    %1188 = vmatpush.bf16.msra.mxu0 %v1092
    %1189 = vmatpush.bf16.msra.mxu0 %v1086
    %1190 = vmatmul.bf16.gmra.mxu0 %v878
    %v1191 = vpop.f32.mrf.mxu0
    %v1192 = vadd.f32 0.0, %v1191
    %v1193 = vpop.f32.mrf.mxu0
    %v1194 = vadd.f32 0.0, %v1193
    %1195 = vmatmul.bf16.gmra.mxu0 %v879
    %v1196 = vpop.f32.mrf.mxu0
    %v1197 = vadd.f32 0.0, %v1196
    %v1198 = vpop.f32.mrf.mxu0
    %v1199 = vadd.f32 0.0, %v1198
    %1200 = vmatmul.bf16.gmra.mxu0 %v880
    %v1201 = vpop.f32.mrf.mxu0
    %v1202 = vadd.f32 0.0, %v1201
    %v1203 = vpop.f32.mrf.mxu0
    %v1204 = vadd.f32 0.0, %v1203
    %1205 = vmatmul.bf16.gmra.mxu0 %v881
    %v1206 = vpop.f32.mrf.mxu0
    %v1207 = vadd.f32 0.0, %v1206
    %v1208 = vpop.f32.mrf.mxu0
    %v1209 = vadd.f32 0.0, %v1208
    %1210 = vmatmul.bf16.gmra.mxu0 %v882
    %v1211 = vpop.f32.mrf.mxu0
    %v1212 = vadd.f32 0.0, %v1211
    %v1213 = vpop.f32.mrf.mxu0
    %v1214 = vadd.f32 0.0, %v1213
    %1215 = vmatmul.bf16.gmra.mxu0 %v883
    %v1216 = vpop.f32.mrf.mxu0
    %v1217 = vadd.f32 0.0, %v1216
    %v1218 = vpop.f32.mrf.mxu0
    %v1219 = vadd.f32 0.0, %v1218
    %1220 = vmatmul.bf16.gmra.mxu0 %v884
    %v1221 = vpop.f32.mrf.mxu0
    %v1222 = vadd.f32 0.0, %v1221
    %v1223 = vpop.f32.mrf.mxu0
    %v1224 = vadd.f32 0.0, %v1223
    %1225 = vmatmul.bf16.gmra.mxu0 %v885
    %v1226 = vpop.f32.mrf.mxu0
    %v1227 = vadd.f32 0.0, %v1226
    %v1228 = vpop.f32.mrf.mxu0
    %v1229 = vadd.f32 0.0, %v1228
    %1230 = vmatmul.bf16.gmra.mxu0 %v886
    %v1231 = vpop.f32.mrf.mxu0
    %v1232 = vadd.f32 0.0, %v1231
    %v1233 = vpop.f32.mrf.mxu0
    %v1234 = vadd.f32 0.0, %v1233
    %1235 = vmatmul.bf16.gmra.mxu0 %v887
    %v1236 = vpop.f32.mrf.mxu0
    %v1237 = vadd.f32 0.0, %v1236
    %v1238 = vpop.f32.mrf.mxu0
    %v1239 = vadd.f32 0.0, %v1238
    %1240 = vmatmul.bf16.gmra.mxu0 %v888
    %v1241 = vpop.f32.mrf.mxu0
    %v1242 = vadd.f32 0.0, %v1241
    %v1243 = vpop.f32.mrf.mxu0
    %v1244 = vadd.f32 0.0, %v1243
    %1245 = vmatmul.bf16.gmra.mxu0 %v889
    %v1246 = vpop.f32.mrf.mxu0
    %v1247 = vadd.f32 0.0, %v1246
    %v1248 = vpop.f32.mrf.mxu0
    %v1249 = vadd.f32 0.0, %v1248
    %1250 = vmatmul.bf16.gmra.mxu0 %v890
    %v1251 = vpop.f32.mrf.mxu0
    %v1252 = vadd.f32 0.0, %v1251
    %v1253 = vpop.f32.mrf.mxu0
    %v1254 = vadd.f32 0.0, %v1253
    %1255 = vmatmul.bf16.gmra.mxu0 %v891
    %v1256 = vpop.f32.mrf.mxu0
    %v1257 = vadd.f32 0.0, %v1256
    %v1258 = vpop.f32.mrf.mxu0
    %v1259 = vadd.f32 0.0, %v1258
    %1260 = vmatmul.bf16.gmra.mxu0 %v892
    %v1261 = vpop.f32.mrf.mxu0
    %v1262 = vadd.f32 0.0, %v1261
    %v1263 = vpop.f32.mrf.mxu0
    %v1264 = vadd.f32 0.0, %v1263
    %1265 = vmatmul.bf16.gmra.mxu0 %v893
    %v1266 = vpop.f32.mrf.mxu0
    %v1267 = vadd.f32 0.0, %v1266
    %v1268 = vpop.f32.mrf.mxu0
    %v1269 = vadd.f32 0.0, %v1268
    %1270 = vdwg.mxu0
    %1271 = vmatpush.bf16.msra.mxu0 %v1129
    %1272 = vmatpush.bf16.msra.mxu0 %v1123
    %1273 = vmatpush.bf16.msra.mxu0 %v1117
    %1274 = vmatpush.bf16.msra.mxu0 %v1111
    %1275 = vmatpush.bf16.msra.mxu0 %v1105
    %1276 = vmatpush.bf16.msra.mxu0 %v1099
    %1277 = vmatpush.bf16.msra.mxu0 %v1093
    %1278 = vmatpush.bf16.msra.mxu0 %v1087
    %1279 = vmatmul.bf16.gmra.mxu0 %v878
    %v1280 = vpop.f32.mrf.mxu0
    %v1281 = vadd.f32 0.0, %v1280
    %v1282 = vpop.f32.mrf.mxu0
    %v1283 = vadd.f32 0.0, %v1282
    %1284 = vmatmul.bf16.gmra.mxu0 %v879
    %v1285 = vpop.f32.mrf.mxu0
    %v1286 = vadd.f32 0.0, %v1285
    %v1287 = vpop.f32.mrf.mxu0
    %v1288 = vadd.f32 0.0, %v1287
    %1289 = vmatmul.bf16.gmra.mxu0 %v880
    %v1290 = vpop.f32.mrf.mxu0
    %v1291 = vadd.f32 0.0, %v1290
    %v1292 = vpop.f32.mrf.mxu0
    %v1293 = vadd.f32 0.0, %v1292
    %1294 = vmatmul.bf16.gmra.mxu0 %v881
    %v1295 = vpop.f32.mrf.mxu0
    %v1296 = vadd.f32 0.0, %v1295
    %v1297 = vpop.f32.mrf.mxu0
    %v1298 = vadd.f32 0.0, %v1297
    %1299 = vmatmul.bf16.gmra.mxu0 %v882
    %v1300 = vpop.f32.mrf.mxu0
    %v1301 = vadd.f32 0.0, %v1300
    %v1302 = vpop.f32.mrf.mxu0
    %v1303 = vadd.f32 0.0, %v1302
    %1304 = vmatmul.bf16.gmra.mxu0 %v883
    %v1305 = vpop.f32.mrf.mxu0
    %v1306 = vadd.f32 0.0, %v1305
    %v1307 = vpop.f32.mrf.mxu0
    %v1308 = vadd.f32 0.0, %v1307
    %1309 = vmatmul.bf16.gmra.mxu0 %v884
    %v1310 = vpop.f32.mrf.mxu0
    %v1311 = vadd.f32 0.0, %v1310
    %v1312 = vpop.f32.mrf.mxu0
    %v1313 = vadd.f32 0.0, %v1312
    %1314 = vmatmul.bf16.gmra.mxu0 %v885
    %v1315 = vpop.f32.mrf.mxu0
    %v1316 = vadd.f32 0.0, %v1315
    %v1317 = vpop.f32.mrf.mxu0
    %v1318 = vadd.f32 0.0, %v1317
    %1319 = vmatmul.bf16.gmra.mxu0 %v886
    %v1320 = vpop.f32.mrf.mxu0
    %v1321 = vadd.f32 0.0, %v1320
    %v1322 = vpop.f32.mrf.mxu0
    %v1323 = vadd.f32 0.0, %v1322
    %1324 = vmatmul.bf16.gmra.mxu0 %v887
    %v1325 = vpop.f32.mrf.mxu0
    %v1326 = vadd.f32 0.0, %v1325
    %v1327 = vpop.f32.mrf.mxu0
    %v1328 = vadd.f32 0.0, %v1327
    %1329 = vmatmul.bf16.gmra.mxu0 %v888
    %v1330 = vpop.f32.mrf.mxu0
    %v1331 = vadd.f32 0.0, %v1330
    %v1332 = vpop.f32.mrf.mxu0
    %v1333 = vadd.f32 0.0, %v1332
    %1334 = vmatmul.bf16.gmra.mxu0 %v889
    %v1335 = vpop.f32.mrf.mxu0
    %v1336 = vadd.f32 0.0, %v1335
    %v1337 = vpop.f32.mrf.mxu0
    %v1338 = vadd.f32 0.0, %v1337
    %1339 = vmatmul.bf16.gmra.mxu0 %v890
    %v1340 = vpop.f32.mrf.mxu0
    %v1341 = vadd.f32 0.0, %v1340
    %v1342 = vpop.f32.mrf.mxu0
    %v1343 = vadd.f32 0.0, %v1342
    %1344 = vmatmul.bf16.gmra.mxu0 %v891
    %v1345 = vpop.f32.mrf.mxu0
    %v1346 = vadd.f32 0.0, %v1345
    %v1347 = vpop.f32.mrf.mxu0
    %v1348 = vadd.f32 0.0, %v1347
    %1349 = vmatmul.bf16.gmra.mxu0 %v892
    %v1350 = vpop.f32.mrf.mxu0
    %v1351 = vadd.f32 0.0, %v1350
    %v1352 = vpop.f32.mrf.mxu0
    %v1353 = vadd.f32 0.0, %v1352
    %1354 = vmatmul.bf16.gmra.mxu0 %v893
    %v1355 = vpop.f32.mrf.mxu0
    %v1356 = vadd.f32 0.0, %v1355
    %v1357 = vpop.f32.mrf.mxu0
    %v1358 = vadd.f32 0.0, %v1357
    %1359 = vdwg.mxu0
    %1360 = vmatpush.bf16.msra.mxu0 %v1130
    %1361 = vmatpush.bf16.msra.mxu0 %v1124
    %1362 = vmatpush.bf16.msra.mxu0 %v1118
    %1363 = vmatpush.bf16.msra.mxu0 %v1112
    %1364 = vmatpush.bf16.msra.mxu0 %v1106
    %1365 = vmatpush.bf16.msra.mxu0 %v1100
    %1366 = vmatpush.bf16.msra.mxu0 %v1094
    %1367 = vmatpush.bf16.msra.mxu0 %v1088
    %1368 = vmatmul.bf16.gmra.mxu0 %v878
    %v1369 = vpop.f32.mrf.mxu0
    %v1370 = vadd.f32 0.0, %v1369
    %v1371 = vpop.f32.mrf.mxu0
    %v1372 = vadd.f32 0.0, %v1371
    %1373 = vmatmul.bf16.gmra.mxu0 %v879
    %v1374 = vpop.f32.mrf.mxu0
    %v1375 = vadd.f32 0.0, %v1374
    %v1376 = vpop.f32.mrf.mxu0
    %v1377 = vadd.f32 0.0, %v1376
    %1378 = vmatmul.bf16.gmra.mxu0 %v880
    %v1379 = vpop.f32.mrf.mxu0
    %v1380 = vadd.f32 0.0, %v1379
    %v1381 = vpop.f32.mrf.mxu0
    %v1382 = vadd.f32 0.0, %v1381
    %1383 = vmatmul.bf16.gmra.mxu0 %v881
    %v1384 = vpop.f32.mrf.mxu0
    %v1385 = vadd.f32 0.0, %v1384
    %v1386 = vpop.f32.mrf.mxu0
    %v1387 = vadd.f32 0.0, %v1386
    %1388 = vmatmul.bf16.gmra.mxu0 %v882
    %v1389 = vpop.f32.mrf.mxu0
    %v1390 = vadd.f32 0.0, %v1389
    %v1391 = vpop.f32.mrf.mxu0
    %v1392 = vadd.f32 0.0, %v1391
    %1393 = vmatmul.bf16.gmra.mxu0 %v883
    %v1394 = vpop.f32.mrf.mxu0
    %v1395 = vadd.f32 0.0, %v1394
    %v1396 = vpop.f32.mrf.mxu0
    %v1397 = vadd.f32 0.0, %v1396
    %1398 = vmatmul.bf16.gmra.mxu0 %v884
    %v1399 = vpop.f32.mrf.mxu0
    %v1400 = vadd.f32 0.0, %v1399
    %v1401 = vpop.f32.mrf.mxu0
    %v1402 = vadd.f32 0.0, %v1401
    %1403 = vmatmul.bf16.gmra.mxu0 %v885
    %v1404 = vpop.f32.mrf.mxu0
    %v1405 = vadd.f32 0.0, %v1404
    %v1406 = vpop.f32.mrf.mxu0
    %v1407 = vadd.f32 0.0, %v1406
    %1408 = vmatmul.bf16.gmra.mxu0 %v886
    %v1409 = vpop.f32.mrf.mxu0
    %v1410 = vadd.f32 0.0, %v1409
    %v1411 = vpop.f32.mrf.mxu0
    %v1412 = vadd.f32 0.0, %v1411
    %1413 = vmatmul.bf16.gmra.mxu0 %v887
    %v1414 = vpop.f32.mrf.mxu0
    %v1415 = vadd.f32 0.0, %v1414
    %v1416 = vpop.f32.mrf.mxu0
    %v1417 = vadd.f32 0.0, %v1416
    %1418 = vmatmul.bf16.gmra.mxu0 %v888
    %v1419 = vpop.f32.mrf.mxu0
    %v1420 = vadd.f32 0.0, %v1419
    %v1421 = vpop.f32.mrf.mxu0
    %v1422 = vadd.f32 0.0, %v1421
    %1423 = vmatmul.bf16.gmra.mxu0 %v889
    %v1424 = vpop.f32.mrf.mxu0
    %v1425 = vadd.f32 0.0, %v1424
    %v1426 = vpop.f32.mrf.mxu0
    %v1427 = vadd.f32 0.0, %v1426
    %1428 = vmatmul.bf16.gmra.mxu0 %v890
    %v1429 = vpop.f32.mrf.mxu0
    %v1430 = vadd.f32 0.0, %v1429
    %v1431 = vpop.f32.mrf.mxu0
    %v1432 = vadd.f32 0.0, %v1431
    %1433 = vmatmul.bf16.gmra.mxu0 %v891
    %v1434 = vpop.f32.mrf.mxu0
    %v1435 = vadd.f32 0.0, %v1434
    %v1436 = vpop.f32.mrf.mxu0
    %v1437 = vadd.f32 0.0, %v1436
    %1438 = vmatmul.bf16.gmra.mxu0 %v892
    %v1439 = vpop.f32.mrf.mxu0
    %v1440 = vadd.f32 0.0, %v1439
    %v1441 = vpop.f32.mrf.mxu0
    %v1442 = vadd.f32 0.0, %v1441
    %1443 = vmatmul.bf16.gmra.mxu0 %v893
    %v1444 = vpop.f32.mrf.mxu0
    %v1445 = vadd.f32 0.0, %v1444
    %v1446 = vpop.f32.mrf.mxu0
    %v1447 = vadd.f32 0.0, %v1446
    %1448 = vdwg.mxu0
    %1449 = vmatpush.bf16.msra.mxu0 %v1131
    %1450 = vmatpush.bf16.msra.mxu0 %v1125
    %1451 = vmatpush.bf16.msra.mxu0 %v1119
    %1452 = vmatpush.bf16.msra.mxu0 %v1113
    %1453 = vmatpush.bf16.msra.mxu0 %v1107
    %1454 = vmatpush.bf16.msra.mxu0 %v1101
    %1455 = vmatpush.bf16.msra.mxu0 %v1095
    %1456 = vmatpush.bf16.msra.mxu0 %v1089
    %1457 = vmatmul.bf16.gmra.mxu0 %v878
    %v1458 = vpop.f32.mrf.mxu0
    %v1459 = vadd.f32 0.0, %v1458
    %v1460 = vpop.f32.mrf.mxu0
    %v1461 = vadd.f32 0.0, %v1460
    %1462 = vmatmul.bf16.gmra.mxu0 %v879
    %v1463 = vpop.f32.mrf.mxu0
    %v1464 = vadd.f32 0.0, %v1463
    %v1465 = vpop.f32.mrf.mxu0
    %v1466 = vadd.f32 0.0, %v1465
    %1467 = vmatmul.bf16.gmra.mxu0 %v880
    %v1468 = vpop.f32.mrf.mxu0
    %v1469 = vadd.f32 0.0, %v1468
    %v1470 = vpop.f32.mrf.mxu0
    %v1471 = vadd.f32 0.0, %v1470
    %1472 = vmatmul.bf16.gmra.mxu0 %v881
    %v1473 = vpop.f32.mrf.mxu0
    %v1474 = vadd.f32 0.0, %v1473
    %v1475 = vpop.f32.mrf.mxu0
    %v1476 = vadd.f32 0.0, %v1475
    %1477 = vmatmul.bf16.gmra.mxu0 %v882
    %v1478 = vpop.f32.mrf.mxu0
    %v1479 = vadd.f32 0.0, %v1478
    %v1480 = vpop.f32.mrf.mxu0
    %v1481 = vadd.f32 0.0, %v1480
    %1482 = vmatmul.bf16.gmra.mxu0 %v883
    %v1483 = vpop.f32.mrf.mxu0
    %v1484 = vadd.f32 0.0, %v1483
    %v1485 = vpop.f32.mrf.mxu0
    %v1486 = vadd.f32 0.0, %v1485
    %1487 = vmatmul.bf16.gmra.mxu0 %v884
    %v1488 = vpop.f32.mrf.mxu0
    %v1489 = vadd.f32 0.0, %v1488
    %v1490 = vpop.f32.mrf.mxu0
    %v1491 = vadd.f32 0.0, %v1490
    %1492 = vmatmul.bf16.gmra.mxu0 %v885
    %v1493 = vpop.f32.mrf.mxu0
    %v1494 = vadd.f32 0.0, %v1493
    %v1495 = vpop.f32.mrf.mxu0
    %v1496 = vadd.f32 0.0, %v1495
    %1497 = vmatmul.bf16.gmra.mxu0 %v886
    %v1498 = vpop.f32.mrf.mxu0
    %v1499 = vadd.f32 0.0, %v1498
    %v1500 = vpop.f32.mrf.mxu0
    %v1501 = vadd.f32 0.0, %v1500
    %1502 = vmatmul.bf16.gmra.mxu0 %v887
    %v1503 = vpop.f32.mrf.mxu0
    %v1504 = vadd.f32 0.0, %v1503
    %v1505 = vpop.f32.mrf.mxu0
    %v1506 = vadd.f32 0.0, %v1505
    %1507 = vmatmul.bf16.gmra.mxu0 %v888
    %v1508 = vpop.f32.mrf.mxu0
    %v1509 = vadd.f32 0.0, %v1508
    %v1510 = vpop.f32.mrf.mxu0
    %v1511 = vadd.f32 0.0, %v1510
    %1512 = vmatmul.bf16.gmra.mxu0 %v889
    %v1513 = vpop.f32.mrf.mxu0
    %v1514 = vadd.f32 0.0, %v1513
    %v1515 = vpop.f32.mrf.mxu0
    %v1516 = vadd.f32 0.0, %v1515
    %1517 = vmatmul.bf16.gmra.mxu0 %v890
    %v1518 = vpop.f32.mrf.mxu0
    %v1519 = vadd.f32 0.0, %v1518
    %v1520 = vpop.f32.mrf.mxu0
    %v1521 = vadd.f32 0.0, %v1520
    %1522 = vmatmul.bf16.gmra.mxu0 %v891
    %v1523 = vpop.f32.mrf.mxu0
    %v1524 = vadd.f32 0.0, %v1523
    %v1525 = vpop.f32.mrf.mxu0
    %v1526 = vadd.f32 0.0, %v1525
    %1527 = vmatmul.bf16.gmra.mxu0 %v892
    %v1528 = vpop.f32.mrf.mxu0
    %v1529 = vadd.f32 0.0, %v1528
    %v1530 = vpop.f32.mrf.mxu0
    %v1531 = vadd.f32 0.0, %v1530
    %1532 = vmatmul.bf16.gmra.mxu0 %v893
    %v1533 = vpop.f32.mrf.mxu0
    %v1534 = vadd.f32 0.0, %v1533
    %v1535 = vpop.f32.mrf.mxu0
    %v1536 = vadd.f32 0.0, %v1535
    %1537 = vdwg.mxu0
    %1538 = vmatpush.bf16.msra.mxu0 %v1132
    %1539 = vmatpush.bf16.msra.mxu0 %v1126
    %1540 = vmatpush.bf16.msra.mxu0 %v1120
    %1541 = vmatpush.bf16.msra.mxu0 %v1114
    %1542 = vmatpush.bf16.msra.mxu0 %v1108
    %1543 = vmatpush.bf16.msra.mxu0 %v1102
    %1544 = vmatpush.bf16.msra.mxu0 %v1096
    %1545 = vmatpush.bf16.msra.mxu0 %v1090
    %1546 = vmatmul.bf16.gmra.mxu0 %v878
    %v1547 = vpop.f32.mrf.mxu0
    %v1548 = vadd.f32 0.0, %v1547
    %v1549 = vpop.f32.mrf.mxu0
    %v1550 = vadd.f32 0.0, %v1549
    %1551 = vmatmul.bf16.gmra.mxu0 %v879
    %v1552 = vpop.f32.mrf.mxu0
    %v1553 = vadd.f32 0.0, %v1552
    %v1554 = vpop.f32.mrf.mxu0
    %v1555 = vadd.f32 0.0, %v1554
    %1556 = vmatmul.bf16.gmra.mxu0 %v880
    %v1557 = vpop.f32.mrf.mxu0
    %v1558 = vadd.f32 0.0, %v1557
    %v1559 = vpop.f32.mrf.mxu0
    %v1560 = vadd.f32 0.0, %v1559
    %1561 = vmatmul.bf16.gmra.mxu0 %v881
    %v1562 = vpop.f32.mrf.mxu0
    %v1563 = vadd.f32 0.0, %v1562
    %v1564 = vpop.f32.mrf.mxu0
    %v1565 = vadd.f32 0.0, %v1564
    %1566 = vmatmul.bf16.gmra.mxu0 %v882
    %v1567 = vpop.f32.mrf.mxu0
    %v1568 = vadd.f32 0.0, %v1567
    %v1569 = vpop.f32.mrf.mxu0
    %v1570 = vadd.f32 0.0, %v1569
    %1571 = vmatmul.bf16.gmra.mxu0 %v883
    %v1572 = vpop.f32.mrf.mxu0
    %v1573 = vadd.f32 0.0, %v1572
    %v1574 = vpop.f32.mrf.mxu0
    %v1575 = vadd.f32 0.0, %v1574
    %1576 = vmatmul.bf16.gmra.mxu0 %v884
    %v1577 = vpop.f32.mrf.mxu0
    %v1578 = vadd.f32 0.0, %v1577
    %v1579 = vpop.f32.mrf.mxu0
    %v1580 = vadd.f32 0.0, %v1579
    %1581 = vmatmul.bf16.gmra.mxu0 %v885
    %v1582 = vpop.f32.mrf.mxu0
    %v1583 = vadd.f32 0.0, %v1582
    %v1584 = vpop.f32.mrf.mxu0
    %v1585 = vadd.f32 0.0, %v1584
    %1586 = vmatmul.bf16.gmra.mxu0 %v886
    %v1587 = vpop.f32.mrf.mxu0
    %v1588 = vadd.f32 0.0, %v1587
    %v1589 = vpop.f32.mrf.mxu0
    %v1590 = vadd.f32 0.0, %v1589
    %1591 = vmatmul.bf16.gmra.mxu0 %v887
    %v1592 = vpop.f32.mrf.mxu0
    %v1593 = vadd.f32 0.0, %v1592
    %v1594 = vpop.f32.mrf.mxu0
    %v1595 = vadd.f32 0.0, %v1594
    %1596 = vmatmul.bf16.gmra.mxu0 %v888
    %v1597 = vpop.f32.mrf.mxu0
    %v1598 = vadd.f32 0.0, %v1597
    %v1599 = vpop.f32.mrf.mxu0
    %v1600 = vadd.f32 0.0, %v1599
    %1601 = vmatmul.bf16.gmra.mxu0 %v889
    %v1602 = vpop.f32.mrf.mxu0
    %v1603 = vadd.f32 0.0, %v1602
    %v1604 = vpop.f32.mrf.mxu0
    %v1605 = vadd.f32 0.0, %v1604
    %1606 = vmatmul.bf16.gmra.mxu0 %v890
    %v1607 = vpop.f32.mrf.mxu0
    %v1608 = vadd.f32 0.0, %v1607
    %v1609 = vpop.f32.mrf.mxu0
    %v1610 = vadd.f32 0.0, %v1609
    %1611 = vmatmul.bf16.gmra.mxu0 %v891
    %v1612 = vpop.f32.mrf.mxu0
    %v1613 = vadd.f32 0.0, %v1612
    %v1614 = vpop.f32.mrf.mxu0
    %v1615 = vadd.f32 0.0, %v1614
    %1616 = vmatmul.bf16.gmra.mxu0 %v892
    %v1617 = vpop.f32.mrf.mxu0
    %v1618 = vadd.f32 0.0, %v1617
    %v1619 = vpop.f32.mrf.mxu0
    %v1620 = vadd.f32 0.0, %v1619
    %1621 = vmatmul.bf16.gmra.mxu0 %v893
    %v1622 = vpop.f32.mrf.mxu0
    %v1623 = vadd.f32 0.0, %v1622
    %v1624 = vpop.f32.mrf.mxu0
    %v1625 = vadd.f32 0.0, %v1624
    %1626 = vdwg.mxu0
    %1627 = vmatpush.bf16.msra.mxu0 %v1133
    %1628 = vmatpush.bf16.msra.mxu0 %v1127
    %1629 = vmatpush.bf16.msra.mxu0 %v1121
    %1630 = vmatpush.bf16.msra.mxu0 %v1115
    %1631 = vmatpush.bf16.msra.mxu0 %v1109
    %1632 = vmatpush.bf16.msra.mxu0 %v1103
    %1633 = vmatpush.bf16.msra.mxu0 %v1097
    %1634 = vmatpush.bf16.msra.mxu0 %v1091
    %1635 = vmatmul.bf16.gmra.mxu0 %v878
    %v1636 = vpop.f32.mrf.mxu0
    %v1637 = vadd.f32 0.0, %v1636
    %v1638 = vpop.f32.mrf.mxu0
    %v1639 = vadd.f32 0.0, %v1638
    %1640 = vmatmul.bf16.gmra.mxu0 %v879
    %v1641 = vpop.f32.mrf.mxu0
    %v1642 = vadd.f32 0.0, %v1641
    %v1643 = vpop.f32.mrf.mxu0
    %v1644 = vadd.f32 0.0, %v1643
    %1645 = vmatmul.bf16.gmra.mxu0 %v880
    %v1646 = vpop.f32.mrf.mxu0
    %v1647 = vadd.f32 0.0, %v1646
    %v1648 = vpop.f32.mrf.mxu0
    %v1649 = vadd.f32 0.0, %v1648
    %1650 = vmatmul.bf16.gmra.mxu0 %v881
    %v1651 = vpop.f32.mrf.mxu0
    %v1652 = vadd.f32 0.0, %v1651
    %v1653 = vpop.f32.mrf.mxu0
    %v1654 = vadd.f32 0.0, %v1653
    %1655 = vmatmul.bf16.gmra.mxu0 %v882
    %v1656 = vpop.f32.mrf.mxu0
    %v1657 = vadd.f32 0.0, %v1656
    %v1658 = vpop.f32.mrf.mxu0
    %v1659 = vadd.f32 0.0, %v1658
    %1660 = vmatmul.bf16.gmra.mxu0 %v883
    %v1661 = vpop.f32.mrf.mxu0
    %v1662 = vadd.f32 0.0, %v1661
    %v1663 = vpop.f32.mrf.mxu0
    %v1664 = vadd.f32 0.0, %v1663
    %1665 = vmatmul.bf16.gmra.mxu0 %v884
    %v1666 = vpop.f32.mrf.mxu0
    %v1667 = vadd.f32 0.0, %v1666
    %v1668 = vpop.f32.mrf.mxu0
    %v1669 = vadd.f32 0.0, %v1668
    %1670 = vmatmul.bf16.gmra.mxu0 %v885
    %v1671 = vpop.f32.mrf.mxu0
    %v1672 = vadd.f32 0.0, %v1671
    %v1673 = vpop.f32.mrf.mxu0
    %v1674 = vadd.f32 0.0, %v1673
    %1675 = vmatmul.bf16.gmra.mxu0 %v886
    %v1676 = vpop.f32.mrf.mxu0
    %v1677 = vadd.f32 0.0, %v1676
    %v1678 = vpop.f32.mrf.mxu0
    %v1679 = vadd.f32 0.0, %v1678
    %1680 = vmatmul.bf16.gmra.mxu0 %v887
    %v1681 = vpop.f32.mrf.mxu0
    %v1682 = vadd.f32 0.0, %v1681
    %v1683 = vpop.f32.mrf.mxu0
    %v1684 = vadd.f32 0.0, %v1683
    %1685 = vmatmul.bf16.gmra.mxu0 %v888
    %v1686 = vpop.f32.mrf.mxu0
    %v1687 = vadd.f32 0.0, %v1686
    %v1688 = vpop.f32.mrf.mxu0
    %v1689 = vadd.f32 0.0, %v1688
    %1690 = vmatmul.bf16.gmra.mxu0 %v889
    %v1691 = vpop.f32.mrf.mxu0
    %v1692 = vadd.f32 0.0, %v1691
    %v1693 = vpop.f32.mrf.mxu0
    %v1694 = vadd.f32 0.0, %v1693
    %1695 = vmatmul.bf16.gmra.mxu0 %v890
    %v1696 = vpop.f32.mrf.mxu0
    %v1697 = vadd.f32 0.0, %v1696
    %v1698 = vpop.f32.mrf.mxu0
    %v1699 = vadd.f32 0.0, %v1698
    %1700 = vmatmul.bf16.gmra.mxu0 %v891
    %v1701 = vpop.f32.mrf.mxu0
    %v1702 = vadd.f32 0.0, %v1701
    %v1703 = vpop.f32.mrf.mxu0
    %v1704 = vadd.f32 0.0, %v1703
    %1705 = vmatmul.bf16.gmra.mxu0 %v892
    %v1706 = vpop.f32.mrf.mxu0
    %v1707 = vadd.f32 0.0, %v1706
    %v1708 = vpop.f32.mrf.mxu0
    %v1709 = vadd.f32 0.0, %v1708
    %1710 = vmatmul.bf16.gmra.mxu0 %v893
    %v1711 = vpop.f32.mrf.mxu0
    %v1712 = vadd.f32 0.0, %v1711
    %v1713 = vpop.f32.mrf.mxu0
    %v1714 = vadd.f32 0.0, %v1713
    %1715 = vdwg.mxu0
    %v1716 = vlaneseq
    %v1717 = vshrl.u32 %v1716, 7
    %v1718 = vadd.s32 %v1717, 8
    %v1719 = vadd.s32 %v1717, 16
    %v1720 = vadd.s32 %v1717, 24
    %v1721 = vlaneseq
    %v1722 = vand.u32 %v1721, 127
    %vm1723 = vcmp.ge.s32.totalorder %v1717, %v1722
    %vm1724 = vcmp.ge.s32.totalorder %v1718, %v1722
    %vm1725 = vcmp.ge.s32.totalorder %v1719, %v1722
    %vm1726 = vcmp.ge.s32.totalorder %v1720, %v1722
    %v1727 = vpack.c.bf16 %v1192, %v1192
    %v1728 = vpack.c.bf16 %v1194, %v1194
    %v1729 = vpack.c.bf16 %v1197, %v1197
    %v1730 = vpack.c.bf16 %v1199, %v1199
    %v1731 = vpack.c.bf16 %v1202, %v1202
    %v1732 = vpack.c.bf16 %v1204, %v1204
    %v1733 = vpack.c.bf16 %v1207, %v1207
    %v1734 = vpack.c.bf16 %v1209, %v1209
    %v1735 = vpack.c.bf16 %v1212, %v1212
    %v1736 = vpack.c.bf16 %v1214, %v1214
    %v1737 = vpack.c.bf16 %v1217, %v1217
    %v1738 = vpack.c.bf16 %v1219, %v1219
    %v1739 = vpack.c.bf16 %v1222, %v1222
    %v1740 = vpack.c.bf16 %v1224, %v1224
    %v1741 = vpack.c.bf16 %v1227, %v1227
    %v1742 = vpack.c.bf16 %v1229, %v1229
    %v1743 = vpack.c.bf16 %v1232, %v1232
    %v1744 = vpack.c.bf16 %v1234, %v1234
    %v1745 = vpack.c.bf16 %v1237, %v1237
    %v1746 = vpack.c.bf16 %v1239, %v1239
    %v1747 = vpack.c.bf16 %v1242, %v1242
    %v1748 = vpack.c.bf16 %v1244, %v1244
    %v1749 = vpack.c.bf16 %v1247, %v1247
    %v1750 = vpack.c.bf16 %v1249, %v1249
    %v1751 = vpack.c.bf16 %v1252, %v1252
    %v1752 = vpack.c.bf16 %v1254, %v1254
    %v1753 = vpack.c.bf16 %v1257, %v1257
    %v1754 = vpack.c.bf16 %v1259, %v1259
    %v1755 = vpack.c.bf16 %v1262, %v1262
    %v1756 = vpack.c.bf16 %v1264, %v1264
    %v1757 = vpack.c.bf16 %v1267, %v1267
    %v1758 = vpack.c.bf16 %v1269, %v1269
    %v1759 = vpack.c.bf16 %v1370, %v1370
    %v1760 = vpack.c.bf16 %v1372, %v1372
    %v1761 = vpack.c.bf16 %v1375, %v1375
    %v1762 = vpack.c.bf16 %v1377, %v1377
    %v1763 = vpack.c.bf16 %v1380, %v1380
    %v1764 = vpack.c.bf16 %v1382, %v1382
    %v1765 = vpack.c.bf16 %v1385, %v1385
    %v1766 = vpack.c.bf16 %v1387, %v1387
    %v1767 = vpack.c.bf16 %v1390, %v1390
    %v1768 = vpack.c.bf16 %v1392, %v1392
    %v1769 = vpack.c.bf16 %v1395, %v1395
    %v1770 = vpack.c.bf16 %v1397, %v1397
    %v1771 = vpack.c.bf16 %v1400, %v1400
    %v1772 = vpack.c.bf16 %v1402, %v1402
    %v1773 = vpack.c.bf16 %v1405, %v1405
    %v1774 = vpack.c.bf16 %v1407, %v1407
    %v1775 = vpack.c.bf16 %v1410, %v1410
    %v1776 = vpack.c.bf16 %v1412, %v1412
    %v1777 = vpack.c.bf16 %v1415, %v1415
    %v1778 = vpack.c.bf16 %v1417, %v1417
    %v1779 = vpack.c.bf16 %v1420, %v1420
    %v1780 = vpack.c.bf16 %v1422, %v1422
    %v1781 = vpack.c.bf16 %v1425, %v1425
    %v1782 = vpack.c.bf16 %v1427, %v1427
    %v1783 = vpack.c.bf16 %v1430, %v1430
    %v1784 = vpack.c.bf16 %v1432, %v1432
    %v1785 = vpack.c.bf16 %v1435, %v1435
    %v1786 = vpack.c.bf16 %v1437, %v1437
    %v1787 = vpack.c.bf16 %v1440, %v1440
    %v1788 = vpack.c.bf16 %v1442, %v1442
    %v1789 = vpack.c.bf16 %v1445, %v1445
    %v1790 = vpack.c.bf16 %v1447, %v1447
    %v1791 = vpack.c.bf16 %v1548, %v1548
    %v1792 = vpack.c.bf16 %v1550, %v1550
    %v1793 = vpack.c.bf16 %v1553, %v1553
    %v1794 = vpack.c.bf16 %v1555, %v1555
    %v1795 = vpack.c.bf16 %v1558, %v1558
    %v1796 = vpack.c.bf16 %v1560, %v1560
    %v1797 = vpack.c.bf16 %v1563, %v1563
    %v1798 = vpack.c.bf16 %v1565, %v1565
    %v1799 = vpack.c.bf16 %v1568, %v1568
    %v1800 = vpack.c.bf16 %v1570, %v1570
    %v1801 = vpack.c.bf16 %v1573, %v1573
    %v1802 = vpack.c.bf16 %v1575, %v1575
    %v1803 = vpack.c.bf16 %v1578, %v1578
    %v1804 = vpack.c.bf16 %v1580, %v1580
    %v1805 = vpack.c.bf16 %v1583, %v1583
    %v1806 = vpack.c.bf16 %v1585, %v1585
    %v1807 = vpack.c.bf16 %v1588, %v1588
    %v1808 = vpack.c.bf16 %v1590, %v1590
    %v1809 = vpack.c.bf16 %v1593, %v1593
    %v1810 = vpack.c.bf16 %v1595, %v1595
    %v1811 = vpack.c.bf16 %v1598, %v1598
    %v1812 = vpack.c.bf16 %v1600, %v1600
    %v1813 = vpack.c.bf16 %v1603, %v1603
    %v1814 = vpack.c.bf16 %v1605, %v1605
    %v1815 = vpack.c.bf16 %v1608, %v1608
    %v1816 = vpack.c.bf16 %v1610, %v1610
    %v1817 = vpack.c.bf16 %v1613, %v1613
    %v1818 = vpack.c.bf16 %v1615, %v1615
    %v1819 = vpack.c.bf16 %v1618, %v1618
    %v1820 = vpack.c.bf16 %v1620, %v1620
    %v1821 = vpack.c.bf16 %v1623, %v1623
    %v1822 = vpack.c.bf16 %v1625, %v1625
    %v1827 = vunpack.c.l.b16 %v1727
    %v1828 = vunpack.c.l.b16 %v1728
    %v1829 = vunpack.c.l.b16 %v1729
    %v1830 = vunpack.c.l.b16 %v1730
    %v1831 = vpack.c.b16 %v1828, %v1827
    %v1832 = vpack.c.b16 %v1830, %v1829
    %v1839 = vunpack.c.l.b16 %v1759
    %v1840 = vunpack.c.l.b16 %v1760
    %v1841 = vunpack.c.l.b16 %v1761
    %v1842 = vunpack.c.l.b16 %v1762
    %v1843 = vpack.c.b16 %v1840, %v1839
    %v1844 = vpack.c.b16 %v1842, %v1841
    %1847 = vmatpush.bf16.xpose.msra.mxu0 0
    %1848 = vmatpush.bf16.xpose.msra.mxu0 0
    %1849 = vmatpush.bf16.xpose.msra.mxu0 0
    %1850 = vmatpush.bf16.xpose.msra.mxu0 0
    %1851 = vmatpush.bf16.xpose.msra.mxu0 0
    %1852 = vmatpush.bf16.xpose.msra.mxu0 0
    %1853 = vmatpush.bf16.xpose.msra.mxu0 %v1844
    %1854 = vmatpush.bf16.xpose.msra.mxu0 %v1843
    %1855 = vmatmul.bf16.gmra.mxu0 %v1831
    %v1856 = vpop.f32.mrf.mxu0
    %v1857 = vadd.f32 0.0, %v1856
    %v1858 = vpop.f32.mrf.mxu0
    %v1859 = vadd.f32 0.0, %v1858
    %1860 = vmatmul.bf16.gmra.mxu0 %v1832
    %v1861 = vpop.f32.mrf.mxu0
    %v1862 = vadd.f32 0.0, %v1861
    %v1863 = vpop.f32.mrf.mxu0
    %v1864 = vadd.f32 0.0, %v1863
    %1865 = vdwg.mxu0
    %v1870 = vunpack.c.l.b16 %v1731
    %v1871 = vunpack.c.l.b16 %v1732
    %v1872 = vunpack.c.l.b16 %v1733
    %v1873 = vunpack.c.l.b16 %v1734
    %v1874 = vpack.c.b16 %v1871, %v1870
    %v1875 = vpack.c.b16 %v1873, %v1872
    %v1882 = vunpack.c.l.b16 %v1763
    %v1883 = vunpack.c.l.b16 %v1764
    %v1884 = vunpack.c.l.b16 %v1765
    %v1885 = vunpack.c.l.b16 %v1766
    %v1886 = vpack.c.b16 %v1883, %v1882
    %v1887 = vpack.c.b16 %v1885, %v1884
    %1890 = vmatpush.bf16.xpose.msra.mxu0 0
    %1891 = vmatpush.bf16.xpose.msra.mxu0 0
    %1892 = vmatpush.bf16.xpose.msra.mxu0 0
    %1893 = vmatpush.bf16.xpose.msra.mxu0 0
    %1894 = vmatpush.bf16.xpose.msra.mxu0 0
    %1895 = vmatpush.bf16.xpose.msra.mxu0 0
    %1896 = vmatpush.bf16.xpose.msra.mxu0 %v1887
    %1897 = vmatpush.bf16.xpose.msra.mxu0 %v1886
    %1898 = vmatmul.bf16.gmra.mxu0 %v1874
    %v1899 = vpop.f32.mrf.mxu0
    %v1900 = vadd.f32 0.0, %v1899
    %v1901 = vpop.f32.mrf.mxu0
    %v1902 = vadd.f32 0.0, %v1901
    %1903 = vmatmul.bf16.gmra.mxu0 %v1875
    %v1904 = vpop.f32.mrf.mxu0
    %v1905 = vadd.f32 0.0, %v1904
    %v1906 = vpop.f32.mrf.mxu0
    %v1907 = vadd.f32 0.0, %v1906
    %1908 = vdwg.mxu0
    %v1913 = vunpack.c.l.b16 %v1735
    %v1914 = vunpack.c.l.b16 %v1736
    %v1915 = vunpack.c.l.b16 %v1737
    %v1916 = vunpack.c.l.b16 %v1738
    %v1917 = vpack.c.b16 %v1914, %v1913
    %v1918 = vpack.c.b16 %v1916, %v1915
    %v1925 = vunpack.c.l.b16 %v1767
    %v1926 = vunpack.c.l.b16 %v1768
    %v1927 = vunpack.c.l.b16 %v1769
    %v1928 = vunpack.c.l.b16 %v1770
    %v1929 = vpack.c.b16 %v1926, %v1925
    %v1930 = vpack.c.b16 %v1928, %v1927
    %1933 = vmatpush.bf16.xpose.msra.mxu0 0
    %1934 = vmatpush.bf16.xpose.msra.mxu0 0
    %1935 = vmatpush.bf16.xpose.msra.mxu0 0
    %1936 = vmatpush.bf16.xpose.msra.mxu0 0
    %1937 = vmatpush.bf16.xpose.msra.mxu0 0
    %1938 = vmatpush.bf16.xpose.msra.mxu0 0
    %1939 = vmatpush.bf16.xpose.msra.mxu0 %v1930
    %1940 = vmatpush.bf16.xpose.msra.mxu0 %v1929
    %1941 = vmatmul.bf16.gmra.mxu0 %v1917
    %v1942 = vpop.f32.mrf.mxu0
    %v1943 = vadd.f32 0.0, %v1942
    %v1944 = vpop.f32.mrf.mxu0
    %v1945 = vadd.f32 0.0, %v1944
    %1946 = vmatmul.bf16.gmra.mxu0 %v1918
    %v1947 = vpop.f32.mrf.mxu0
    %v1948 = vadd.f32 0.0, %v1947
    %v1949 = vpop.f32.mrf.mxu0
    %v1950 = vadd.f32 0.0, %v1949
    %1951 = vdwg.mxu0
    %v1956 = vunpack.c.l.b16 %v1739
    %v1957 = vunpack.c.l.b16 %v1740
    %v1958 = vunpack.c.l.b16 %v1741
    %v1959 = vunpack.c.l.b16 %v1742
    %v1960 = vpack.c.b16 %v1957, %v1956
    %v1961 = vpack.c.b16 %v1959, %v1958
    %v1968 = vunpack.c.l.b16 %v1771
    %v1969 = vunpack.c.l.b16 %v1772
    %v1970 = vunpack.c.l.b16 %v1773
    %v1971 = vunpack.c.l.b16 %v1774
    %v1972 = vpack.c.b16 %v1969, %v1968
    %v1973 = vpack.c.b16 %v1971, %v1970
    %1976 = vmatpush.bf16.xpose.msra.mxu0 0
    %1977 = vmatpush.bf16.xpose.msra.mxu0 0
    %1978 = vmatpush.bf16.xpose.msra.mxu0 0
    %1979 = vmatpush.bf16.xpose.msra.mxu0 0
    %1980 = vmatpush.bf16.xpose.msra.mxu0 0
    %1981 = vmatpush.bf16.xpose.msra.mxu0 0
    %1982 = vmatpush.bf16.xpose.msra.mxu0 %v1973
    %1983 = vmatpush.bf16.xpose.msra.mxu0 %v1972
    %1984 = vmatmul.bf16.gmra.mxu0 %v1960
    %v1985 = vpop.f32.mrf.mxu0
    %v1986 = vadd.f32 0.0, %v1985
    %v1987 = vpop.f32.mrf.mxu0
    %v1988 = vadd.f32 0.0, %v1987
    %1989 = vmatmul.bf16.gmra.mxu0 %v1961
    %v1990 = vpop.f32.mrf.mxu0
    %v1991 = vadd.f32 0.0, %v1990
    %v1992 = vpop.f32.mrf.mxu0
    %v1993 = vadd.f32 0.0, %v1992
    %1994 = vdwg.mxu0
    %v1999 = vunpack.c.l.b16 %v1743
    %v2000 = vunpack.c.l.b16 %v1744
    %v2001 = vunpack.c.l.b16 %v1745
    %v2002 = vunpack.c.l.b16 %v1746
    %v2003 = vpack.c.b16 %v2000, %v1999
    %v2004 = vpack.c.b16 %v2002, %v2001
    %v2011 = vunpack.c.l.b16 %v1775
    %v2012 = vunpack.c.l.b16 %v1776
    %v2013 = vunpack.c.l.b16 %v1777
    %v2014 = vunpack.c.l.b16 %v1778
    %v2015 = vpack.c.b16 %v2012, %v2011
    %v2016 = vpack.c.b16 %v2014, %v2013
    %2019 = vmatpush.bf16.xpose.msra.mxu0 0
    %2020 = vmatpush.bf16.xpose.msra.mxu0 0
    %2021 = vmatpush.bf16.xpose.msra.mxu0 0
    %2022 = vmatpush.bf16.xpose.msra.mxu0 0
    %2023 = vmatpush.bf16.xpose.msra.mxu0 0
    %2024 = vmatpush.bf16.xpose.msra.mxu0 0
    %2025 = vmatpush.bf16.xpose.msra.mxu0 %v2016
    %2026 = vmatpush.bf16.xpose.msra.mxu0 %v2015
    %2027 = vmatmul.bf16.gmra.mxu0 %v2003
    %v2028 = vpop.f32.mrf.mxu0
    %v2029 = vadd.f32 0.0, %v2028
    %v2030 = vpop.f32.mrf.mxu0
    %v2031 = vadd.f32 0.0, %v2030
    %2032 = vmatmul.bf16.gmra.mxu0 %v2004
    %v2033 = vpop.f32.mrf.mxu0
    %v2034 = vadd.f32 0.0, %v2033
    %v2035 = vpop.f32.mrf.mxu0
    %v2036 = vadd.f32 0.0, %v2035
    %2037 = vdwg.mxu0
    %v2042 = vunpack.c.l.b16 %v1747
    %v2043 = vunpack.c.l.b16 %v1748
    %v2044 = vunpack.c.l.b16 %v1749
    %v2045 = vunpack.c.l.b16 %v1750
    %v2046 = vpack.c.b16 %v2043, %v2042
    %v2047 = vpack.c.b16 %v2045, %v2044
    %v2054 = vunpack.c.l.b16 %v1779
    %v2055 = vunpack.c.l.b16 %v1780
    %v2056 = vunpack.c.l.b16 %v1781
    %v2057 = vunpack.c.l.b16 %v1782
    %v2058 = vpack.c.b16 %v2055, %v2054
    %v2059 = vpack.c.b16 %v2057, %v2056
    %2062 = vmatpush.bf16.xpose.msra.mxu0 0
    %2063 = vmatpush.bf16.xpose.msra.mxu0 0
    %2064 = vmatpush.bf16.xpose.msra.mxu0 0
    %2065 = vmatpush.bf16.xpose.msra.mxu0 0
    %2066 = vmatpush.bf16.xpose.msra.mxu0 0
    %2067 = vmatpush.bf16.xpose.msra.mxu0 0
    %2068 = vmatpush.bf16.xpose.msra.mxu0 %v2059
    %2069 = vmatpush.bf16.xpose.msra.mxu0 %v2058
    %2070 = vmatmul.bf16.gmra.mxu0 %v2046
    %v2071 = vpop.f32.mrf.mxu0
    %v2072 = vadd.f32 0.0, %v2071
    %v2073 = vpop.f32.mrf.mxu0
    %v2074 = vadd.f32 0.0, %v2073
    %2075 = vmatmul.bf16.gmra.mxu0 %v2047
    %v2076 = vpop.f32.mrf.mxu0
    %v2077 = vadd.f32 0.0, %v2076
    %v2078 = vpop.f32.mrf.mxu0
    %v2079 = vadd.f32 0.0, %v2078
    %2080 = vdwg.mxu0
    %v2085 = vunpack.c.l.b16 %v1751
    %v2086 = vunpack.c.l.b16 %v1752
    %v2087 = vunpack.c.l.b16 %v1753
    %v2088 = vunpack.c.l.b16 %v1754
    %v2089 = vpack.c.b16 %v2086, %v2085
    %v2090 = vpack.c.b16 %v2088, %v2087
    %v2097 = vunpack.c.l.b16 %v1783
    %v2098 = vunpack.c.l.b16 %v1784
    %v2099 = vunpack.c.l.b16 %v1785
    %v2100 = vunpack.c.l.b16 %v1786
    %v2101 = vpack.c.b16 %v2098, %v2097
    %v2102 = vpack.c.b16 %v2100, %v2099
    %2105 = vmatpush.bf16.xpose.msra.mxu0 0
    %2106 = vmatpush.bf16.xpose.msra.mxu0 0
    %2107 = vmatpush.bf16.xpose.msra.mxu0 0
    %2108 = vmatpush.bf16.xpose.msra.mxu0 0
    %2109 = vmatpush.bf16.xpose.msra.mxu0 0
    %2110 = vmatpush.bf16.xpose.msra.mxu0 0
    %2111 = vmatpush.bf16.xpose.msra.mxu0 %v2102
    %2112 = vmatpush.bf16.xpose.msra.mxu0 %v2101
    %2113 = vmatmul.bf16.gmra.mxu0 %v2089
    %v2114 = vpop.f32.mrf.mxu0
    %v2115 = vadd.f32 0.0, %v2114
    %v2116 = vpop.f32.mrf.mxu0
    %v2117 = vadd.f32 0.0, %v2116
    %2118 = vmatmul.bf16.gmra.mxu0 %v2090
    %v2119 = vpop.f32.mrf.mxu0
    %v2120 = vadd.f32 0.0, %v2119
    %v2121 = vpop.f32.mrf.mxu0
    %v2122 = vadd.f32 0.0, %v2121
    %2123 = vdwg.mxu0
    %v2128 = vunpack.c.l.b16 %v1755
    %v2129 = vunpack.c.l.b16 %v1756
    %v2130 = vunpack.c.l.b16 %v1757
    %v2131 = vunpack.c.l.b16 %v1758
    %v2132 = vpack.c.b16 %v2129, %v2128
    %v2133 = vpack.c.b16 %v2131, %v2130
    %v2140 = vunpack.c.l.b16 %v1787
    %v2141 = vunpack.c.l.b16 %v1788
    %v2142 = vunpack.c.l.b16 %v1789
    %v2143 = vunpack.c.l.b16 %v1790
    %v2144 = vpack.c.b16 %v2141, %v2140
    %v2145 = vpack.c.b16 %v2143, %v2142
    %2148 = vmatpush.bf16.xpose.msra.mxu0 0
    %2149 = vmatpush.bf16.xpose.msra.mxu0 0
    %2150 = vmatpush.bf16.xpose.msra.mxu0 0
    %2151 = vmatpush.bf16.xpose.msra.mxu0 0
    %2152 = vmatpush.bf16.xpose.msra.mxu0 0
    %2153 = vmatpush.bf16.xpose.msra.mxu0 0
    %2154 = vmatpush.bf16.xpose.msra.mxu0 %v2145
    %2155 = vmatpush.bf16.xpose.msra.mxu0 %v2144
    %2156 = vmatmul.bf16.gmra.mxu0 %v2132
    %v2157 = vpop.f32.mrf.mxu0
    %v2158 = vadd.f32 0.0, %v2157
    %v2159 = vpop.f32.mrf.mxu0
    %v2160 = vadd.f32 0.0, %v2159
    %2161 = vmatmul.bf16.gmra.mxu0 %v2133
    %v2162 = vpop.f32.mrf.mxu0
    %v2163 = vadd.f32 0.0, %v2162
    %v2164 = vpop.f32.mrf.mxu0
    %v2165 = vadd.f32 0.0, %v2164
    %2166 = vdwg.mxu0
    %v2167 = vsel %vm1723, %v1857, -1e+30
    %v2168 = vsel %vm1724, %v1859, -1e+30
    %v2169 = vsel %vm1725, %v1862, -1e+30
    %v2170 = vsel %vm1726, %v1864, -1e+30
    %v2171 = vsel %vm1723, %v1900, -1e+30
    %v2172 = vsel %vm1724, %v1902, -1e+30
    %v2173 = vsel %vm1725, %v1905, -1e+30
    %v2174 = vsel %vm1726, %v1907, -1e+30
    %v2175 = vsel %vm1723, %v1943, -1e+30
    %v2176 = vsel %vm1724, %v1945, -1e+30
    %v2177 = vsel %vm1725, %v1948, -1e+30
    %v2178 = vsel %vm1726, %v1950, -1e+30
    %v2179 = vsel %vm1723, %v1986, -1e+30
    %v2180 = vsel %vm1724, %v1988, -1e+30
    %v2181 = vsel %vm1725, %v1991, -1e+30
    %v2182 = vsel %vm1726, %v1993, -1e+30
    %v2183 = vsel %vm1723, %v2029, -1e+30
    %v2184 = vsel %vm1724, %v2031, -1e+30
    %v2185 = vsel %vm1725, %v2034, -1e+30
    %v2186 = vsel %vm1726, %v2036, -1e+30
    %v2187 = vsel %vm1723, %v2072, -1e+30
    %v2188 = vsel %vm1724, %v2074, -1e+30
    %v2189 = vsel %vm1725, %v2077, -1e+30
    %v2190 = vsel %vm1726, %v2079, -1e+30
    %v2191 = vsel %vm1723, %v2115, -1e+30
    %v2192 = vsel %vm1724, %v2117, -1e+30
    %v2193 = vsel %vm1725, %v2120, -1e+30
    %v2194 = vsel %vm1726, %v2122, -1e+30
    %v2195 = vsel %vm1723, %v2158, -1e+30
    %v2196 = vsel %vm1724, %v2160, -1e+30
    %v2197 = vsel %vm1725, %v2163, -1e+30
    %v2198 = vsel %vm1726, %v2165, -1e+30
    %vm2199 = vcmask 261120
    %v2200 = vsel %vm2199, %v2167, -inf
    %2201 = vmax.xlane.f32.xlu0 %v2200
    %v2202 = vpop.xlane.xlu0 %2201
    %v2203 = vsel %vm2199, %v2168, -inf
    %2204 = vmax.xlane.f32.xlu0 %v2203
    %v2205 = vpop.xlane.xlu0 %2204
    %v2206 = vsel %vm2199, %v2169, -inf
    %2207 = vmax.xlane.f32.xlu0 %v2206
    %v2208 = vpop.xlane.xlu0 %2207
    %v2209 = vsel %vm2199, %v2170, -inf
    %2210 = vmax.xlane.f32.xlu0 %v2209
    %v2211 = vpop.xlane.xlu0 %2210
    %v2212 = vsel %vm2199, %v2171, -inf
    %2213 = vmax.xlane.f32.xlu0 %v2212
    %v2214 = vpop.xlane.xlu0 %2213
    %v2215 = vsel %vm2199, %v2172, -inf
    %2216 = vmax.xlane.f32.xlu0 %v2215
    %v2217 = vpop.xlane.xlu0 %2216
    %v2218 = vsel %vm2199, %v2173, -inf
    %2219 = vmax.xlane.f32.xlu0 %v2218
    %v2220 = vpop.xlane.xlu0 %2219
    %v2221 = vsel %vm2199, %v2174, -inf
    %2222 = vmax.xlane.f32.xlu0 %v2221
    %v2223 = vpop.xlane.xlu0 %2222
    %v2224 = vsel %vm2199, %v2175, -inf
    %2225 = vmax.xlane.f32.xlu0 %v2224
    %v2226 = vpop.xlane.xlu0 %2225
    %v2227 = vsel %vm2199, %v2176, -inf
    %2228 = vmax.xlane.f32.xlu0 %v2227
    %v2229 = vpop.xlane.xlu0 %2228
    %v2230 = vsel %vm2199, %v2177, -inf
    %2231 = vmax.xlane.f32.xlu0 %v2230
    %v2232 = vpop.xlane.xlu0 %2231
    %v2233 = vsel %vm2199, %v2178, -inf
    %2234 = vmax.xlane.f32.xlu0 %v2233
    %v2235 = vpop.xlane.xlu0 %2234
    %v2236 = vsel %vm2199, %v2179, -inf
    %2237 = vmax.xlane.f32.xlu0 %v2236
    %v2238 = vpop.xlane.xlu0 %2237
    %v2239 = vsel %vm2199, %v2180, -inf
    %2240 = vmax.xlane.f32.xlu0 %v2239
    %v2241 = vpop.xlane.xlu0 %2240
    %v2242 = vsel %vm2199, %v2181, -inf
    %2243 = vmax.xlane.f32.xlu0 %v2242
    %v2244 = vpop.xlane.xlu0 %2243
    %v2245 = vsel %vm2199, %v2182, -inf
    %2246 = vmax.xlane.f32.xlu0 %v2245
    %v2247 = vpop.xlane.xlu0 %2246
    %v2248 = vsel %vm2199, %v2183, -inf
    %2249 = vmax.xlane.f32.xlu0 %v2248
    %v2250 = vpop.xlane.xlu0 %2249
    %v2251 = vsel %vm2199, %v2184, -inf
    %2252 = vmax.xlane.f32.xlu0 %v2251
    %v2253 = vpop.xlane.xlu0 %2252
    %v2254 = vsel %vm2199, %v2185, -inf
    %2255 = vmax.xlane.f32.xlu0 %v2254
    %v2256 = vpop.xlane.xlu0 %2255
    %v2257 = vsel %vm2199, %v2186, -inf
    %2258 = vmax.xlane.f32.xlu0 %v2257
    %v2259 = vpop.xlane.xlu0 %2258
    %v2260 = vsel %vm2199, %v2187, -inf
    %2261 = vmax.xlane.f32.xlu0 %v2260
    %v2262 = vpop.xlane.xlu0 %2261
    %v2263 = vsel %vm2199, %v2188, -inf
    %2264 = vmax.xlane.f32.xlu0 %v2263
    %v2265 = vpop.xlane.xlu0 %2264
    %v2266 = vsel %vm2199, %v2189, -inf
    %2267 = vmax.xlane.f32.xlu0 %v2266
    %v2268 = vpop.xlane.xlu0 %2267
    %v2269 = vsel %vm2199, %v2190, -inf
    %2270 = vmax.xlane.f32.xlu0 %v2269
    %v2271 = vpop.xlane.xlu0 %2270
    %v2272 = vsel %vm2199, %v2191, -inf
    %2273 = vmax.xlane.f32.xlu0 %v2272
    %v2274 = vpop.xlane.xlu0 %2273
    %v2275 = vsel %vm2199, %v2192, -inf
    %2276 = vmax.xlane.f32.xlu0 %v2275
    %v2277 = vpop.xlane.xlu0 %2276
    %v2278 = vsel %vm2199, %v2193, -inf
    %2279 = vmax.xlane.f32.xlu0 %v2278
    %v2280 = vpop.xlane.xlu0 %2279
    %v2281 = vsel %vm2199, %v2194, -inf
    %2282 = vmax.xlane.f32.xlu0 %v2281
    %v2283 = vpop.xlane.xlu0 %2282
    %v2284 = vsel %vm2199, %v2195, -inf
    %2285 = vmax.xlane.f32.xlu0 %v2284
    %v2286 = vpop.xlane.xlu0 %2285
    %v2287 = vsel %vm2199, %v2196, -inf
    %2288 = vmax.xlane.f32.xlu0 %v2287
    %v2289 = vpop.xlane.xlu0 %2288
    %v2290 = vsel %vm2199, %v2197, -inf
    %2291 = vmax.xlane.f32.xlu0 %v2290
    %v2292 = vpop.xlane.xlu0 %2291
    %v2293 = vsel %vm2199, %v2198, -inf
    %2294 = vmax.xlane.f32.xlu0 %v2293
    %v2295 = vpop.xlane.xlu0 %2294
    %v2296 = vsub.f32 %v2167, %v2202
    %v2297 = vsub.f32 %v2168, %v2205
    %v2298 = vsub.f32 %v2169, %v2208
    %v2299 = vsub.f32 %v2170, %v2211
    %v2300 = vsub.f32 %v2171, %v2214
    %v2301 = vsub.f32 %v2172, %v2217
    %v2302 = vsub.f32 %v2173, %v2220
    %v2303 = vsub.f32 %v2174, %v2223
    %v2304 = vsub.f32 %v2175, %v2226
    %v2305 = vsub.f32 %v2176, %v2229
    %v2306 = vsub.f32 %v2177, %v2232
    %v2307 = vsub.f32 %v2178, %v2235
    %v2308 = vsub.f32 %v2179, %v2238
    %v2309 = vsub.f32 %v2180, %v2241
    %v2310 = vsub.f32 %v2181, %v2244
    %v2311 = vsub.f32 %v2182, %v2247
    %v2312 = vsub.f32 %v2183, %v2250
    %v2313 = vsub.f32 %v2184, %v2253
    %v2314 = vsub.f32 %v2185, %v2256
    %v2315 = vsub.f32 %v2186, %v2259
    %v2316 = vsub.f32 %v2187, %v2262
    %v2317 = vsub.f32 %v2188, %v2265
    %v2318 = vsub.f32 %v2189, %v2268
    %v2319 = vsub.f32 %v2190, %v2271
    %v2320 = vsub.f32 %v2191, %v2274
    %v2321 = vsub.f32 %v2192, %v2277
    %v2322 = vsub.f32 %v2193, %v2280
    %v2323 = vsub.f32 %v2194, %v2283
    %v2324 = vsub.f32 %v2195, %v2286
    %v2325 = vsub.f32 %v2196, %v2289
    %v2326 = vsub.f32 %v2197, %v2292
    %v2327 = vsub.f32 %v2198, %v2295
    %v2328 = vmul.f32 %v2296, 1.442695
    %v2329 = vpow.pop %v2328
    %v2330 = vmul.f32 %v2297, 1.442695
    %v2331 = vpow.pop %v2330
    %v2332 = vmul.f32 %v2298, 1.442695
    %v2333 = vpow.pop %v2332
    %v2334 = vmul.f32 %v2299, 1.442695
    %v2335 = vpow.pop %v2334
    %v2336 = vmul.f32 %v2300, 1.442695
    %v2337 = vpow.pop %v2336
    %v2338 = vmul.f32 %v2301, 1.442695
    %v2339 = vpow.pop %v2338
    %v2340 = vmul.f32 %v2302, 1.442695
    %v2341 = vpow.pop %v2340
    %v2342 = vmul.f32 %v2303, 1.442695
    %v2343 = vpow.pop %v2342
    %v2344 = vmul.f32 %v2304, 1.442695
    %v2345 = vpow.pop %v2344
    %v2346 = vmul.f32 %v2305, 1.442695
    %v2347 = vpow.pop %v2346
    %v2348 = vmul.f32 %v2306, 1.442695
    %v2349 = vpow.pop %v2348
    %v2350 = vmul.f32 %v2307, 1.442695
    %v2351 = vpow.pop %v2350
    %v2352 = vmul.f32 %v2308, 1.442695
    %v2353 = vpow.pop %v2352
    %v2354 = vmul.f32 %v2309, 1.442695
    %v2355 = vpow.pop %v2354
    %v2356 = vmul.f32 %v2310, 1.442695
    %v2357 = vpow.pop %v2356
    %v2358 = vmul.f32 %v2311, 1.442695
    %v2359 = vpow.pop %v2358
    %v2360 = vmul.f32 %v2312, 1.442695
    %v2361 = vpow.pop %v2360
    %v2362 = vmul.f32 %v2313, 1.442695
    %v2363 = vpow.pop %v2362
    %v2364 = vmul.f32 %v2314, 1.442695
    %v2365 = vpow.pop %v2364
    %v2366 = vmul.f32 %v2315, 1.442695
    %v2367 = vpow.pop %v2366
    %v2368 = vmul.f32 %v2316, 1.442695
    %v2369 = vpow.pop %v2368
    %v2370 = vmul.f32 %v2317, 1.442695
    %v2371 = vpow.pop %v2370
    %v2372 = vmul.f32 %v2318, 1.442695
    %v2373 = vpow.pop %v2372
    %v2374 = vmul.f32 %v2319, 1.442695
    %v2375 = vpow.pop %v2374
    %v2376 = vmul.f32 %v2320, 1.442695
    %v2377 = vpow.pop %v2376
    %v2378 = vmul.f32 %v2321, 1.442695
    %v2379 = vpow.pop %v2378
    %v2380 = vmul.f32 %v2322, 1.442695
    %v2381 = vpow.pop %v2380
    %v2382 = vmul.f32 %v2323, 1.442695
    %v2383 = vpow.pop %v2382
    %v2384 = vmul.f32 %v2324, 1.442695
    %v2385 = vpow.pop %v2384
    %v2386 = vmul.f32 %v2325, 1.442695
    %v2387 = vpow.pop %v2386
    %v2388 = vmul.f32 %v2326, 1.442695
    %v2389 = vpow.pop %v2388
    %v2390 = vmul.f32 %v2327, 1.442695
    %v2391 = vpow.pop %v2390
    %v2392 = vsel %vm2199, %v2329, 0.0
    %2393 = vadd.xlane.f32.xlu0 %v2392
    %v2394 = vpop.xlane.xlu0 %2393
    %v2395 = vsel %vm2199, %v2331, 0.0
    %2396 = vadd.xlane.f32.xlu0 %v2395
    %v2397 = vpop.xlane.xlu0 %2396
    %v2398 = vsel %vm2199, %v2333, 0.0
    %2399 = vadd.xlane.f32.xlu0 %v2398
    %v2400 = vpop.xlane.xlu0 %2399
    %v2401 = vsel %vm2199, %v2335, 0.0
    %2402 = vadd.xlane.f32.xlu0 %v2401
    %v2403 = vpop.xlane.xlu0 %2402
    %v2404 = vsel %vm2199, %v2337, 0.0
    %2405 = vadd.xlane.f32.xlu0 %v2404
    %v2406 = vpop.xlane.xlu0 %2405
    %v2407 = vsel %vm2199, %v2339, 0.0
    %2408 = vadd.xlane.f32.xlu0 %v2407
    %v2409 = vpop.xlane.xlu0 %2408
    %v2410 = vsel %vm2199, %v2341, 0.0
    %2411 = vadd.xlane.f32.xlu0 %v2410
    %v2412 = vpop.xlane.xlu0 %2411
    %v2413 = vsel %vm2199, %v2343, 0.0
    %2414 = vadd.xlane.f32.xlu0 %v2413
    %v2415 = vpop.xlane.xlu0 %2414
    %v2416 = vsel %vm2199, %v2345, 0.0
    %2417 = vadd.xlane.f32.xlu0 %v2416
    %v2418 = vpop.xlane.xlu0 %2417
    %v2419 = vsel %vm2199, %v2347, 0.0
    %2420 = vadd.xlane.f32.xlu0 %v2419
    %v2421 = vpop.xlane.xlu0 %2420
    %v2422 = vsel %vm2199, %v2349, 0.0
    %2423 = vadd.xlane.f32.xlu0 %v2422
    %v2424 = vpop.xlane.xlu0 %2423
    %v2425 = vsel %vm2199, %v2351, 0.0
    %2426 = vadd.xlane.f32.xlu0 %v2425
    %v2427 = vpop.xlane.xlu0 %2426
    %v2428 = vsel %vm2199, %v2353, 0.0
    %2429 = vadd.xlane.f32.xlu0 %v2428
    %v2430 = vpop.xlane.xlu0 %2429
    %v2431 = vsel %vm2199, %v2355, 0.0
    %2432 = vadd.xlane.f32.xlu0 %v2431
    %v2433 = vpop.xlane.xlu0 %2432
    %v2434 = vsel %vm2199, %v2357, 0.0
    %2435 = vadd.xlane.f32.xlu0 %v2434
    %v2436 = vpop.xlane.xlu0 %2435
    %v2437 = vsel %vm2199, %v2359, 0.0
    %2438 = vadd.xlane.f32.xlu0 %v2437
    %v2439 = vpop.xlane.xlu0 %2438
    %v2440 = vsel %vm2199, %v2361, 0.0
    %2441 = vadd.xlane.f32.xlu0 %v2440
    %v2442 = vpop.xlane.xlu0 %2441
    %v2443 = vsel %vm2199, %v2363, 0.0
    %2444 = vadd.xlane.f32.xlu0 %v2443
    %v2445 = vpop.xlane.xlu0 %2444
    %v2446 = vsel %vm2199, %v2365, 0.0
    %2447 = vadd.xlane.f32.xlu0 %v2446
    %v2448 = vpop.xlane.xlu0 %2447
    %v2449 = vsel %vm2199, %v2367, 0.0
    %2450 = vadd.xlane.f32.xlu0 %v2449
    %v2451 = vpop.xlane.xlu0 %2450
    %v2452 = vsel %vm2199, %v2369, 0.0
    %2453 = vadd.xlane.f32.xlu0 %v2452
    %v2454 = vpop.xlane.xlu0 %2453
    %v2455 = vsel %vm2199, %v2371, 0.0
    %2456 = vadd.xlane.f32.xlu0 %v2455
    %v2457 = vpop.xlane.xlu0 %2456
    %v2458 = vsel %vm2199, %v2373, 0.0
    %2459 = vadd.xlane.f32.xlu0 %v2458
    %v2460 = vpop.xlane.xlu0 %2459
    %v2461 = vsel %vm2199, %v2375, 0.0
    %2462 = vadd.xlane.f32.xlu0 %v2461
    %v2463 = vpop.xlane.xlu0 %2462
    %v2464 = vsel %vm2199, %v2377, 0.0
    %2465 = vadd.xlane.f32.xlu0 %v2464
    %v2466 = vpop.xlane.xlu0 %2465
    %v2467 = vsel %vm2199, %v2379, 0.0
    %2468 = vadd.xlane.f32.xlu0 %v2467
    %v2469 = vpop.xlane.xlu0 %2468
    %v2470 = vsel %vm2199, %v2381, 0.0
    %2471 = vadd.xlane.f32.xlu0 %v2470
    %v2472 = vpop.xlane.xlu0 %2471
    %v2473 = vsel %vm2199, %v2383, 0.0
    %2474 = vadd.xlane.f32.xlu0 %v2473
    %v2475 = vpop.xlane.xlu0 %2474
    %v2476 = vsel %vm2199, %v2385, 0.0
    %2477 = vadd.xlane.f32.xlu0 %v2476
    %v2478 = vpop.xlane.xlu0 %2477
    %v2479 = vsel %vm2199, %v2387, 0.0
    %2480 = vadd.xlane.f32.xlu0 %v2479
    %v2481 = vpop.xlane.xlu0 %2480
    %v2482 = vsel %vm2199, %v2389, 0.0
    %2483 = vadd.xlane.f32.xlu0 %v2482
    %v2484 = vpop.xlane.xlu0 %2483
    %v2485 = vsel %vm2199, %v2391, 0.0
    %2486 = vadd.xlane.f32.xlu0 %v2485
    %v2487 = vpop.xlane.xlu0 %2486
    %v2488 = vrcp.pop %v2394
    %v2489 = vrcp.pop %v2397
    %v2490 = vrcp.pop %v2400
    %v2491 = vrcp.pop %v2403
    %v2492 = vrcp.pop %v2406
    %v2493 = vrcp.pop %v2409
    %v2494 = vrcp.pop %v2412
    %v2495 = vrcp.pop %v2415
    %v2496 = vrcp.pop %v2418
    %v2497 = vrcp.pop %v2421
    %v2498 = vrcp.pop %v2424
    %v2499 = vrcp.pop %v2427
    %v2500 = vrcp.pop %v2430
    %v2501 = vrcp.pop %v2433
    %v2502 = vrcp.pop %v2436
    %v2503 = vrcp.pop %v2439
    %v2504 = vrcp.pop %v2442
    %v2505 = vrcp.pop %v2445
    %v2506 = vrcp.pop %v2448
    %v2507 = vrcp.pop %v2451
    %v2508 = vrcp.pop %v2454
    %v2509 = vrcp.pop %v2457
    %v2510 = vrcp.pop %v2460
    %v2511 = vrcp.pop %v2463
    %v2512 = vrcp.pop %v2466
    %v2513 = vrcp.pop %v2469
    %v2514 = vrcp.pop %v2472
    %v2515 = vrcp.pop %v2475
    %v2516 = vrcp.pop %v2478
    %v2517 = vrcp.pop %v2481
    %v2518 = vrcp.pop %v2484
    %v2519 = vrcp.pop %v2487
    %v2520 = vmul.f32 %v2329, %v2488
    %v2521 = vmul.f32 %v2331, %v2489
    %v2522 = vmul.f32 %v2333, %v2490
    %v2523 = vmul.f32 %v2335, %v2491
    %v2524 = vmul.f32 %v2337, %v2492
    %v2525 = vmul.f32 %v2339, %v2493
    %v2526 = vmul.f32 %v2341, %v2494
    %v2527 = vmul.f32 %v2343, %v2495
    %v2528 = vmul.f32 %v2345, %v2496
    %v2529 = vmul.f32 %v2347, %v2497
    %v2530 = vmul.f32 %v2349, %v2498
    %v2531 = vmul.f32 %v2351, %v2499
    %v2532 = vmul.f32 %v2353, %v2500
    %v2533 = vmul.f32 %v2355, %v2501
    %v2534 = vmul.f32 %v2357, %v2502
    %v2535 = vmul.f32 %v2359, %v2503
    %v2536 = vmul.f32 %v2361, %v2504
    %v2537 = vmul.f32 %v2363, %v2505
    %v2538 = vmul.f32 %v2365, %v2506
    %v2539 = vmul.f32 %v2367, %v2507
    %v2540 = vmul.f32 %v2369, %v2508
    %v2541 = vmul.f32 %v2371, %v2509
    %v2542 = vmul.f32 %v2373, %v2510
    %v2543 = vmul.f32 %v2375, %v2511
    %v2544 = vmul.f32 %v2377, %v2512
    %v2545 = vmul.f32 %v2379, %v2513
    %v2546 = vmul.f32 %v2381, %v2514
    %v2547 = vmul.f32 %v2383, %v2515
    %v2548 = vmul.f32 %v2385, %v2516
    %v2549 = vmul.f32 %v2387, %v2517
    %v2550 = vmul.f32 %v2389, %v2518
    %v2551 = vmul.f32 %v2391, %v2519
    %v2552 = vpack.c.bf16 %v2520, %v2520
    %v2553 = vpack.c.bf16 %v2521, %v2521
    %v2554 = vpack.c.bf16 %v2522, %v2522
    %v2555 = vpack.c.bf16 %v2523, %v2523
    %v2556 = vpack.c.bf16 %v2524, %v2524
    %v2557 = vpack.c.bf16 %v2525, %v2525
    %v2558 = vpack.c.bf16 %v2526, %v2526
    %v2559 = vpack.c.bf16 %v2527, %v2527
    %v2560 = vpack.c.bf16 %v2528, %v2528
    %v2561 = vpack.c.bf16 %v2529, %v2529
    %v2562 = vpack.c.bf16 %v2530, %v2530
    %v2563 = vpack.c.bf16 %v2531, %v2531
    %v2564 = vpack.c.bf16 %v2532, %v2532
    %v2565 = vpack.c.bf16 %v2533, %v2533
    %v2566 = vpack.c.bf16 %v2534, %v2534
    %v2567 = vpack.c.bf16 %v2535, %v2535
    %v2568 = vpack.c.bf16 %v2536, %v2536
    %v2569 = vpack.c.bf16 %v2537, %v2537
    %v2570 = vpack.c.bf16 %v2538, %v2538
    %v2571 = vpack.c.bf16 %v2539, %v2539
    %v2572 = vpack.c.bf16 %v2540, %v2540
    %v2573 = vpack.c.bf16 %v2541, %v2541
    %v2574 = vpack.c.bf16 %v2542, %v2542
    %v2575 = vpack.c.bf16 %v2543, %v2543
    %v2576 = vpack.c.bf16 %v2544, %v2544
    %v2577 = vpack.c.bf16 %v2545, %v2545
    %v2578 = vpack.c.bf16 %v2546, %v2546
    %v2579 = vpack.c.bf16 %v2547, %v2547
    %v2580 = vpack.c.bf16 %v2548, %v2548
    %v2581 = vpack.c.bf16 %v2549, %v2549
    %v2582 = vpack.c.bf16 %v2550, %v2550
    %v2583 = vpack.c.bf16 %v2551, %v2551
    %v2584 = vpack.c.bf16 %v1281, %v1281
    %v2585 = vpack.c.bf16 %v1283, %v1283
    %v2586 = vpack.c.bf16 %v1286, %v1286
    %v2587 = vpack.c.bf16 %v1288, %v1288
    %v2588 = vpack.c.bf16 %v1291, %v1291
    %v2589 = vpack.c.bf16 %v1293, %v1293
    %v2590 = vpack.c.bf16 %v1296, %v1296
    %v2591 = vpack.c.bf16 %v1298, %v1298
    %v2592 = vpack.c.bf16 %v1301, %v1301
    %v2593 = vpack.c.bf16 %v1303, %v1303
    %v2594 = vpack.c.bf16 %v1306, %v1306
    %v2595 = vpack.c.bf16 %v1308, %v1308
    %v2596 = vpack.c.bf16 %v1311, %v1311
    %v2597 = vpack.c.bf16 %v1313, %v1313
    %v2598 = vpack.c.bf16 %v1316, %v1316
    %v2599 = vpack.c.bf16 %v1318, %v1318
    %v2600 = vpack.c.bf16 %v1321, %v1321
    %v2601 = vpack.c.bf16 %v1323, %v1323
    %v2602 = vpack.c.bf16 %v1326, %v1326
    %v2603 = vpack.c.bf16 %v1328, %v1328
    %v2604 = vpack.c.bf16 %v1331, %v1331
    %v2605 = vpack.c.bf16 %v1333, %v1333
    %v2606 = vpack.c.bf16 %v1336, %v1336
    %v2607 = vpack.c.bf16 %v1338, %v1338
    %v2608 = vpack.c.bf16 %v1341, %v1341
    %v2609 = vpack.c.bf16 %v1343, %v1343
    %v2610 = vpack.c.bf16 %v1346, %v1346
    %v2611 = vpack.c.bf16 %v1348, %v1348
    %v2612 = vpack.c.bf16 %v1351, %v1351
    %v2613 = vpack.c.bf16 %v1353, %v1353
    %v2614 = vpack.c.bf16 %v1356, %v1356
    %v2615 = vpack.c.bf16 %v1358, %v1358
    %v2616 = vpack.c.bf16 %v1459, %v1459
    %v2617 = vpack.c.bf16 %v1461, %v1461
    %v2618 = vpack.c.bf16 %v1464, %v1464
    %v2619 = vpack.c.bf16 %v1466, %v1466
    %v2620 = vpack.c.bf16 %v1469, %v1469
    %v2621 = vpack.c.bf16 %v1471, %v1471
    %v2622 = vpack.c.bf16 %v1474, %v1474
    %v2623 = vpack.c.bf16 %v1476, %v1476
    %v2624 = vpack.c.bf16 %v1479, %v1479
    %v2625 = vpack.c.bf16 %v1481, %v1481
    %v2626 = vpack.c.bf16 %v1484, %v1484
    %v2627 = vpack.c.bf16 %v1486, %v1486
    %v2628 = vpack.c.bf16 %v1489, %v1489
    %v2629 = vpack.c.bf16 %v1491, %v1491
    %v2630 = vpack.c.bf16 %v1494, %v1494
    %v2631 = vpack.c.bf16 %v1496, %v1496
    %v2632 = vpack.c.bf16 %v1499, %v1499
    %v2633 = vpack.c.bf16 %v1501, %v1501
    %v2634 = vpack.c.bf16 %v1504, %v1504
    %v2635 = vpack.c.bf16 %v1506, %v1506
    %v2636 = vpack.c.bf16 %v1509, %v1509
    %v2637 = vpack.c.bf16 %v1511, %v1511
    %v2638 = vpack.c.bf16 %v1514, %v1514
    %v2639 = vpack.c.bf16 %v1516, %v1516
    %v2640 = vpack.c.bf16 %v1519, %v1519
    %v2641 = vpack.c.bf16 %v1521, %v1521
    %v2642 = vpack.c.bf16 %v1524, %v1524
    %v2643 = vpack.c.bf16 %v1526, %v1526
    %v2644 = vpack.c.bf16 %v1529, %v1529
    %v2645 = vpack.c.bf16 %v1531, %v1531
    %v2646 = vpack.c.bf16 %v1534, %v1534
    %v2647 = vpack.c.bf16 %v1536, %v1536
    %v2648 = vpack.c.bf16 %v1637, %v1637
    %v2649 = vpack.c.bf16 %v1639, %v1639
    %v2650 = vpack.c.bf16 %v1642, %v1642
    %v2651 = vpack.c.bf16 %v1644, %v1644
    %v2652 = vpack.c.bf16 %v1647, %v1647
    %v2653 = vpack.c.bf16 %v1649, %v1649
    %v2654 = vpack.c.bf16 %v1652, %v1652
    %v2655 = vpack.c.bf16 %v1654, %v1654
    %v2656 = vpack.c.bf16 %v1657, %v1657
    %v2657 = vpack.c.bf16 %v1659, %v1659
    %v2658 = vpack.c.bf16 %v1662, %v1662
    %v2659 = vpack.c.bf16 %v1664, %v1664
    %v2660 = vpack.c.bf16 %v1667, %v1667
    %v2661 = vpack.c.bf16 %v1669, %v1669
    %v2662 = vpack.c.bf16 %v1672, %v1672
    %v2663 = vpack.c.bf16 %v1674, %v1674
    %v2664 = vpack.c.bf16 %v1677, %v1677
    %v2665 = vpack.c.bf16 %v1679, %v1679
    %v2666 = vpack.c.bf16 %v1682, %v1682
    %v2667 = vpack.c.bf16 %v1684, %v1684
    %v2668 = vpack.c.bf16 %v1687, %v1687
    %v2669 = vpack.c.bf16 %v1689, %v1689
    %v2670 = vpack.c.bf16 %v1692, %v1692
    %v2671 = vpack.c.bf16 %v1694, %v1694
    %v2672 = vpack.c.bf16 %v1697, %v1697
    %v2673 = vpack.c.bf16 %v1699, %v1699
    %v2674 = vpack.c.bf16 %v1702, %v1702
    %v2675 = vpack.c.bf16 %v1704, %v1704
    %v2676 = vpack.c.bf16 %v1707, %v1707
    %v2677 = vpack.c.bf16 %v1709, %v1709
    %v2678 = vpack.c.bf16 %v1712, %v1712
    %v2679 = vpack.c.bf16 %v1714, %v1714
    %v2684 = vunpack.c.l.b16 %v2584
    %v2685 = vunpack.c.l.b16 %v2585
    %v2686 = vunpack.c.l.b16 %v2586
    %v2687 = vunpack.c.l.b16 %v2587
    %v2688 = vpack.c.b16 %v2685, %v2684
    %v2689 = vpack.c.b16 %v2687, %v2686
    %v2696 = vunpack.c.l.b16 %v2616
    %v2697 = vunpack.c.l.b16 %v2617
    %v2698 = vunpack.c.l.b16 %v2618
    %v2699 = vunpack.c.l.b16 %v2619
    %v2700 = vpack.c.b16 %v2697, %v2696
    %v2701 = vpack.c.b16 %v2699, %v2698
    %2704 = vmatpush.bf16.xpose.msra.mxu0 0
    %2705 = vmatpush.bf16.xpose.msra.mxu0 0
    %2706 = vmatpush.bf16.xpose.msra.mxu0 0
    %2707 = vmatpush.bf16.xpose.msra.mxu0 0
    %2708 = vmatpush.bf16.xpose.msra.mxu0 0
    %2709 = vmatpush.bf16.xpose.msra.mxu0 0
    %2710 = vmatpush.bf16.xpose.msra.mxu0 %v2701
    %2711 = vmatpush.bf16.xpose.msra.mxu0 %v2700
    %2712 = vmatmul.bf16.gmra.mxu0 %v2688
    %v2713 = vpop.f32.mrf.mxu0
    %v2714 = vadd.f32 0.0, %v2713
    %v2715 = vpop.f32.mrf.mxu0
    %v2716 = vadd.f32 0.0, %v2715
    %2717 = vmatmul.bf16.gmra.mxu0 %v2689
    %v2718 = vpop.f32.mrf.mxu0
    %v2719 = vadd.f32 0.0, %v2718
    %v2720 = vpop.f32.mrf.mxu0
    %v2721 = vadd.f32 0.0, %v2720
    %2722 = vdwg.mxu0
    %v2727 = vunpack.c.l.b16 %v2588
    %v2728 = vunpack.c.l.b16 %v2589
    %v2729 = vunpack.c.l.b16 %v2590
    %v2730 = vunpack.c.l.b16 %v2591
    %v2731 = vpack.c.b16 %v2728, %v2727
    %v2732 = vpack.c.b16 %v2730, %v2729
    %v2739 = vunpack.c.l.b16 %v2620
    %v2740 = vunpack.c.l.b16 %v2621
    %v2741 = vunpack.c.l.b16 %v2622
    %v2742 = vunpack.c.l.b16 %v2623
    %v2743 = vpack.c.b16 %v2740, %v2739
    %v2744 = vpack.c.b16 %v2742, %v2741
    %2747 = vmatpush.bf16.xpose.msra.mxu0 0
    %2748 = vmatpush.bf16.xpose.msra.mxu0 0
    %2749 = vmatpush.bf16.xpose.msra.mxu0 0
    %2750 = vmatpush.bf16.xpose.msra.mxu0 0
    %2751 = vmatpush.bf16.xpose.msra.mxu0 0
    %2752 = vmatpush.bf16.xpose.msra.mxu0 0
    %2753 = vmatpush.bf16.xpose.msra.mxu0 %v2744
    %2754 = vmatpush.bf16.xpose.msra.mxu0 %v2743
    %2755 = vmatmul.bf16.gmra.mxu0 %v2731
    %v2756 = vpop.f32.mrf.mxu0
    %v2757 = vadd.f32 0.0, %v2756
    %v2758 = vpop.f32.mrf.mxu0
    %v2759 = vadd.f32 0.0, %v2758
    %2760 = vmatmul.bf16.gmra.mxu0 %v2732
    %v2761 = vpop.f32.mrf.mxu0
    %v2762 = vadd.f32 0.0, %v2761
    %v2763 = vpop.f32.mrf.mxu0
    %v2764 = vadd.f32 0.0, %v2763
    %2765 = vdwg.mxu0
    %v2770 = vunpack.c.l.b16 %v2592
    %v2771 = vunpack.c.l.b16 %v2593
    %v2772 = vunpack.c.l.b16 %v2594
    %v2773 = vunpack.c.l.b16 %v2595
    %v2774 = vpack.c.b16 %v2771, %v2770
    %v2775 = vpack.c.b16 %v2773, %v2772
    %v2782 = vunpack.c.l.b16 %v2624
    %v2783 = vunpack.c.l.b16 %v2625
    %v2784 = vunpack.c.l.b16 %v2626
    %v2785 = vunpack.c.l.b16 %v2627
    %v2786 = vpack.c.b16 %v2783, %v2782
    %v2787 = vpack.c.b16 %v2785, %v2784
    %2790 = vmatpush.bf16.xpose.msra.mxu0 0
    %2791 = vmatpush.bf16.xpose.msra.mxu0 0
    %2792 = vmatpush.bf16.xpose.msra.mxu0 0
    %2793 = vmatpush.bf16.xpose.msra.mxu0 0
    %2794 = vmatpush.bf16.xpose.msra.mxu0 0
    %2795 = vmatpush.bf16.xpose.msra.mxu0 0
    %2796 = vmatpush.bf16.xpose.msra.mxu0 %v2787
    %2797 = vmatpush.bf16.xpose.msra.mxu0 %v2786
    %2798 = vmatmul.bf16.gmra.mxu0 %v2774
    %v2799 = vpop.f32.mrf.mxu0
    %v2800 = vadd.f32 0.0, %v2799
    %v2801 = vpop.f32.mrf.mxu0
    %v2802 = vadd.f32 0.0, %v2801
    %2803 = vmatmul.bf16.gmra.mxu0 %v2775
    %v2804 = vpop.f32.mrf.mxu0
    %v2805 = vadd.f32 0.0, %v2804
    %v2806 = vpop.f32.mrf.mxu0
    %v2807 = vadd.f32 0.0, %v2806
    %2808 = vdwg.mxu0
    %v2813 = vunpack.c.l.b16 %v2596
    %v2814 = vunpack.c.l.b16 %v2597
    %v2815 = vunpack.c.l.b16 %v2598
    %v2816 = vunpack.c.l.b16 %v2599
    %v2817 = vpack.c.b16 %v2814, %v2813
    %v2818 = vpack.c.b16 %v2816, %v2815
    %v2825 = vunpack.c.l.b16 %v2628
    %v2826 = vunpack.c.l.b16 %v2629
    %v2827 = vunpack.c.l.b16 %v2630
    %v2828 = vunpack.c.l.b16 %v2631
    %v2829 = vpack.c.b16 %v2826, %v2825
    %v2830 = vpack.c.b16 %v2828, %v2827
    %2833 = vmatpush.bf16.xpose.msra.mxu0 0
    %2834 = vmatpush.bf16.xpose.msra.mxu0 0
    %2835 = vmatpush.bf16.xpose.msra.mxu0 0
    %2836 = vmatpush.bf16.xpose.msra.mxu0 0
    %2837 = vmatpush.bf16.xpose.msra.mxu0 0
    %2838 = vmatpush.bf16.xpose.msra.mxu0 0
    %2839 = vmatpush.bf16.xpose.msra.mxu0 %v2830
    %2840 = vmatpush.bf16.xpose.msra.mxu0 %v2829
    %2841 = vmatmul.bf16.gmra.mxu0 %v2817
    %v2842 = vpop.f32.mrf.mxu0
    %v2843 = vadd.f32 0.0, %v2842
    %v2844 = vpop.f32.mrf.mxu0
    %v2845 = vadd.f32 0.0, %v2844
    %2846 = vmatmul.bf16.gmra.mxu0 %v2818
    %v2847 = vpop.f32.mrf.mxu0
    %v2848 = vadd.f32 0.0, %v2847
    %v2849 = vpop.f32.mrf.mxu0
    %v2850 = vadd.f32 0.0, %v2849
    %2851 = vdwg.mxu0
    %v2856 = vunpack.c.l.b16 %v2600
    %v2857 = vunpack.c.l.b16 %v2601
    %v2858 = vunpack.c.l.b16 %v2602
    %v2859 = vunpack.c.l.b16 %v2603
    %v2860 = vpack.c.b16 %v2857, %v2856
    %v2861 = vpack.c.b16 %v2859, %v2858
    %v2868 = vunpack.c.l.b16 %v2632
    %v2869 = vunpack.c.l.b16 %v2633
    %v2870 = vunpack.c.l.b16 %v2634
    %v2871 = vunpack.c.l.b16 %v2635
    %v2872 = vpack.c.b16 %v2869, %v2868
    %v2873 = vpack.c.b16 %v2871, %v2870
    %2876 = vmatpush.bf16.xpose.msra.mxu0 0
    %2877 = vmatpush.bf16.xpose.msra.mxu0 0
    %2878 = vmatpush.bf16.xpose.msra.mxu0 0
    %2879 = vmatpush.bf16.xpose.msra.mxu0 0
    %2880 = vmatpush.bf16.xpose.msra.mxu0 0
    %2881 = vmatpush.bf16.xpose.msra.mxu0 0
    %2882 = vmatpush.bf16.xpose.msra.mxu0 %v2873
    %2883 = vmatpush.bf16.xpose.msra.mxu0 %v2872
    %2884 = vmatmul.bf16.gmra.mxu0 %v2860
    %v2885 = vpop.f32.mrf.mxu0
    %v2886 = vadd.f32 0.0, %v2885
    %v2887 = vpop.f32.mrf.mxu0
    %v2888 = vadd.f32 0.0, %v2887
    %2889 = vmatmul.bf16.gmra.mxu0 %v2861
    %v2890 = vpop.f32.mrf.mxu0
    %v2891 = vadd.f32 0.0, %v2890
    %v2892 = vpop.f32.mrf.mxu0
    %v2893 = vadd.f32 0.0, %v2892
    %2894 = vdwg.mxu0
    %v2899 = vunpack.c.l.b16 %v2604
    %v2900 = vunpack.c.l.b16 %v2605
    %v2901 = vunpack.c.l.b16 %v2606
    %v2902 = vunpack.c.l.b16 %v2607
    %v2903 = vpack.c.b16 %v2900, %v2899
    %v2904 = vpack.c.b16 %v2902, %v2901
    %v2911 = vunpack.c.l.b16 %v2636
    %v2912 = vunpack.c.l.b16 %v2637
    %v2913 = vunpack.c.l.b16 %v2638
    %v2914 = vunpack.c.l.b16 %v2639
    %v2915 = vpack.c.b16 %v2912, %v2911
    %v2916 = vpack.c.b16 %v2914, %v2913
    %2919 = vmatpush.bf16.xpose.msra.mxu0 0
    %2920 = vmatpush.bf16.xpose.msra.mxu0 0
    %2921 = vmatpush.bf16.xpose.msra.mxu0 0
    %2922 = vmatpush.bf16.xpose.msra.mxu0 0
    %2923 = vmatpush.bf16.xpose.msra.mxu0 0
    %2924 = vmatpush.bf16.xpose.msra.mxu0 0
    %2925 = vmatpush.bf16.xpose.msra.mxu0 %v2916
    %2926 = vmatpush.bf16.xpose.msra.mxu0 %v2915
    %2927 = vmatmul.bf16.gmra.mxu0 %v2903
    %v2928 = vpop.f32.mrf.mxu0
    %v2929 = vadd.f32 0.0, %v2928
    %v2930 = vpop.f32.mrf.mxu0
    %v2931 = vadd.f32 0.0, %v2930
    %2932 = vmatmul.bf16.gmra.mxu0 %v2904
    %v2933 = vpop.f32.mrf.mxu0
    %v2934 = vadd.f32 0.0, %v2933
    %v2935 = vpop.f32.mrf.mxu0
    %v2936 = vadd.f32 0.0, %v2935
    %2937 = vdwg.mxu0
    %v2942 = vunpack.c.l.b16 %v2608
    %v2943 = vunpack.c.l.b16 %v2609
    %v2944 = vunpack.c.l.b16 %v2610
    %v2945 = vunpack.c.l.b16 %v2611
    %v2946 = vpack.c.b16 %v2943, %v2942
    %v2947 = vpack.c.b16 %v2945, %v2944
    %v2954 = vunpack.c.l.b16 %v2640
    %v2955 = vunpack.c.l.b16 %v2641
    %v2956 = vunpack.c.l.b16 %v2642
    %v2957 = vunpack.c.l.b16 %v2643
    %v2958 = vpack.c.b16 %v2955, %v2954
    %v2959 = vpack.c.b16 %v2957, %v2956
    %2962 = vmatpush.bf16.xpose.msra.mxu0 0
    %2963 = vmatpush.bf16.xpose.msra.mxu0 0
    %2964 = vmatpush.bf16.xpose.msra.mxu0 0
    %2965 = vmatpush.bf16.xpose.msra.mxu0 0
    %2966 = vmatpush.bf16.xpose.msra.mxu0 0
    %2967 = vmatpush.bf16.xpose.msra.mxu0 0
    %2968 = vmatpush.bf16.xpose.msra.mxu0 %v2959
    %2969 = vmatpush.bf16.xpose.msra.mxu0 %v2958
    %2970 = vmatmul.bf16.gmra.mxu0 %v2946
    %v2971 = vpop.f32.mrf.mxu0
    %v2972 = vadd.f32 0.0, %v2971
    %v2973 = vpop.f32.mrf.mxu0
    %v2974 = vadd.f32 0.0, %v2973
    %2975 = vmatmul.bf16.gmra.mxu0 %v2947
    %v2976 = vpop.f32.mrf.mxu0
    %v2977 = vadd.f32 0.0, %v2976
    %v2978 = vpop.f32.mrf.mxu0
    %v2979 = vadd.f32 0.0, %v2978
    %2980 = vdwg.mxu0
    %v2985 = vunpack.c.l.b16 %v2612
    %v2986 = vunpack.c.l.b16 %v2613
    %v2987 = vunpack.c.l.b16 %v2614
    %v2988 = vunpack.c.l.b16 %v2615
    %v2989 = vpack.c.b16 %v2986, %v2985
    %v2990 = vpack.c.b16 %v2988, %v2987
    %v2997 = vunpack.c.l.b16 %v2644
    %v2998 = vunpack.c.l.b16 %v2645
    %v2999 = vunpack.c.l.b16 %v2646
    %v3000 = vunpack.c.l.b16 %v2647
    %v3001 = vpack.c.b16 %v2998, %v2997
    %v3002 = vpack.c.b16 %v3000, %v2999
    %3005 = vmatpush.bf16.xpose.msra.mxu0 0
    %3006 = vmatpush.bf16.xpose.msra.mxu0 0
    %3007 = vmatpush.bf16.xpose.msra.mxu0 0
    %3008 = vmatpush.bf16.xpose.msra.mxu0 0
    %3009 = vmatpush.bf16.xpose.msra.mxu0 0
    %3010 = vmatpush.bf16.xpose.msra.mxu0 0
    %3011 = vmatpush.bf16.xpose.msra.mxu0 %v3002
    %3012 = vmatpush.bf16.xpose.msra.mxu0 %v3001
    %3013 = vmatmul.bf16.gmra.mxu0 %v2989
    %v3014 = vpop.f32.mrf.mxu0
    %v3015 = vadd.f32 0.0, %v3014
    %v3016 = vpop.f32.mrf.mxu0
    %v3017 = vadd.f32 0.0, %v3016
    %3018 = vmatmul.bf16.gmra.mxu0 %v2990
    %v3019 = vpop.f32.mrf.mxu0
    %v3020 = vadd.f32 0.0, %v3019
    %v3021 = vpop.f32.mrf.mxu0
    %v3022 = vadd.f32 0.0, %v3021
    %3023 = vdwg.mxu0
    %v3024 = vsel %vm1723, %v2714, -1e+30
    %v3025 = vsel %vm1724, %v2716, -1e+30
    %v3026 = vsel %vm1725, %v2719, -1e+30
    %v3027 = vsel %vm1726, %v2721, -1e+30
    %v3028 = vsel %vm1723, %v2757, -1e+30
    %v3029 = vsel %vm1724, %v2759, -1e+30
    %v3030 = vsel %vm1725, %v2762, -1e+30
    %v3031 = vsel %vm1726, %v2764, -1e+30
    %v3032 = vsel %vm1723, %v2800, -1e+30
    %v3033 = vsel %vm1724, %v2802, -1e+30
    %v3034 = vsel %vm1725, %v2805, -1e+30
    %v3035 = vsel %vm1726, %v2807, -1e+30
    %v3036 = vsel %vm1723, %v2843, -1e+30
    %v3037 = vsel %vm1724, %v2845, -1e+30
    %v3038 = vsel %vm1725, %v2848, -1e+30
    %v3039 = vsel %vm1726, %v2850, -1e+30
    %v3040 = vsel %vm1723, %v2886, -1e+30
    %v3041 = vsel %vm1724, %v2888, -1e+30
    %v3042 = vsel %vm1725, %v2891, -1e+30
    %v3043 = vsel %vm1726, %v2893, -1e+30
    %v3044 = vsel %vm1723, %v2929, -1e+30
    %v3045 = vsel %vm1724, %v2931, -1e+30
    %v3046 = vsel %vm1725, %v2934, -1e+30
    %v3047 = vsel %vm1726, %v2936, -1e+30
    %v3048 = vsel %vm1723, %v2972, -1e+30
    %v3049 = vsel %vm1724, %v2974, -1e+30
    %v3050 = vsel %vm1725, %v2977, -1e+30
    %v3051 = vsel %vm1726, %v2979, -1e+30
    %v3052 = vsel %vm1723, %v3015, -1e+30
    %v3053 = vsel %vm1724, %v3017, -1e+30
    %v3054 = vsel %vm1725, %v3020, -1e+30
    %v3055 = vsel %vm1726, %v3022, -1e+30
    %v3056 = vsel %vm2199, %v3024, -inf
    %3057 = vmax.xlane.f32.xlu0 %v3056
    %v3058 = vpop.xlane.xlu0 %3057
    %v3059 = vsel %vm2199, %v3025, -inf
    %3060 = vmax.xlane.f32.xlu0 %v3059
    %v3061 = vpop.xlane.xlu0 %3060
    %v3062 = vsel %vm2199, %v3026, -inf
    %3063 = vmax.xlane.f32.xlu0 %v3062
    %v3064 = vpop.xlane.xlu0 %3063
    %v3065 = vsel %vm2199, %v3027, -inf
    %3066 = vmax.xlane.f32.xlu0 %v3065
    %v3067 = vpop.xlane.xlu0 %3066
    %v3068 = vsel %vm2199, %v3028, -inf
    %3069 = vmax.xlane.f32.xlu0 %v3068
    %v3070 = vpop.xlane.xlu0 %3069
    %v3071 = vsel %vm2199, %v3029, -inf
    %3072 = vmax.xlane.f32.xlu0 %v3071
    %v3073 = vpop.xlane.xlu0 %3072
    %v3074 = vsel %vm2199, %v3030, -inf
    %3075 = vmax.xlane.f32.xlu0 %v3074
    %v3076 = vpop.xlane.xlu0 %3075
    %v3077 = vsel %vm2199, %v3031, -inf
    %3078 = vmax.xlane.f32.xlu0 %v3077
    %v3079 = vpop.xlane.xlu0 %3078
    %v3080 = vsel %vm2199, %v3032, -inf
    %3081 = vmax.xlane.f32.xlu0 %v3080
    %v3082 = vpop.xlane.xlu0 %3081
    %v3083 = vsel %vm2199, %v3033, -inf
    %3084 = vmax.xlane.f32.xlu0 %v3083
    %v3085 = vpop.xlane.xlu0 %3084
    %v3086 = vsel %vm2199, %v3034, -inf
    %3087 = vmax.xlane.f32.xlu0 %v3086
    %v3088 = vpop.xlane.xlu0 %3087
    %v3089 = vsel %vm2199, %v3035, -inf
    %3090 = vmax.xlane.f32.xlu0 %v3089
    %v3091 = vpop.xlane.xlu0 %3090
    %v3092 = vsel %vm2199, %v3036, -inf
    %3093 = vmax.xlane.f32.xlu0 %v3092
    %v3094 = vpop.xlane.xlu0 %3093
    %v3095 = vsel %vm2199, %v3037, -inf
    %3096 = vmax.xlane.f32.xlu0 %v3095
    %v3097 = vpop.xlane.xlu0 %3096
    %v3098 = vsel %vm2199, %v3038, -inf
    %3099 = vmax.xlane.f32.xlu0 %v3098
    %v3100 = vpop.xlane.xlu0 %3099
    %v3101 = vsel %vm2199, %v3039, -inf
    %3102 = vmax.xlane.f32.xlu0 %v3101
    %v3103 = vpop.xlane.xlu0 %3102
    %v3104 = vsel %vm2199, %v3040, -inf
    %3105 = vmax.xlane.f32.xlu0 %v3104
    %v3106 = vpop.xlane.xlu0 %3105
    %v3107 = vsel %vm2199, %v3041, -inf
    %3108 = vmax.xlane.f32.xlu0 %v3107
    %v3109 = vpop.xlane.xlu0 %3108
    %v3110 = vsel %vm2199, %v3042, -inf
    %3111 = vmax.xlane.f32.xlu0 %v3110
    %v3112 = vpop.xlane.xlu0 %3111
    %v3113 = vsel %vm2199, %v3043, -inf
    %3114 = vmax.xlane.f32.xlu0 %v3113
    %v3115 = vpop.xlane.xlu0 %3114
    %v3116 = vsel %vm2199, %v3044, -inf
    %3117 = vmax.xlane.f32.xlu0 %v3116
    %v3118 = vpop.xlane.xlu0 %3117
    %v3119 = vsel %vm2199, %v3045, -inf
    %3120 = vmax.xlane.f32.xlu0 %v3119
    %v3121 = vpop.xlane.xlu0 %3120
    %v3122 = vsel %vm2199, %v3046, -inf
    %3123 = vmax.xlane.f32.xlu0 %v3122
    %v3124 = vpop.xlane.xlu0 %3123
    %v3125 = vsel %vm2199, %v3047, -inf
    %3126 = vmax.xlane.f32.xlu0 %v3125
    %v3127 = vpop.xlane.xlu0 %3126
    %v3128 = vsel %vm2199, %v3048, -inf
    %3129 = vmax.xlane.f32.xlu0 %v3128
    %v3130 = vpop.xlane.xlu0 %3129
    %v3131 = vsel %vm2199, %v3049, -inf
    %3132 = vmax.xlane.f32.xlu0 %v3131
    %v3133 = vpop.xlane.xlu0 %3132
    %v3134 = vsel %vm2199, %v3050, -inf
    %3135 = vmax.xlane.f32.xlu0 %v3134
    %v3136 = vpop.xlane.xlu0 %3135
    %v3137 = vsel %vm2199, %v3051, -inf
    %3138 = vmax.xlane.f32.xlu0 %v3137
    %v3139 = vpop.xlane.xlu0 %3138
    %v3140 = vsel %vm2199, %v3052, -inf
    %3141 = vmax.xlane.f32.xlu0 %v3140
    %v3142 = vpop.xlane.xlu0 %3141
    %v3143 = vsel %vm2199, %v3053, -inf
    %3144 = vmax.xlane.f32.xlu0 %v3143
    %v3145 = vpop.xlane.xlu0 %3144
    %v3146 = vsel %vm2199, %v3054, -inf
    %3147 = vmax.xlane.f32.xlu0 %v3146
    %v3148 = vpop.xlane.xlu0 %3147
    %v3149 = vsel %vm2199, %v3055, -inf
    %3150 = vmax.xlane.f32.xlu0 %v3149
    %v3151 = vpop.xlane.xlu0 %3150
    %v3152 = vsub.f32 %v3024, %v3058
    %v3153 = vsub.f32 %v3025, %v3061
    %v3154 = vsub.f32 %v3026, %v3064
    %v3155 = vsub.f32 %v3027, %v3067
    %v3156 = vsub.f32 %v3028, %v3070
    %v3157 = vsub.f32 %v3029, %v3073
    %v3158 = vsub.f32 %v3030, %v3076
    %v3159 = vsub.f32 %v3031, %v3079
    %v3160 = vsub.f32 %v3032, %v3082
    %v3161 = vsub.f32 %v3033, %v3085
    %v3162 = vsub.f32 %v3034, %v3088
    %v3163 = vsub.f32 %v3035, %v3091
    %v3164 = vsub.f32 %v3036, %v3094
    %v3165 = vsub.f32 %v3037, %v3097
    %v3166 = vsub.f32 %v3038, %v3100
    %v3167 = vsub.f32 %v3039, %v3103
    %v3168 = vsub.f32 %v3040, %v3106
    %v3169 = vsub.f32 %v3041, %v3109
    %v3170 = vsub.f32 %v3042, %v3112
    %v3171 = vsub.f32 %v3043, %v3115
    %v3172 = vsub.f32 %v3044, %v3118
    %v3173 = vsub.f32 %v3045, %v3121
    %v3174 = vsub.f32 %v3046, %v3124
    %v3175 = vsub.f32 %v3047, %v3127
    %v3176 = vsub.f32 %v3048, %v3130
    %v3177 = vsub.f32 %v3049, %v3133
    %v3178 = vsub.f32 %v3050, %v3136
    %v3179 = vsub.f32 %v3051, %v3139
    %v3180 = vsub.f32 %v3052, %v3142
    %v3181 = vsub.f32 %v3053, %v3145
    %v3182 = vsub.f32 %v3054, %v3148
    %v3183 = vsub.f32 %v3055, %v3151
    %v3184 = vmul.f32 %v3152, 1.442695
    %v3185 = vpow.pop %v3184
    %v3186 = vmul.f32 %v3153, 1.442695
    %v3187 = vpow.pop %v3186
    %v3188 = vmul.f32 %v3154, 1.442695
    %v3189 = vpow.pop %v3188
    %v3190 = vmul.f32 %v3155, 1.442695
    %v3191 = vpow.pop %v3190
    %v3192 = vmul.f32 %v3156, 1.442695
    %v3193 = vpow.pop %v3192
    %v3194 = vmul.f32 %v3157, 1.442695
    %v3195 = vpow.pop %v3194
    %v3196 = vmul.f32 %v3158, 1.442695
    %v3197 = vpow.pop %v3196
    %v3198 = vmul.f32 %v3159, 1.442695
    %v3199 = vpow.pop %v3198
    %v3200 = vmul.f32 %v3160, 1.442695
    %v3201 = vpow.pop %v3200
    %v3202 = vmul.f32 %v3161, 1.442695
    %v3203 = vpow.pop %v3202
    %v3204 = vmul.f32 %v3162, 1.442695
    %v3205 = vpow.pop %v3204
    %v3206 = vmul.f32 %v3163, 1.442695
    %v3207 = vpow.pop %v3206
    %v3208 = vmul.f32 %v3164, 1.442695
    %v3209 = vpow.pop %v3208
    %v3210 = vmul.f32 %v3165, 1.442695
    %v3211 = vpow.pop %v3210
    %v3212 = vmul.f32 %v3166, 1.442695
    %v3213 = vpow.pop %v3212
    %v3214 = vmul.f32 %v3167, 1.442695
    %v3215 = vpow.pop %v3214
    %v3216 = vmul.f32 %v3168, 1.442695
    %v3217 = vpow.pop %v3216
    %v3218 = vmul.f32 %v3169, 1.442695
    %v3219 = vpow.pop %v3218
    %v3220 = vmul.f32 %v3170, 1.442695
    %v3221 = vpow.pop %v3220
    %v3222 = vmul.f32 %v3171, 1.442695
    %v3223 = vpow.pop %v3222
    %v3224 = vmul.f32 %v3172, 1.442695
    %v3225 = vpow.pop %v3224
    %v3226 = vmul.f32 %v3173, 1.442695
    %v3227 = vpow.pop %v3226
    %v3228 = vmul.f32 %v3174, 1.442695
    %v3229 = vpow.pop %v3228
    %v3230 = vmul.f32 %v3175, 1.442695
    %v3231 = vpow.pop %v3230
    %v3232 = vmul.f32 %v3176, 1.442695
    %v3233 = vpow.pop %v3232
    %v3234 = vmul.f32 %v3177, 1.442695
    %v3235 = vpow.pop %v3234
    %v3236 = vmul.f32 %v3178, 1.442695
    %v3237 = vpow.pop %v3236
    %v3238 = vmul.f32 %v3179, 1.442695
    %v3239 = vpow.pop %v3238
    %v3240 = vmul.f32 %v3180, 1.442695
    %v3241 = vpow.pop %v3240
    %v3242 = vmul.f32 %v3181, 1.442695
    %v3243 = vpow.pop %v3242
    %v3244 = vmul.f32 %v3182, 1.442695
    %v3245 = vpow.pop %v3244
    %v3246 = vmul.f32 %v3183, 1.442695
    %v3247 = vpow.pop %v3246
    %v3248 = vsel %vm2199, %v3185, 0.0
    %3249 = vadd.xlane.f32.xlu0 %v3248
    %v3250 = vpop.xlane.xlu0 %3249
    %v3251 = vsel %vm2199, %v3187, 0.0
    %3252 = vadd.xlane.f32.xlu0 %v3251
    %v3253 = vpop.xlane.xlu0 %3252
    %v3254 = vsel %vm2199, %v3189, 0.0
    %3255 = vadd.xlane.f32.xlu0 %v3254
    %v3256 = vpop.xlane.xlu0 %3255
    %v3257 = vsel %vm2199, %v3191, 0.0
    %3258 = vadd.xlane.f32.xlu0 %v3257
    %v3259 = vpop.xlane.xlu0 %3258
    %v3260 = vsel %vm2199, %v3193, 0.0
    %3261 = vadd.xlane.f32.xlu0 %v3260
    %v3262 = vpop.xlane.xlu0 %3261
    %v3263 = vsel %vm2199, %v3195, 0.0
    %3264 = vadd.xlane.f32.xlu0 %v3263
    %v3265 = vpop.xlane.xlu0 %3264
    %v3266 = vsel %vm2199, %v3197, 0.0
    %3267 = vadd.xlane.f32.xlu0 %v3266
    %v3268 = vpop.xlane.xlu0 %3267
    %v3269 = vsel %vm2199, %v3199, 0.0
    %3270 = vadd.xlane.f32.xlu0 %v3269
    %v3271 = vpop.xlane.xlu0 %3270
    %v3272 = vsel %vm2199, %v3201, 0.0
    %3273 = vadd.xlane.f32.xlu0 %v3272
    %v3274 = vpop.xlane.xlu0 %3273
    %v3275 = vsel %vm2199, %v3203, 0.0
    %3276 = vadd.xlane.f32.xlu0 %v3275
    %v3277 = vpop.xlane.xlu0 %3276
    %v3278 = vsel %vm2199, %v3205, 0.0
    %3279 = vadd.xlane.f32.xlu0 %v3278
    %v3280 = vpop.xlane.xlu0 %3279
    %v3281 = vsel %vm2199, %v3207, 0.0
    %3282 = vadd.xlane.f32.xlu0 %v3281
    %v3283 = vpop.xlane.xlu0 %3282
    %v3284 = vsel %vm2199, %v3209, 0.0
    %3285 = vadd.xlane.f32.xlu0 %v3284
    %v3286 = vpop.xlane.xlu0 %3285
    %v3287 = vsel %vm2199, %v3211, 0.0
    %3288 = vadd.xlane.f32.xlu0 %v3287
    %v3289 = vpop.xlane.xlu0 %3288
    %v3290 = vsel %vm2199, %v3213, 0.0
    %3291 = vadd.xlane.f32.xlu0 %v3290
    %v3292 = vpop.xlane.xlu0 %3291
    %v3293 = vsel %vm2199, %v3215, 0.0
    %3294 = vadd.xlane.f32.xlu0 %v3293
    %v3295 = vpop.xlane.xlu0 %3294
    %v3296 = vsel %vm2199, %v3217, 0.0
    %3297 = vadd.xlane.f32.xlu0 %v3296
    %v3298 = vpop.xlane.xlu0 %3297
    %v3299 = vsel %vm2199, %v3219, 0.0
    %3300 = vadd.xlane.f32.xlu0 %v3299
    %v3301 = vpop.xlane.xlu0 %3300
    %v3302 = vsel %vm2199, %v3221, 0.0
    %3303 = vadd.xlane.f32.xlu0 %v3302
    %v3304 = vpop.xlane.xlu0 %3303
    %v3305 = vsel %vm2199, %v3223, 0.0
    %3306 = vadd.xlane.f32.xlu0 %v3305
    %v3307 = vpop.xlane.xlu0 %3306
    %v3308 = vsel %vm2199, %v3225, 0.0
    %3309 = vadd.xlane.f32.xlu0 %v3308
    %v3310 = vpop.xlane.xlu0 %3309
    %v3311 = vsel %vm2199, %v3227, 0.0
    %3312 = vadd.xlane.f32.xlu0 %v3311
    %v3313 = vpop.xlane.xlu0 %3312
    %v3314 = vsel %vm2199, %v3229, 0.0
    %3315 = vadd.xlane.f32.xlu0 %v3314
    %v3316 = vpop.xlane.xlu0 %3315
    %v3317 = vsel %vm2199, %v3231, 0.0
    %3318 = vadd.xlane.f32.xlu0 %v3317
    %v3319 = vpop.xlane.xlu0 %3318
    %v3320 = vsel %vm2199, %v3233, 0.0
    %3321 = vadd.xlane.f32.xlu0 %v3320
    %v3322 = vpop.xlane.xlu0 %3321
    %v3323 = vsel %vm2199, %v3235, 0.0
    %3324 = vadd.xlane.f32.xlu0 %v3323
    %v3325 = vpop.xlane.xlu0 %3324
    %v3326 = vsel %vm2199, %v3237, 0.0
    %3327 = vadd.xlane.f32.xlu0 %v3326
    %v3328 = vpop.xlane.xlu0 %3327
    %v3329 = vsel %vm2199, %v3239, 0.0
    %3330 = vadd.xlane.f32.xlu0 %v3329
    %v3331 = vpop.xlane.xlu0 %3330
    %v3332 = vsel %vm2199, %v3241, 0.0
    %3333 = vadd.xlane.f32.xlu0 %v3332
    %v3334 = vpop.xlane.xlu0 %3333
    %v3335 = vsel %vm2199, %v3243, 0.0
    %3336 = vadd.xlane.f32.xlu0 %v3335
    %v3337 = vpop.xlane.xlu0 %3336
    %v3338 = vsel %vm2199, %v3245, 0.0
    %3339 = vadd.xlane.f32.xlu0 %v3338
    %v3340 = vpop.xlane.xlu0 %3339
    %v3341 = vsel %vm2199, %v3247, 0.0
    %3342 = vadd.xlane.f32.xlu0 %v3341
    %v3343 = vpop.xlane.xlu0 %3342
    %v3344 = vrcp.pop %v3250
    %v3345 = vrcp.pop %v3253
    %v3346 = vrcp.pop %v3256
    %v3347 = vrcp.pop %v3259
    %v3348 = vrcp.pop %v3262
    %v3349 = vrcp.pop %v3265
    %v3350 = vrcp.pop %v3268
    %v3351 = vrcp.pop %v3271
    %v3352 = vrcp.pop %v3274
    %v3353 = vrcp.pop %v3277
    %v3354 = vrcp.pop %v3280
    %v3355 = vrcp.pop %v3283
    %v3356 = vrcp.pop %v3286
    %v3357 = vrcp.pop %v3289
    %v3358 = vrcp.pop %v3292
    %v3359 = vrcp.pop %v3295
    %v3360 = vrcp.pop %v3298
    %v3361 = vrcp.pop %v3301
    %v3362 = vrcp.pop %v3304
    %v3363 = vrcp.pop %v3307
    %v3364 = vrcp.pop %v3310
    %v3365 = vrcp.pop %v3313
    %v3366 = vrcp.pop %v3316
    %v3367 = vrcp.pop %v3319
    %v3368 = vrcp.pop %v3322
    %v3369 = vrcp.pop %v3325
    %v3370 = vrcp.pop %v3328
    %v3371 = vrcp.pop %v3331
    %v3372 = vrcp.pop %v3334
    %v3373 = vrcp.pop %v3337
    %v3374 = vrcp.pop %v3340
    %v3375 = vrcp.pop %v3343
    %v3376 = vmul.f32 %v3185, %v3344
    %v3377 = vmul.f32 %v3187, %v3345
    %v3378 = vmul.f32 %v3189, %v3346
    %v3379 = vmul.f32 %v3191, %v3347
    %v3380 = vmul.f32 %v3193, %v3348
    %v3381 = vmul.f32 %v3195, %v3349
    %v3382 = vmul.f32 %v3197, %v3350
    %v3383 = vmul.f32 %v3199, %v3351
    %v3384 = vmul.f32 %v3201, %v3352
    %v3385 = vmul.f32 %v3203, %v3353
    %v3386 = vmul.f32 %v3205, %v3354
    %v3387 = vmul.f32 %v3207, %v3355
    %v3388 = vmul.f32 %v3209, %v3356
    %v3389 = vmul.f32 %v3211, %v3357
    %v3390 = vmul.f32 %v3213, %v3358
    %v3391 = vmul.f32 %v3215, %v3359
    %v3392 = vmul.f32 %v3217, %v3360
    %v3393 = vmul.f32 %v3219, %v3361
    %v3394 = vmul.f32 %v3221, %v3362
    %v3395 = vmul.f32 %v3223, %v3363
    %v3396 = vmul.f32 %v3225, %v3364
    %v3397 = vmul.f32 %v3227, %v3365
    %v3398 = vmul.f32 %v3229, %v3366
    %v3399 = vmul.f32 %v3231, %v3367
    %v3400 = vmul.f32 %v3233, %v3368
    %v3401 = vmul.f32 %v3235, %v3369
    %v3402 = vmul.f32 %v3237, %v3370
    %v3403 = vmul.f32 %v3239, %v3371
    %v3404 = vmul.f32 %v3241, %v3372
    %v3405 = vmul.f32 %v3243, %v3373
    %v3406 = vmul.f32 %v3245, %v3374
    %v3407 = vmul.f32 %v3247, %v3375
    %v3408 = vpack.c.bf16 %v3376, %v3376
    %v3409 = vpack.c.bf16 %v3377, %v3377
    %v3410 = vpack.c.bf16 %v3378, %v3378
    %v3411 = vpack.c.bf16 %v3379, %v3379
    %v3412 = vpack.c.bf16 %v3380, %v3380
    %v3413 = vpack.c.bf16 %v3381, %v3381
    %v3414 = vpack.c.bf16 %v3382, %v3382
    %v3415 = vpack.c.bf16 %v3383, %v3383
    %v3416 = vpack.c.bf16 %v3384, %v3384
    %v3417 = vpack.c.bf16 %v3385, %v3385
    %v3418 = vpack.c.bf16 %v3386, %v3386
    %v3419 = vpack.c.bf16 %v3387, %v3387
    %v3420 = vpack.c.bf16 %v3388, %v3388
    %v3421 = vpack.c.bf16 %v3389, %v3389
    %v3422 = vpack.c.bf16 %v3390, %v3390
    %v3423 = vpack.c.bf16 %v3391, %v3391
    %v3424 = vpack.c.bf16 %v3392, %v3392
    %v3425 = vpack.c.bf16 %v3393, %v3393
    %v3426 = vpack.c.bf16 %v3394, %v3394
    %v3427 = vpack.c.bf16 %v3395, %v3395
    %v3428 = vpack.c.bf16 %v3396, %v3396
    %v3429 = vpack.c.bf16 %v3397, %v3397
    %v3430 = vpack.c.bf16 %v3398, %v3398
    %v3431 = vpack.c.bf16 %v3399, %v3399
    %v3432 = vpack.c.bf16 %v3400, %v3400
    %v3433 = vpack.c.bf16 %v3401, %v3401
    %v3434 = vpack.c.bf16 %v3402, %v3402
    %v3435 = vpack.c.bf16 %v3403, %v3403
    %v3436 = vpack.c.bf16 %v3404, %v3404
    %v3437 = vpack.c.bf16 %v3405, %v3405
    %v3438 = vpack.c.bf16 %v3406, %v3406
    %v3439 = vpack.c.bf16 %v3407, %v3407
    %v3444 = vunpack.c.l.b16 %v3408
    %v3445 = vunpack.c.l.b16 %v3409
    %v3446 = vunpack.c.l.b16 %v3410
    %v3447 = vunpack.c.l.b16 %v3411
    %v3448 = vpack.c.b16 %v3445, %v3444
    %v3449 = vpack.c.b16 %v3447, %v3446
    %v3454 = vunpack.c.l.b16 %v2648
    %v3455 = vunpack.c.l.b16 %v2649
    %v3456 = vunpack.c.l.b16 %v2650
    %v3457 = vunpack.c.l.b16 %v2651
    %v3458 = vpack.c.b16 %v3455, %v3454
    %v3459 = vpack.c.b16 %v3457, %v3456
    %v3463 = vsel %vm2199, %v3448, 0
    %v3466 = vsel %vm2199, %v3449, 0
    %3468 = vmatpush.bf16.msra.mxu0 0
    %3469 = vmatpush.bf16.msra.mxu0 0
    %3470 = vmatpush.bf16.msra.mxu0 0
    %3471 = vmatpush.bf16.msra.mxu0 0
    %3472 = vmatpush.bf16.msra.mxu0 0
    %3473 = vmatpush.bf16.msra.mxu0 0
    %3474 = vmatpush.bf16.msra.mxu0 %v3459
    %3475 = vmatpush.bf16.msra.mxu0 %v3458
    %3476 = vmatmul.bf16.gmra.mxu0 %v3463
    %v3477 = vpop.f32.mrf.mxu0
    %v3478 = vadd.f32 0.0, %v3477
    %v3479 = vpop.f32.mrf.mxu0
    %v3480 = vadd.f32 0.0, %v3479
    %3481 = vmatmul.bf16.gmra.mxu0 %v3466
    %v3482 = vpop.f32.mrf.mxu0
    %v3483 = vadd.f32 0.0, %v3482
    %v3484 = vpop.f32.mrf.mxu0
    %v3485 = vadd.f32 0.0, %v3484
    %3486 = vdwg.mxu0
    %v3491 = vunpack.c.l.b16 %v3412
    %v3492 = vunpack.c.l.b16 %v3413
    %v3493 = vunpack.c.l.b16 %v3414
    %v3494 = vunpack.c.l.b16 %v3415
    %v3495 = vpack.c.b16 %v3492, %v3491
    %v3496 = vpack.c.b16 %v3494, %v3493
    %v3501 = vunpack.c.l.b16 %v2652
    %v3502 = vunpack.c.l.b16 %v2653
    %v3503 = vunpack.c.l.b16 %v2654
    %v3504 = vunpack.c.l.b16 %v2655
    %v3505 = vpack.c.b16 %v3502, %v3501
    %v3506 = vpack.c.b16 %v3504, %v3503
    %v3510 = vsel %vm2199, %v3495, 0
    %v3513 = vsel %vm2199, %v3496, 0
    %3515 = vmatpush.bf16.msra.mxu0 0
    %3516 = vmatpush.bf16.msra.mxu0 0
    %3517 = vmatpush.bf16.msra.mxu0 0
    %3518 = vmatpush.bf16.msra.mxu0 0
    %3519 = vmatpush.bf16.msra.mxu0 0
    %3520 = vmatpush.bf16.msra.mxu0 0
    %3521 = vmatpush.bf16.msra.mxu0 %v3506
    %3522 = vmatpush.bf16.msra.mxu0 %v3505
    %3523 = vmatmul.bf16.gmra.mxu0 %v3510
    %v3524 = vpop.f32.mrf.mxu0
    %v3525 = vadd.f32 0.0, %v3524
    %v3526 = vpop.f32.mrf.mxu0
    %v3527 = vadd.f32 0.0, %v3526
    %3528 = vmatmul.bf16.gmra.mxu0 %v3513
    %v3529 = vpop.f32.mrf.mxu0
    %v3530 = vadd.f32 0.0, %v3529
    %v3531 = vpop.f32.mrf.mxu0
    %v3532 = vadd.f32 0.0, %v3531
    %3533 = vdwg.mxu0
    %v3538 = vunpack.c.l.b16 %v3416
    %v3539 = vunpack.c.l.b16 %v3417
    %v3540 = vunpack.c.l.b16 %v3418
    %v3541 = vunpack.c.l.b16 %v3419
    %v3542 = vpack.c.b16 %v3539, %v3538
    %v3543 = vpack.c.b16 %v3541, %v3540
    %v3548 = vunpack.c.l.b16 %v2656
    %v3549 = vunpack.c.l.b16 %v2657
    %v3550 = vunpack.c.l.b16 %v2658
    %v3551 = vunpack.c.l.b16 %v2659
    %v3552 = vpack.c.b16 %v3549, %v3548
    %v3553 = vpack.c.b16 %v3551, %v3550
    %v3557 = vsel %vm2199, %v3542, 0
    %v3560 = vsel %vm2199, %v3543, 0
    %3562 = vmatpush.bf16.msra.mxu0 0
    %3563 = vmatpush.bf16.msra.mxu0 0
    %3564 = vmatpush.bf16.msra.mxu0 0
    %3565 = vmatpush.bf16.msra.mxu0 0
    %3566 = vmatpush.bf16.msra.mxu0 0
    %3567 = vmatpush.bf16.msra.mxu0 0
    %3568 = vmatpush.bf16.msra.mxu0 %v3553
    %3569 = vmatpush.bf16.msra.mxu0 %v3552
    %3570 = vmatmul.bf16.gmra.mxu0 %v3557
    %v3571 = vpop.f32.mrf.mxu0
    %v3572 = vadd.f32 0.0, %v3571
    %v3573 = vpop.f32.mrf.mxu0
    %v3574 = vadd.f32 0.0, %v3573
    %3575 = vmatmul.bf16.gmra.mxu0 %v3560
    %v3576 = vpop.f32.mrf.mxu0
    %v3577 = vadd.f32 0.0, %v3576
    %v3578 = vpop.f32.mrf.mxu0
    %v3579 = vadd.f32 0.0, %v3578
    %3580 = vdwg.mxu0
    %v3585 = vunpack.c.l.b16 %v3420
    %v3586 = vunpack.c.l.b16 %v3421
    %v3587 = vunpack.c.l.b16 %v3422
    %v3588 = vunpack.c.l.b16 %v3423
    %v3589 = vpack.c.b16 %v3586, %v3585
    %v3590 = vpack.c.b16 %v3588, %v3587
    %v3595 = vunpack.c.l.b16 %v2660
    %v3596 = vunpack.c.l.b16 %v2661
    %v3597 = vunpack.c.l.b16 %v2662
    %v3598 = vunpack.c.l.b16 %v2663
    %v3599 = vpack.c.b16 %v3596, %v3595
    %v3600 = vpack.c.b16 %v3598, %v3597
    %v3604 = vsel %vm2199, %v3589, 0
    %v3607 = vsel %vm2199, %v3590, 0
    %3609 = vmatpush.bf16.msra.mxu0 0
    %3610 = vmatpush.bf16.msra.mxu0 0
    %3611 = vmatpush.bf16.msra.mxu0 0
    %3612 = vmatpush.bf16.msra.mxu0 0
    %3613 = vmatpush.bf16.msra.mxu0 0
    %3614 = vmatpush.bf16.msra.mxu0 0
    %3615 = vmatpush.bf16.msra.mxu0 %v3600
    %3616 = vmatpush.bf16.msra.mxu0 %v3599
    %3617 = vmatmul.bf16.gmra.mxu0 %v3604
    %v3618 = vpop.f32.mrf.mxu0
    %v3619 = vadd.f32 0.0, %v3618
    %v3620 = vpop.f32.mrf.mxu0
    %v3621 = vadd.f32 0.0, %v3620
    %3622 = vmatmul.bf16.gmra.mxu0 %v3607
    %v3623 = vpop.f32.mrf.mxu0
    %v3624 = vadd.f32 0.0, %v3623
    %v3625 = vpop.f32.mrf.mxu0
    %v3626 = vadd.f32 0.0, %v3625
    %3627 = vdwg.mxu0
    %v3632 = vunpack.c.l.b16 %v3424
    %v3633 = vunpack.c.l.b16 %v3425
    %v3634 = vunpack.c.l.b16 %v3426
    %v3635 = vunpack.c.l.b16 %v3427
    %v3636 = vpack.c.b16 %v3633, %v3632
    %v3637 = vpack.c.b16 %v3635, %v3634
    %v3642 = vunpack.c.l.b16 %v2664
    %v3643 = vunpack.c.l.b16 %v2665
    %v3644 = vunpack.c.l.b16 %v2666
    %v3645 = vunpack.c.l.b16 %v2667
    %v3646 = vpack.c.b16 %v3643, %v3642
    %v3647 = vpack.c.b16 %v3645, %v3644
    %v3651 = vsel %vm2199, %v3636, 0
    %v3654 = vsel %vm2199, %v3637, 0
    %3656 = vmatpush.bf16.msra.mxu0 0
    %3657 = vmatpush.bf16.msra.mxu0 0
    %3658 = vmatpush.bf16.msra.mxu0 0
    %3659 = vmatpush.bf16.msra.mxu0 0
    %3660 = vmatpush.bf16.msra.mxu0 0
    %3661 = vmatpush.bf16.msra.mxu0 0
    %3662 = vmatpush.bf16.msra.mxu0 %v3647
    %3663 = vmatpush.bf16.msra.mxu0 %v3646
    %3664 = vmatmul.bf16.gmra.mxu0 %v3651
    %v3665 = vpop.f32.mrf.mxu0
    %v3666 = vadd.f32 0.0, %v3665
    %v3667 = vpop.f32.mrf.mxu0
    %v3668 = vadd.f32 0.0, %v3667
    %3669 = vmatmul.bf16.gmra.mxu0 %v3654
    %v3670 = vpop.f32.mrf.mxu0
    %v3671 = vadd.f32 0.0, %v3670
    %v3672 = vpop.f32.mrf.mxu0
    %v3673 = vadd.f32 0.0, %v3672
    %3674 = vdwg.mxu0
    %v3679 = vunpack.c.l.b16 %v3428
    %v3680 = vunpack.c.l.b16 %v3429
    %v3681 = vunpack.c.l.b16 %v3430
    %v3682 = vunpack.c.l.b16 %v3431
    %v3683 = vpack.c.b16 %v3680, %v3679
    %v3684 = vpack.c.b16 %v3682, %v3681
    %v3689 = vunpack.c.l.b16 %v2668
    %v3690 = vunpack.c.l.b16 %v2669
    %v3691 = vunpack.c.l.b16 %v2670
    %v3692 = vunpack.c.l.b16 %v2671
    %v3693 = vpack.c.b16 %v3690, %v3689
    %v3694 = vpack.c.b16 %v3692, %v3691
    %v3698 = vsel %vm2199, %v3683, 0
    %v3701 = vsel %vm2199, %v3684, 0
    %3703 = vmatpush.bf16.msra.mxu0 0
    %3704 = vmatpush.bf16.msra.mxu0 0
    %3705 = vmatpush.bf16.msra.mxu0 0
    %3706 = vmatpush.bf16.msra.mxu0 0
    %3707 = vmatpush.bf16.msra.mxu0 0
    %3708 = vmatpush.bf16.msra.mxu0 0
    %3709 = vmatpush.bf16.msra.mxu0 %v3694
    %3710 = vmatpush.bf16.msra.mxu0 %v3693
    %3711 = vmatmul.bf16.gmra.mxu0 %v3698
    %v3712 = vpop.f32.mrf.mxu0
    %v3713 = vadd.f32 0.0, %v3712
    %v3714 = vpop.f32.mrf.mxu0
    %v3715 = vadd.f32 0.0, %v3714
    %3716 = vmatmul.bf16.gmra.mxu0 %v3701
    %v3717 = vpop.f32.mrf.mxu0
    %v3718 = vadd.f32 0.0, %v3717
    %v3719 = vpop.f32.mrf.mxu0
    %v3720 = vadd.f32 0.0, %v3719
    %3721 = vdwg.mxu0
    %v3726 = vunpack.c.l.b16 %v3432
    %v3727 = vunpack.c.l.b16 %v3433
    %v3728 = vunpack.c.l.b16 %v3434
    %v3729 = vunpack.c.l.b16 %v3435
    %v3730 = vpack.c.b16 %v3727, %v3726
    %v3731 = vpack.c.b16 %v3729, %v3728
    %v3736 = vunpack.c.l.b16 %v2672
    %v3737 = vunpack.c.l.b16 %v2673
    %v3738 = vunpack.c.l.b16 %v2674
    %v3739 = vunpack.c.l.b16 %v2675
    %v3740 = vpack.c.b16 %v3737, %v3736
    %v3741 = vpack.c.b16 %v3739, %v3738
    %v3745 = vsel %vm2199, %v3730, 0
    %v3748 = vsel %vm2199, %v3731, 0
    %3750 = vmatpush.bf16.msra.mxu0 0
    %3751 = vmatpush.bf16.msra.mxu0 0
    %3752 = vmatpush.bf16.msra.mxu0 0
    %3753 = vmatpush.bf16.msra.mxu0 0
    %3754 = vmatpush.bf16.msra.mxu0 0
    %3755 = vmatpush.bf16.msra.mxu0 0
    %3756 = vmatpush.bf16.msra.mxu0 %v3741
    %3757 = vmatpush.bf16.msra.mxu0 %v3740
    %3758 = vmatmul.bf16.gmra.mxu0 %v3745
    %v3759 = vpop.f32.mrf.mxu0
    %v3760 = vadd.f32 0.0, %v3759
    %v3761 = vpop.f32.mrf.mxu0
    %v3762 = vadd.f32 0.0, %v3761
    %3763 = vmatmul.bf16.gmra.mxu0 %v3748
    %v3764 = vpop.f32.mrf.mxu0
    %v3765 = vadd.f32 0.0, %v3764
    %v3766 = vpop.f32.mrf.mxu0
    %v3767 = vadd.f32 0.0, %v3766
    %3768 = vdwg.mxu0
    %v3773 = vunpack.c.l.b16 %v3436
    %v3774 = vunpack.c.l.b16 %v3437
    %v3775 = vunpack.c.l.b16 %v3438
    %v3776 = vunpack.c.l.b16 %v3439
    %v3777 = vpack.c.b16 %v3774, %v3773
    %v3778 = vpack.c.b16 %v3776, %v3775
    %v3783 = vunpack.c.l.b16 %v2676
    %v3784 = vunpack.c.l.b16 %v2677
    %v3785 = vunpack.c.l.b16 %v2678
    %v3786 = vunpack.c.l.b16 %v2679
    %v3787 = vpack.c.b16 %v3784, %v3783
    %v3788 = vpack.c.b16 %v3786, %v3785
    %v3792 = vsel %vm2199, %v3777, 0
    %v3795 = vsel %vm2199, %v3778, 0
    %3797 = vmatpush.bf16.msra.mxu0 0
    %3798 = vmatpush.bf16.msra.mxu0 0
    %3799 = vmatpush.bf16.msra.mxu0 0
    %3800 = vmatpush.bf16.msra.mxu0 0
    %3801 = vmatpush.bf16.msra.mxu0 0
    %3802 = vmatpush.bf16.msra.mxu0 0
    %3803 = vmatpush.bf16.msra.mxu0 %v3788
    %3804 = vmatpush.bf16.msra.mxu0 %v3787
    %3805 = vmatmul.bf16.gmra.mxu0 %v3792
    %v3806 = vpop.f32.mrf.mxu0
    %v3807 = vadd.f32 0.0, %v3806
    %v3808 = vpop.f32.mrf.mxu0
    %v3809 = vadd.f32 0.0, %v3808
    %3810 = vmatmul.bf16.gmra.mxu0 %v3795
    %v3811 = vpop.f32.mrf.mxu0
    %v3812 = vadd.f32 0.0, %v3811
    %v3813 = vpop.f32.mrf.mxu0
    %v3814 = vadd.f32 0.0, %v3813
    %3815 = vdwg.mxu0
    %v3820 = vunpack.c.l.b16 %v2552
    %v3821 = vunpack.c.l.b16 %v2553
    %v3822 = vunpack.c.l.b16 %v2554
    %v3823 = vunpack.c.l.b16 %v2555
    %v3824 = vpack.c.b16 %v3821, %v3820
    %v3825 = vpack.c.b16 %v3823, %v3822
    %v3830 = vunpack.c.l.b16 %v1791
    %v3831 = vunpack.c.l.b16 %v1792
    %v3832 = vunpack.c.l.b16 %v1793
    %v3833 = vunpack.c.l.b16 %v1794
    %v3834 = vpack.c.b16 %v3831, %v3830
    %v3835 = vpack.c.b16 %v3833, %v3832
    %v3839 = vsel %vm2199, %v3824, 0
    %v3842 = vsel %vm2199, %v3825, 0
    %3844 = vmatpush.bf16.msra.mxu0 0
    %3845 = vmatpush.bf16.msra.mxu0 0
    %3846 = vmatpush.bf16.msra.mxu0 0
    %3847 = vmatpush.bf16.msra.mxu0 0
    %3848 = vmatpush.bf16.msra.mxu0 0
    %3849 = vmatpush.bf16.msra.mxu0 0
    %3850 = vmatpush.bf16.msra.mxu0 %v3835
    %3851 = vmatpush.bf16.msra.mxu0 %v3834
    %3852 = vmatmul.bf16.gmra.mxu0 %v3839
    %v3853 = vpop.f32.mrf.mxu0
    %v3854 = vadd.f32 %v3478, %v3853
    %v3855 = vpop.f32.mrf.mxu0
    %v3856 = vadd.f32 %v3480, %v3855
    %3857 = vmatmul.bf16.gmra.mxu0 %v3842
    %v3858 = vpop.f32.mrf.mxu0
    %v3859 = vadd.f32 %v3483, %v3858
    %v3860 = vpop.f32.mrf.mxu0
    %v3861 = vadd.f32 %v3485, %v3860
    %3862 = vdwg.mxu0
    %v3867 = vunpack.c.l.b16 %v2556
    %v3868 = vunpack.c.l.b16 %v2557
    %v3869 = vunpack.c.l.b16 %v2558
    %v3870 = vunpack.c.l.b16 %v2559
    %v3871 = vpack.c.b16 %v3868, %v3867
    %v3872 = vpack.c.b16 %v3870, %v3869
    %v3877 = vunpack.c.l.b16 %v1795
    %v3878 = vunpack.c.l.b16 %v1796
    %v3879 = vunpack.c.l.b16 %v1797
    %v3880 = vunpack.c.l.b16 %v1798
    %v3881 = vpack.c.b16 %v3878, %v3877
    %v3882 = vpack.c.b16 %v3880, %v3879
    %v3886 = vsel %vm2199, %v3871, 0
    %v3889 = vsel %vm2199, %v3872, 0
    %3891 = vmatpush.bf16.msra.mxu0 0
    %3892 = vmatpush.bf16.msra.mxu0 0
    %3893 = vmatpush.bf16.msra.mxu0 0
    %3894 = vmatpush.bf16.msra.mxu0 0
    %3895 = vmatpush.bf16.msra.mxu0 0
    %3896 = vmatpush.bf16.msra.mxu0 0
    %3897 = vmatpush.bf16.msra.mxu0 %v3882
    %3898 = vmatpush.bf16.msra.mxu0 %v3881
    %3899 = vmatmul.bf16.gmra.mxu0 %v3886
    %v3900 = vpop.f32.mrf.mxu0
    %v3901 = vadd.f32 %v3525, %v3900
    %v3902 = vpop.f32.mrf.mxu0
    %v3903 = vadd.f32 %v3527, %v3902
    %3904 = vmatmul.bf16.gmra.mxu0 %v3889
    %v3905 = vpop.f32.mrf.mxu0
    %v3906 = vadd.f32 %v3530, %v3905
    %v3907 = vpop.f32.mrf.mxu0
    %v3908 = vadd.f32 %v3532, %v3907
    %3909 = vdwg.mxu0
    %v3914 = vunpack.c.l.b16 %v2560
    %v3915 = vunpack.c.l.b16 %v2561
    %v3916 = vunpack.c.l.b16 %v2562
    %v3917 = vunpack.c.l.b16 %v2563
    %v3918 = vpack.c.b16 %v3915, %v3914
    %v3919 = vpack.c.b16 %v3917, %v3916
    %v3924 = vunpack.c.l.b16 %v1799
    %v3925 = vunpack.c.l.b16 %v1800
    %v3926 = vunpack.c.l.b16 %v1801
    %v3927 = vunpack.c.l.b16 %v1802
    %v3928 = vpack.c.b16 %v3925, %v3924
    %v3929 = vpack.c.b16 %v3927, %v3926
    %v3933 = vsel %vm2199, %v3918, 0
    %v3936 = vsel %vm2199, %v3919, 0
    %3938 = vmatpush.bf16.msra.mxu0 0
    %3939 = vmatpush.bf16.msra.mxu0 0
    %3940 = vmatpush.bf16.msra.mxu0 0
    %3941 = vmatpush.bf16.msra.mxu0 0
    %3942 = vmatpush.bf16.msra.mxu0 0
    %3943 = vmatpush.bf16.msra.mxu0 0
    %3944 = vmatpush.bf16.msra.mxu0 %v3929
    %3945 = vmatpush.bf16.msra.mxu0 %v3928
    %3946 = vmatmul.bf16.gmra.mxu0 %v3933
    %v3947 = vpop.f32.mrf.mxu0
    %v3948 = vadd.f32 %v3572, %v3947
    %v3949 = vpop.f32.mrf.mxu0
    %v3950 = vadd.f32 %v3574, %v3949
    %3951 = vmatmul.bf16.gmra.mxu0 %v3936
    %v3952 = vpop.f32.mrf.mxu0
    %v3953 = vadd.f32 %v3577, %v3952
    %v3954 = vpop.f32.mrf.mxu0
    %v3955 = vadd.f32 %v3579, %v3954
    %3956 = vdwg.mxu0
    %v3961 = vunpack.c.l.b16 %v2564
    %v3962 = vunpack.c.l.b16 %v2565
    %v3963 = vunpack.c.l.b16 %v2566
    %v3964 = vunpack.c.l.b16 %v2567
    %v3965 = vpack.c.b16 %v3962, %v3961
    %v3966 = vpack.c.b16 %v3964, %v3963
    %v3971 = vunpack.c.l.b16 %v1803
    %v3972 = vunpack.c.l.b16 %v1804
    %v3973 = vunpack.c.l.b16 %v1805
    %v3974 = vunpack.c.l.b16 %v1806
    %v3975 = vpack.c.b16 %v3972, %v3971
    %v3976 = vpack.c.b16 %v3974, %v3973
    %v3980 = vsel %vm2199, %v3965, 0
    %v3983 = vsel %vm2199, %v3966, 0
    %3985 = vmatpush.bf16.msra.mxu0 0
    %3986 = vmatpush.bf16.msra.mxu0 0
    %3987 = vmatpush.bf16.msra.mxu0 0
    %3988 = vmatpush.bf16.msra.mxu0 0
    %3989 = vmatpush.bf16.msra.mxu0 0
    %3990 = vmatpush.bf16.msra.mxu0 0
    %3991 = vmatpush.bf16.msra.mxu0 %v3976
    %3992 = vmatpush.bf16.msra.mxu0 %v3975
    %3993 = vmatmul.bf16.gmra.mxu0 %v3980
    %v3994 = vpop.f32.mrf.mxu0
    %v3995 = vadd.f32 %v3619, %v3994
    %v3996 = vpop.f32.mrf.mxu0
    %v3997 = vadd.f32 %v3621, %v3996
    %3998 = vmatmul.bf16.gmra.mxu0 %v3983
    %v3999 = vpop.f32.mrf.mxu0
    %v4000 = vadd.f32 %v3624, %v3999
    %v4001 = vpop.f32.mrf.mxu0
    %v4002 = vadd.f32 %v3626, %v4001
    %4003 = vdwg.mxu0
    %v4008 = vunpack.c.l.b16 %v2568
    %v4009 = vunpack.c.l.b16 %v2569
    %v4010 = vunpack.c.l.b16 %v2570
    %v4011 = vunpack.c.l.b16 %v2571
    %v4012 = vpack.c.b16 %v4009, %v4008
    %v4013 = vpack.c.b16 %v4011, %v4010
    %v4018 = vunpack.c.l.b16 %v1807
    %v4019 = vunpack.c.l.b16 %v1808
    %v4020 = vunpack.c.l.b16 %v1809
    %v4021 = vunpack.c.l.b16 %v1810
    %v4022 = vpack.c.b16 %v4019, %v4018
    %v4023 = vpack.c.b16 %v4021, %v4020
    %v4027 = vsel %vm2199, %v4012, 0
    %v4030 = vsel %vm2199, %v4013, 0
    %4032 = vmatpush.bf16.msra.mxu0 0
    %4033 = vmatpush.bf16.msra.mxu0 0
    %4034 = vmatpush.bf16.msra.mxu0 0
    %4035 = vmatpush.bf16.msra.mxu0 0
    %4036 = vmatpush.bf16.msra.mxu0 0
    %4037 = vmatpush.bf16.msra.mxu0 0
    %4038 = vmatpush.bf16.msra.mxu0 %v4023
    %4039 = vmatpush.bf16.msra.mxu0 %v4022
    %4040 = vmatmul.bf16.gmra.mxu0 %v4027
    %v4041 = vpop.f32.mrf.mxu0
    %v4042 = vadd.f32 %v3666, %v4041
    %v4043 = vpop.f32.mrf.mxu0
    %v4044 = vadd.f32 %v3668, %v4043
    %4045 = vmatmul.bf16.gmra.mxu0 %v4030
    %v4046 = vpop.f32.mrf.mxu0
    %v4047 = vadd.f32 %v3671, %v4046
    %v4048 = vpop.f32.mrf.mxu0
    %v4049 = vadd.f32 %v3673, %v4048
    %4050 = vdwg.mxu0
    %v4055 = vunpack.c.l.b16 %v2572
    %v4056 = vunpack.c.l.b16 %v2573
    %v4057 = vunpack.c.l.b16 %v2574
    %v4058 = vunpack.c.l.b16 %v2575
    %v4059 = vpack.c.b16 %v4056, %v4055
    %v4060 = vpack.c.b16 %v4058, %v4057
    %v4065 = vunpack.c.l.b16 %v1811
    %v4066 = vunpack.c.l.b16 %v1812
    %v4067 = vunpack.c.l.b16 %v1813
    %v4068 = vunpack.c.l.b16 %v1814
    %v4069 = vpack.c.b16 %v4066, %v4065
    %v4070 = vpack.c.b16 %v4068, %v4067
    %v4074 = vsel %vm2199, %v4059, 0
    %v4077 = vsel %vm2199, %v4060, 0
    %4079 = vmatpush.bf16.msra.mxu0 0
    %4080 = vmatpush.bf16.msra.mxu0 0
    %4081 = vmatpush.bf16.msra.mxu0 0
    %4082 = vmatpush.bf16.msra.mxu0 0
    %4083 = vmatpush.bf16.msra.mxu0 0
    %4084 = vmatpush.bf16.msra.mxu0 0
    %4085 = vmatpush.bf16.msra.mxu0 %v4070
    %4086 = vmatpush.bf16.msra.mxu0 %v4069
    %4087 = vmatmul.bf16.gmra.mxu0 %v4074
    %v4088 = vpop.f32.mrf.mxu0
    %v4089 = vadd.f32 %v3713, %v4088
    %v4090 = vpop.f32.mrf.mxu0
    %v4091 = vadd.f32 %v3715, %v4090
    %4092 = vmatmul.bf16.gmra.mxu0 %v4077
    %v4093 = vpop.f32.mrf.mxu0
    %v4094 = vadd.f32 %v3718, %v4093
    %v4095 = vpop.f32.mrf.mxu0
    %v4096 = vadd.f32 %v3720, %v4095
    %4097 = vdwg.mxu0
    %v4102 = vunpack.c.l.b16 %v2576
    %v4103 = vunpack.c.l.b16 %v2577
    %v4104 = vunpack.c.l.b16 %v2578
    %v4105 = vunpack.c.l.b16 %v2579
    %v4106 = vpack.c.b16 %v4103, %v4102
    %v4107 = vpack.c.b16 %v4105, %v4104
    %v4112 = vunpack.c.l.b16 %v1815
    %v4113 = vunpack.c.l.b16 %v1816
    %v4114 = vunpack.c.l.b16 %v1817
    %v4115 = vunpack.c.l.b16 %v1818
    %v4116 = vpack.c.b16 %v4113, %v4112
    %v4117 = vpack.c.b16 %v4115, %v4114
    %v4121 = vsel %vm2199, %v4106, 0
    %v4124 = vsel %vm2199, %v4107, 0
    %4126 = vmatpush.bf16.msra.mxu0 0
    %4127 = vmatpush.bf16.msra.mxu0 0
    %4128 = vmatpush.bf16.msra.mxu0 0
    %4129 = vmatpush.bf16.msra.mxu0 0
    %4130 = vmatpush.bf16.msra.mxu0 0
    %4131 = vmatpush.bf16.msra.mxu0 0
    %4132 = vmatpush.bf16.msra.mxu0 %v4117
    %4133 = vmatpush.bf16.msra.mxu0 %v4116
    %4134 = vmatmul.bf16.gmra.mxu0 %v4121
    %v4135 = vpop.f32.mrf.mxu0
    %v4136 = vadd.f32 %v3760, %v4135
    %v4137 = vpop.f32.mrf.mxu0
    %v4138 = vadd.f32 %v3762, %v4137
    %4139 = vmatmul.bf16.gmra.mxu0 %v4124
    %v4140 = vpop.f32.mrf.mxu0
    %v4141 = vadd.f32 %v3765, %v4140
    %v4142 = vpop.f32.mrf.mxu0
    %v4143 = vadd.f32 %v3767, %v4142
    %4144 = vdwg.mxu0
    %v4149 = vunpack.c.l.b16 %v2580
    %v4150 = vunpack.c.l.b16 %v2581
    %v4151 = vunpack.c.l.b16 %v2582
    %v4152 = vunpack.c.l.b16 %v2583
    %v4153 = vpack.c.b16 %v4150, %v4149
    %v4154 = vpack.c.b16 %v4152, %v4151
    %v4159 = vunpack.c.l.b16 %v1819
    %v4160 = vunpack.c.l.b16 %v1820
    %v4161 = vunpack.c.l.b16 %v1821
    %v4162 = vunpack.c.l.b16 %v1822
    %v4163 = vpack.c.b16 %v4160, %v4159
    %v4164 = vpack.c.b16 %v4162, %v4161
    %v4168 = vsel %vm2199, %v4153, 0
    %v4171 = vsel %vm2199, %v4154, 0
    %4173 = vmatpush.bf16.msra.mxu0 0
    %4174 = vmatpush.bf16.msra.mxu0 0
    %4175 = vmatpush.bf16.msra.mxu0 0
    %4176 = vmatpush.bf16.msra.mxu0 0
    %4177 = vmatpush.bf16.msra.mxu0 0
    %4178 = vmatpush.bf16.msra.mxu0 0
    %4179 = vmatpush.bf16.msra.mxu0 %v4164
    %4180 = vmatpush.bf16.msra.mxu0 %v4163
    %4181 = vmatmul.bf16.gmra.mxu0 %v4168
    %v4182 = vpop.f32.mrf.mxu0
    %v4183 = vadd.f32 %v3807, %v4182
    %v4184 = vpop.f32.mrf.mxu0
    %v4185 = vadd.f32 %v3809, %v4184
    %4186 = vmatmul.bf16.gmra.mxu0 %v4171
    %v4187 = vpop.f32.mrf.mxu0
    %v4188 = vadd.f32 %v3812, %v4187
    %v4189 = vpop.f32.mrf.mxu0
    %v4190 = vadd.f32 %v3814, %v4189
    %4191 = vdwg.mxu0
    %v4192 = vadd.f32 %v3854, %v127
    %v4193 = vadd.f32 %v3856, %v128
    %v4194 = vadd.f32 %v3859, %v129
    %v4195 = vadd.f32 %v3861, %v130
    %v4196 = vadd.f32 %v3901, %v131
    %v4197 = vadd.f32 %v3903, %v132
    %v4198 = vadd.f32 %v3906, %v133
    %v4199 = vadd.f32 %v3908, %v134
    %v4200 = vadd.f32 %v3948, %v135
    %v4201 = vadd.f32 %v3950, %v136
    %v4202 = vadd.f32 %v3953, %v137
    %v4203 = vadd.f32 %v3955, %v138
    %v4204 = vadd.f32 %v3995, %v139
    %v4205 = vadd.f32 %v3997, %v140
    %v4206 = vadd.f32 %v4000, %v141
    %v4207 = vadd.f32 %v4002, %v142
    %v4208 = vadd.f32 %v4042, %v143
    %v4209 = vadd.f32 %v4044, %v144
    %v4210 = vadd.f32 %v4047, %v145
    %v4211 = vadd.f32 %v4049, %v146
    %v4212 = vadd.f32 %v4089, %v147
    %v4213 = vadd.f32 %v4091, %v148
    %v4214 = vadd.f32 %v4094, %v149
    %v4215 = vadd.f32 %v4096, %v150
    %v4216 = vadd.f32 %v4136, %v151
    %v4217 = vadd.f32 %v4138, %v152
    %v4218 = vadd.f32 %v4141, %v153
    %v4219 = vadd.f32 %v4143, %v154
    %v4220 = vadd.f32 %v4183, %v155
    %v4221 = vadd.f32 %v4185, %v156
    %v4222 = vadd.f32 %v4188, %v157
    %v4223 = vadd.f32 %v4190, %v158
    %v4224 = vld [vmem:[%s4] sm:$0x1]
    %v4225 = vld [vmem:[%s5] sm:$0x1]
    %4226 = vadd.xlane.f32.xlu0 %v4192
    %v4227 = vpop.xlane.xlu0 %4226
    %4228 = vadd.xlane.f32.xlu0 %v4193
    %v4229 = vpop.xlane.xlu0 %4228
    %4230 = vadd.xlane.f32.xlu0 %v4194
    %v4231 = vpop.xlane.xlu0 %4230
    %4232 = vadd.xlane.f32.xlu0 %v4195
    %v4233 = vpop.xlane.xlu0 %4232
    %4234 = vadd.xlane.f32.xlu0 %v4196
    %v4235 = vpop.xlane.xlu0 %4234
    %4236 = vadd.xlane.f32.xlu0 %v4197
    %v4237 = vpop.xlane.xlu0 %4236
    %4238 = vadd.xlane.f32.xlu0 %v4198
    %v4239 = vpop.xlane.xlu0 %4238
    %4240 = vadd.xlane.f32.xlu0 %v4199
    %v4241 = vpop.xlane.xlu0 %4240
    %4242 = vadd.xlane.f32.xlu0 %v4200
    %v4243 = vpop.xlane.xlu0 %4242
    %4244 = vadd.xlane.f32.xlu0 %v4201
    %v4245 = vpop.xlane.xlu0 %4244
    %4246 = vadd.xlane.f32.xlu0 %v4202
    %v4247 = vpop.xlane.xlu0 %4246
    %4248 = vadd.xlane.f32.xlu0 %v4203
    %v4249 = vpop.xlane.xlu0 %4248
    %4250 = vadd.xlane.f32.xlu0 %v4204
    %v4251 = vpop.xlane.xlu0 %4250
    %4252 = vadd.xlane.f32.xlu0 %v4205
    %v4253 = vpop.xlane.xlu0 %4252
    %4254 = vadd.xlane.f32.xlu0 %v4206
    %v4255 = vpop.xlane.xlu0 %4254
    %4256 = vadd.xlane.f32.xlu0 %v4207
    %v4257 = vpop.xlane.xlu0 %4256
    %4258 = vadd.xlane.f32.xlu0 %v4208
    %v4259 = vpop.xlane.xlu0 %4258
    %4260 = vadd.xlane.f32.xlu0 %v4209
    %v4261 = vpop.xlane.xlu0 %4260
    %4262 = vadd.xlane.f32.xlu0 %v4210
    %v4263 = vpop.xlane.xlu0 %4262
    %4264 = vadd.xlane.f32.xlu0 %v4211
    %v4265 = vpop.xlane.xlu0 %4264
    %4266 = vadd.xlane.f32.xlu0 %v4212
    %v4267 = vpop.xlane.xlu0 %4266
    %4268 = vadd.xlane.f32.xlu0 %v4213
    %v4269 = vpop.xlane.xlu0 %4268
    %4270 = vadd.xlane.f32.xlu0 %v4214
    %v4271 = vpop.xlane.xlu0 %4270
    %4272 = vadd.xlane.f32.xlu0 %v4215
    %v4273 = vpop.xlane.xlu0 %4272
    %4274 = vadd.xlane.f32.xlu0 %v4216
    %v4275 = vpop.xlane.xlu0 %4274
    %4276 = vadd.xlane.f32.xlu0 %v4217
    %v4277 = vpop.xlane.xlu0 %4276
    %4278 = vadd.xlane.f32.xlu0 %v4218
    %v4279 = vpop.xlane.xlu0 %4278
    %4280 = vadd.xlane.f32.xlu0 %v4219
    %v4281 = vpop.xlane.xlu0 %4280
    %4282 = vadd.xlane.f32.xlu0 %v4220
    %v4283 = vpop.xlane.xlu0 %4282
    %4284 = vadd.xlane.f32.xlu0 %v4221
    %v4285 = vpop.xlane.xlu0 %4284
    %4286 = vadd.xlane.f32.xlu0 %v4222
    %v4287 = vpop.xlane.xlu0 %4286
    %4288 = vadd.xlane.f32.xlu0 %v4223
    %v4289 = vpop.xlane.xlu0 %4288
    %v4290 = vmul.f32 %v4227, %v231
    %v4291 = vmul.f32 %v4229, %v231
    %v4292 = vmul.f32 %v4231, %v231
    %v4293 = vmul.f32 %v4233, %v231
    %v4294 = vmul.f32 %v4235, %v231
    %v4295 = vmul.f32 %v4237, %v231
    %v4296 = vmul.f32 %v4239, %v231
    %v4297 = vmul.f32 %v4241, %v231
    %v4298 = vmul.f32 %v4243, %v231
    %v4299 = vmul.f32 %v4245, %v231
    %v4300 = vmul.f32 %v4247, %v231
    %v4301 = vmul.f32 %v4249, %v231
    %v4302 = vmul.f32 %v4251, %v231
    %v4303 = vmul.f32 %v4253, %v231
    %v4304 = vmul.f32 %v4255, %v231
    %v4305 = vmul.f32 %v4257, %v231
    %v4306 = vmul.f32 %v4259, %v231
    %v4307 = vmul.f32 %v4261, %v231
    %v4308 = vmul.f32 %v4263, %v231
    %v4309 = vmul.f32 %v4265, %v231
    %v4310 = vmul.f32 %v4267, %v231
    %v4311 = vmul.f32 %v4269, %v231
    %v4312 = vmul.f32 %v4271, %v231
    %v4313 = vmul.f32 %v4273, %v231
    %v4314 = vmul.f32 %v4275, %v231
    %v4315 = vmul.f32 %v4277, %v231
    %v4316 = vmul.f32 %v4279, %v231
    %v4317 = vmul.f32 %v4281, %v231
    %v4318 = vmul.f32 %v4283, %v231
    %v4319 = vmul.f32 %v4285, %v231
    %v4320 = vmul.f32 %v4287, %v231
    %v4321 = vmul.f32 %v4289, %v231
    %v4322 = vsub.f32 %v4192, %v4290
    %v4323 = vsub.f32 %v4193, %v4291
    %v4324 = vsub.f32 %v4194, %v4292
    %v4325 = vsub.f32 %v4195, %v4293
    %v4326 = vsub.f32 %v4196, %v4294
    %v4327 = vsub.f32 %v4197, %v4295
    %v4328 = vsub.f32 %v4198, %v4296
    %v4329 = vsub.f32 %v4199, %v4297
    %v4330 = vsub.f32 %v4200, %v4298
    %v4331 = vsub.f32 %v4201, %v4299
    %v4332 = vsub.f32 %v4202, %v4300
    %v4333 = vsub.f32 %v4203, %v4301
    %v4334 = vsub.f32 %v4204, %v4302
    %v4335 = vsub.f32 %v4205, %v4303
    %v4336 = vsub.f32 %v4206, %v4304
    %v4337 = vsub.f32 %v4207, %v4305
    %v4338 = vsub.f32 %v4208, %v4306
    %v4339 = vsub.f32 %v4209, %v4307
    %v4340 = vsub.f32 %v4210, %v4308
    %v4341 = vsub.f32 %v4211, %v4309
    %v4342 = vsub.f32 %v4212, %v4310
    %v4343 = vsub.f32 %v4213, %v4311
    %v4344 = vsub.f32 %v4214, %v4312
    %v4345 = vsub.f32 %v4215, %v4313
    %v4346 = vsub.f32 %v4216, %v4314
    %v4347 = vsub.f32 %v4217, %v4315
    %v4348 = vsub.f32 %v4218, %v4316
    %v4349 = vsub.f32 %v4219, %v4317
    %v4350 = vsub.f32 %v4220, %v4318
    %v4351 = vsub.f32 %v4221, %v4319
    %v4352 = vsub.f32 %v4222, %v4320
    %v4353 = vsub.f32 %v4223, %v4321
    %v4354 = vmul.f32 %v4322, %v4322
    %v4355 = vmul.f32 %v4323, %v4323
    %v4356 = vmul.f32 %v4324, %v4324
    %v4357 = vmul.f32 %v4325, %v4325
    %v4358 = vmul.f32 %v4326, %v4326
    %v4359 = vmul.f32 %v4327, %v4327
    %v4360 = vmul.f32 %v4328, %v4328
    %v4361 = vmul.f32 %v4329, %v4329
    %v4362 = vmul.f32 %v4330, %v4330
    %v4363 = vmul.f32 %v4331, %v4331
    %v4364 = vmul.f32 %v4332, %v4332
    %v4365 = vmul.f32 %v4333, %v4333
    %v4366 = vmul.f32 %v4334, %v4334
    %v4367 = vmul.f32 %v4335, %v4335
    %v4368 = vmul.f32 %v4336, %v4336
    %v4369 = vmul.f32 %v4337, %v4337
    %v4370 = vmul.f32 %v4338, %v4338
    %v4371 = vmul.f32 %v4339, %v4339
    %v4372 = vmul.f32 %v4340, %v4340
    %v4373 = vmul.f32 %v4341, %v4341
    %v4374 = vmul.f32 %v4342, %v4342
    %v4375 = vmul.f32 %v4343, %v4343
    %v4376 = vmul.f32 %v4344, %v4344
    %v4377 = vmul.f32 %v4345, %v4345
    %v4378 = vmul.f32 %v4346, %v4346
    %v4379 = vmul.f32 %v4347, %v4347
    %v4380 = vmul.f32 %v4348, %v4348
    %v4381 = vmul.f32 %v4349, %v4349
    %v4382 = vmul.f32 %v4350, %v4350
    %v4383 = vmul.f32 %v4351, %v4351
    %v4384 = vmul.f32 %v4352, %v4352
    %v4385 = vmul.f32 %v4353, %v4353
    %4386 = vadd.xlane.f32.xlu0 %v4354
    %v4387 = vpop.xlane.xlu0 %4386
    %4388 = vadd.xlane.f32.xlu0 %v4355
    %v4389 = vpop.xlane.xlu0 %4388
    %4390 = vadd.xlane.f32.xlu0 %v4356
    %v4391 = vpop.xlane.xlu0 %4390
    %4392 = vadd.xlane.f32.xlu0 %v4357
    %v4393 = vpop.xlane.xlu0 %4392
    %4394 = vadd.xlane.f32.xlu0 %v4358
    %v4395 = vpop.xlane.xlu0 %4394
    %4396 = vadd.xlane.f32.xlu0 %v4359
    %v4397 = vpop.xlane.xlu0 %4396
    %4398 = vadd.xlane.f32.xlu0 %v4360
    %v4399 = vpop.xlane.xlu0 %4398
    %4400 = vadd.xlane.f32.xlu0 %v4361
    %v4401 = vpop.xlane.xlu0 %4400
    %4402 = vadd.xlane.f32.xlu0 %v4362
    %v4403 = vpop.xlane.xlu0 %4402
    %4404 = vadd.xlane.f32.xlu0 %v4363
    %v4405 = vpop.xlane.xlu0 %4404
    %4406 = vadd.xlane.f32.xlu0 %v4364
    %v4407 = vpop.xlane.xlu0 %4406
    %4408 = vadd.xlane.f32.xlu0 %v4365
    %v4409 = vpop.xlane.xlu0 %4408
    %4410 = vadd.xlane.f32.xlu0 %v4366
    %v4411 = vpop.xlane.xlu0 %4410
    %4412 = vadd.xlane.f32.xlu0 %v4367
    %v4413 = vpop.xlane.xlu0 %4412
    %4414 = vadd.xlane.f32.xlu0 %v4368
    %v4415 = vpop.xlane.xlu0 %4414
    %4416 = vadd.xlane.f32.xlu0 %v4369
    %v4417 = vpop.xlane.xlu0 %4416
    %4418 = vadd.xlane.f32.xlu0 %v4370
    %v4419 = vpop.xlane.xlu0 %4418
    %4420 = vadd.xlane.f32.xlu0 %v4371
    %v4421 = vpop.xlane.xlu0 %4420
    %4422 = vadd.xlane.f32.xlu0 %v4372
    %v4423 = vpop.xlane.xlu0 %4422
    %4424 = vadd.xlane.f32.xlu0 %v4373
    %v4425 = vpop.xlane.xlu0 %4424
    %4426 = vadd.xlane.f32.xlu0 %v4374
    %v4427 = vpop.xlane.xlu0 %4426
    %4428 = vadd.xlane.f32.xlu0 %v4375
    %v4429 = vpop.xlane.xlu0 %4428
    %4430 = vadd.xlane.f32.xlu0 %v4376
    %v4431 = vpop.xlane.xlu0 %4430
    %4432 = vadd.xlane.f32.xlu0 %v4377
    %v4433 = vpop.xlane.xlu0 %4432
    %4434 = vadd.xlane.f32.xlu0 %v4378
    %v4435 = vpop.xlane.xlu0 %4434
    %4436 = vadd.xlane.f32.xlu0 %v4379
    %v4437 = vpop.xlane.xlu0 %4436
    %4438 = vadd.xlane.f32.xlu0 %v4380
    %v4439 = vpop.xlane.xlu0 %4438
    %4440 = vadd.xlane.f32.xlu0 %v4381
    %v4441 = vpop.xlane.xlu0 %4440
    %4442 = vadd.xlane.f32.xlu0 %v4382
    %v4443 = vpop.xlane.xlu0 %4442
    %4444 = vadd.xlane.f32.xlu0 %v4383
    %v4445 = vpop.xlane.xlu0 %4444
    %4446 = vadd.xlane.f32.xlu0 %v4384
    %v4447 = vpop.xlane.xlu0 %4446
    %4448 = vadd.xlane.f32.xlu0 %v4385
    %v4449 = vpop.xlane.xlu0 %4448
    %v4450 = vmul.f32 %v4387, %v231
    %v4451 = vmul.f32 %v4389, %v231
    %v4452 = vmul.f32 %v4391, %v231
    %v4453 = vmul.f32 %v4393, %v231
    %v4454 = vmul.f32 %v4395, %v231
    %v4455 = vmul.f32 %v4397, %v231
    %v4456 = vmul.f32 %v4399, %v231
    %v4457 = vmul.f32 %v4401, %v231
    %v4458 = vmul.f32 %v4403, %v231
    %v4459 = vmul.f32 %v4405, %v231
    %v4460 = vmul.f32 %v4407, %v231
    %v4461 = vmul.f32 %v4409, %v231
    %v4462 = vmul.f32 %v4411, %v231
    %v4463 = vmul.f32 %v4413, %v231
    %v4464 = vmul.f32 %v4415, %v231
    %v4465 = vmul.f32 %v4417, %v231
    %v4466 = vmul.f32 %v4419, %v231
    %v4467 = vmul.f32 %v4421, %v231
    %v4468 = vmul.f32 %v4423, %v231
    %v4469 = vmul.f32 %v4425, %v231
    %v4470 = vmul.f32 %v4427, %v231
    %v4471 = vmul.f32 %v4429, %v231
    %v4472 = vmul.f32 %v4431, %v231
    %v4473 = vmul.f32 %v4433, %v231
    %v4474 = vmul.f32 %v4435, %v231
    %v4475 = vmul.f32 %v4437, %v231
    %v4476 = vmul.f32 %v4439, %v231
    %v4477 = vmul.f32 %v4441, %v231
    %v4478 = vmul.f32 %v4443, %v231
    %v4479 = vmul.f32 %v4445, %v231
    %v4480 = vmul.f32 %v4447, %v231
    %v4481 = vmul.f32 %v4449, %v231
    %v4482 = vadd.f32 %v4450, 1e-05
    %v4483 = vadd.f32 %v4451, 1e-05
    %v4484 = vadd.f32 %v4452, 1e-05
    %v4485 = vadd.f32 %v4453, 1e-05
    %v4486 = vadd.f32 %v4454, 1e-05
    %v4487 = vadd.f32 %v4455, 1e-05
    %v4488 = vadd.f32 %v4456, 1e-05
    %v4489 = vadd.f32 %v4457, 1e-05
    %v4490 = vadd.f32 %v4458, 1e-05
    %v4491 = vadd.f32 %v4459, 1e-05
    %v4492 = vadd.f32 %v4460, 1e-05
    %v4493 = vadd.f32 %v4461, 1e-05
    %v4494 = vadd.f32 %v4462, 1e-05
    %v4495 = vadd.f32 %v4463, 1e-05
    %v4496 = vadd.f32 %v4464, 1e-05
    %v4497 = vadd.f32 %v4465, 1e-05
    %v4498 = vadd.f32 %v4466, 1e-05
    %v4499 = vadd.f32 %v4467, 1e-05
    %v4500 = vadd.f32 %v4468, 1e-05
    %v4501 = vadd.f32 %v4469, 1e-05
    %v4502 = vadd.f32 %v4470, 1e-05
    %v4503 = vadd.f32 %v4471, 1e-05
    %v4504 = vadd.f32 %v4472, 1e-05
    %v4505 = vadd.f32 %v4473, 1e-05
    %v4506 = vadd.f32 %v4474, 1e-05
    %v4507 = vadd.f32 %v4475, 1e-05
    %v4508 = vadd.f32 %v4476, 1e-05
    %v4509 = vadd.f32 %v4477, 1e-05
    %v4510 = vadd.f32 %v4478, 1e-05
    %v4511 = vadd.f32 %v4479, 1e-05
    %v4512 = vadd.f32 %v4480, 1e-05
    %v4513 = vadd.f32 %v4481, 1e-05
    %v4514 = vrsqrt.pop %v4482
    %v4515 = vmul.f32 %v4514, %v4482
    %v4516 = vmul.f32 %v4515, %v4514
    %v4517 = vmul.f32 0.5, %v4516
    %v4518 = vsub.f32 1.5, %v4517
    %v4519 = vmul.f32 %v4514, %v4518
    %vm4520 = vweird.f32 %v4482
    %vm4521 = vweird.f32 %v4514
    %vm4522 = vmor %vm4520, %vm4521
    %v4523 = vsel %vm4522, %v4514, %v4519
    %v4524 = vrsqrt.pop %v4483
    %v4525 = vmul.f32 %v4524, %v4483
    %v4526 = vmul.f32 %v4525, %v4524
    %v4527 = vmul.f32 0.5, %v4526
    %v4528 = vsub.f32 1.5, %v4527
    %v4529 = vmul.f32 %v4524, %v4528
    %vm4530 = vweird.f32 %v4483
    %vm4531 = vweird.f32 %v4524
    %vm4532 = vmor %vm4530, %vm4531
    %v4533 = vsel %vm4532, %v4524, %v4529
    %v4534 = vrsqrt.pop %v4484
    %v4535 = vmul.f32 %v4534, %v4484
    %v4536 = vmul.f32 %v4535, %v4534
    %v4537 = vmul.f32 0.5, %v4536
    %v4538 = vsub.f32 1.5, %v4537
    %v4539 = vmul.f32 %v4534, %v4538
    %vm4540 = vweird.f32 %v4484
    %vm4541 = vweird.f32 %v4534
    %vm4542 = vmor %vm4540, %vm4541
    %v4543 = vsel %vm4542, %v4534, %v4539
    %v4544 = vrsqrt.pop %v4485
    %v4545 = vmul.f32 %v4544, %v4485
    %v4546 = vmul.f32 %v4545, %v4544
    %v4547 = vmul.f32 0.5, %v4546
    %v4548 = vsub.f32 1.5, %v4547
    %v4549 = vmul.f32 %v4544, %v4548
    %vm4550 = vweird.f32 %v4485
    %vm4551 = vweird.f32 %v4544
    %vm4552 = vmor %vm4550, %vm4551
    %v4553 = vsel %vm4552, %v4544, %v4549
    %v4554 = vrsqrt.pop %v4486
    %v4555 = vmul.f32 %v4554, %v4486
    %v4556 = vmul.f32 %v4555, %v4554
    %v4557 = vmul.f32 0.5, %v4556
    %v4558 = vsub.f32 1.5, %v4557
    %v4559 = vmul.f32 %v4554, %v4558
    %vm4560 = vweird.f32 %v4486
    %vm4561 = vweird.f32 %v4554
    %vm4562 = vmor %vm4560, %vm4561
    %v4563 = vsel %vm4562, %v4554, %v4559
    %v4564 = vrsqrt.pop %v4487
    %v4565 = vmul.f32 %v4564, %v4487
    %v4566 = vmul.f32 %v4565, %v4564
    %v4567 = vmul.f32 0.5, %v4566
    %v4568 = vsub.f32 1.5, %v4567
    %v4569 = vmul.f32 %v4564, %v4568
    %vm4570 = vweird.f32 %v4487
    %vm4571 = vweird.f32 %v4564
    %vm4572 = vmor %vm4570, %vm4571
    %v4573 = vsel %vm4572, %v4564, %v4569
    %v4574 = vrsqrt.pop %v4488
    %v4575 = vmul.f32 %v4574, %v4488
    %v4576 = vmul.f32 %v4575, %v4574
    %v4577 = vmul.f32 0.5, %v4576
    %v4578 = vsub.f32 1.5, %v4577
    %v4579 = vmul.f32 %v4574, %v4578
    %vm4580 = vweird.f32 %v4488
    %vm4581 = vweird.f32 %v4574
    %vm4582 = vmor %vm4580, %vm4581
    %v4583 = vsel %vm4582, %v4574, %v4579
    %v4584 = vrsqrt.pop %v4489
    %v4585 = vmul.f32 %v4584, %v4489
    %v4586 = vmul.f32 %v4585, %v4584
    %v4587 = vmul.f32 0.5, %v4586
    %v4588 = vsub.f32 1.5, %v4587
    %v4589 = vmul.f32 %v4584, %v4588
    %vm4590 = vweird.f32 %v4489
    %vm4591 = vweird.f32 %v4584
    %vm4592 = vmor %vm4590, %vm4591
    %v4593 = vsel %vm4592, %v4584, %v4589
    %v4594 = vrsqrt.pop %v4490
    %v4595 = vmul.f32 %v4594, %v4490
    %v4596 = vmul.f32 %v4595, %v4594
    %v4597 = vmul.f32 0.5, %v4596
    %v4598 = vsub.f32 1.5, %v4597
    %v4599 = vmul.f32 %v4594, %v4598
    %vm4600 = vweird.f32 %v4490
    %vm4601 = vweird.f32 %v4594
    %vm4602 = vmor %vm4600, %vm4601
    %v4603 = vsel %vm4602, %v4594, %v4599
    %v4604 = vrsqrt.pop %v4491
    %v4605 = vmul.f32 %v4604, %v4491
    %v4606 = vmul.f32 %v4605, %v4604
    %v4607 = vmul.f32 0.5, %v4606
    %v4608 = vsub.f32 1.5, %v4607
    %v4609 = vmul.f32 %v4604, %v4608
    %vm4610 = vweird.f32 %v4491
    %vm4611 = vweird.f32 %v4604
    %vm4612 = vmor %vm4610, %vm4611
    %v4613 = vsel %vm4612, %v4604, %v4609
    %v4614 = vrsqrt.pop %v4492
    %v4615 = vmul.f32 %v4614, %v4492
    %v4616 = vmul.f32 %v4615, %v4614
    %v4617 = vmul.f32 0.5, %v4616
    %v4618 = vsub.f32 1.5, %v4617
    %v4619 = vmul.f32 %v4614, %v4618
    %vm4620 = vweird.f32 %v4492
    %vm4621 = vweird.f32 %v4614
    %vm4622 = vmor %vm4620, %vm4621
    %v4623 = vsel %vm4622, %v4614, %v4619
    %v4624 = vrsqrt.pop %v4493
    %v4625 = vmul.f32 %v4624, %v4493
    %v4626 = vmul.f32 %v4625, %v4624
    %v4627 = vmul.f32 0.5, %v4626
    %v4628 = vsub.f32 1.5, %v4627
    %v4629 = vmul.f32 %v4624, %v4628
    %vm4630 = vweird.f32 %v4493
    %vm4631 = vweird.f32 %v4624
    %vm4632 = vmor %vm4630, %vm4631
    %v4633 = vsel %vm4632, %v4624, %v4629
    %v4634 = vrsqrt.pop %v4494
    %v4635 = vmul.f32 %v4634, %v4494
    %v4636 = vmul.f32 %v4635, %v4634
    %v4637 = vmul.f32 0.5, %v4636
    %v4638 = vsub.f32 1.5, %v4637
    %v4639 = vmul.f32 %v4634, %v4638
    %vm4640 = vweird.f32 %v4494
    %vm4641 = vweird.f32 %v4634
    %vm4642 = vmor %vm4640, %vm4641
    %v4643 = vsel %vm4642, %v4634, %v4639
    %v4644 = vrsqrt.pop %v4495
    %v4645 = vmul.f32 %v4644, %v4495
    %v4646 = vmul.f32 %v4645, %v4644
    %v4647 = vmul.f32 0.5, %v4646
    %v4648 = vsub.f32 1.5, %v4647
    %v4649 = vmul.f32 %v4644, %v4648
    %vm4650 = vweird.f32 %v4495
    %vm4651 = vweird.f32 %v4644
    %vm4652 = vmor %vm4650, %vm4651
    %v4653 = vsel %vm4652, %v4644, %v4649
    %v4654 = vrsqrt.pop %v4496
    %v4655 = vmul.f32 %v4654, %v4496
    %v4656 = vmul.f32 %v4655, %v4654
    %v4657 = vmul.f32 0.5, %v4656
    %v4658 = vsub.f32 1.5, %v4657
    %v4659 = vmul.f32 %v4654, %v4658
    %vm4660 = vweird.f32 %v4496
    %vm4661 = vweird.f32 %v4654
    %vm4662 = vmor %vm4660, %vm4661
    %v4663 = vsel %vm4662, %v4654, %v4659
    %v4664 = vrsqrt.pop %v4497
    %v4665 = vmul.f32 %v4664, %v4497
    %v4666 = vmul.f32 %v4665, %v4664
    %v4667 = vmul.f32 0.5, %v4666
    %v4668 = vsub.f32 1.5, %v4667
    %v4669 = vmul.f32 %v4664, %v4668
    %vm4670 = vweird.f32 %v4497
    %vm4671 = vweird.f32 %v4664
    %vm4672 = vmor %vm4670, %vm4671
    %v4673 = vsel %vm4672, %v4664, %v4669
    %v4674 = vrsqrt.pop %v4498
    %v4675 = vmul.f32 %v4674, %v4498
    %v4676 = vmul.f32 %v4675, %v4674
    %v4677 = vmul.f32 0.5, %v4676
    %v4678 = vsub.f32 1.5, %v4677
    %v4679 = vmul.f32 %v4674, %v4678
    %vm4680 = vweird.f32 %v4498
    %vm4681 = vweird.f32 %v4674
    %vm4682 = vmor %vm4680, %vm4681
    %v4683 = vsel %vm4682, %v4674, %v4679
    %v4684 = vrsqrt.pop %v4499
    %v4685 = vmul.f32 %v4684, %v4499
    %v4686 = vmul.f32 %v4685, %v4684
    %v4687 = vmul.f32 0.5, %v4686
    %v4688 = vsub.f32 1.5, %v4687
    %v4689 = vmul.f32 %v4684, %v4688
    %vm4690 = vweird.f32 %v4499
    %vm4691 = vweird.f32 %v4684
    %vm4692 = vmor %vm4690, %vm4691
    %v4693 = vsel %vm4692, %v4684, %v4689
    %v4694 = vrsqrt.pop %v4500
    %v4695 = vmul.f32 %v4694, %v4500
    %v4696 = vmul.f32 %v4695, %v4694
    %v4697 = vmul.f32 0.5, %v4696
    %v4698 = vsub.f32 1.5, %v4697
    %v4699 = vmul.f32 %v4694, %v4698
    %vm4700 = vweird.f32 %v4500
    %vm4701 = vweird.f32 %v4694
    %vm4702 = vmor %vm4700, %vm4701
    %v4703 = vsel %vm4702, %v4694, %v4699
    %v4704 = vrsqrt.pop %v4501
    %v4705 = vmul.f32 %v4704, %v4501
    %v4706 = vmul.f32 %v4705, %v4704
    %v4707 = vmul.f32 0.5, %v4706
    %v4708 = vsub.f32 1.5, %v4707
    %v4709 = vmul.f32 %v4704, %v4708
    %vm4710 = vweird.f32 %v4501
    %vm4711 = vweird.f32 %v4704
    %vm4712 = vmor %vm4710, %vm4711
    %v4713 = vsel %vm4712, %v4704, %v4709
    %v4714 = vrsqrt.pop %v4502
    %v4715 = vmul.f32 %v4714, %v4502
    %v4716 = vmul.f32 %v4715, %v4714
    %v4717 = vmul.f32 0.5, %v4716
    %v4718 = vsub.f32 1.5, %v4717
    %v4719 = vmul.f32 %v4714, %v4718
    %vm4720 = vweird.f32 %v4502
    %vm4721 = vweird.f32 %v4714
    %vm4722 = vmor %vm4720, %vm4721
    %v4723 = vsel %vm4722, %v4714, %v4719
    %v4724 = vrsqrt.pop %v4503
    %v4725 = vmul.f32 %v4724, %v4503
    %v4726 = vmul.f32 %v4725, %v4724
    %v4727 = vmul.f32 0.5, %v4726
    %v4728 = vsub.f32 1.5, %v4727
    %v4729 = vmul.f32 %v4724, %v4728
    %vm4730 = vweird.f32 %v4503
    %vm4731 = vweird.f32 %v4724
    %vm4732 = vmor %vm4730, %vm4731
    %v4733 = vsel %vm4732, %v4724, %v4729
    %v4734 = vrsqrt.pop %v4504
    %v4735 = vmul.f32 %v4734, %v4504
    %v4736 = vmul.f32 %v4735, %v4734
    %v4737 = vmul.f32 0.5, %v4736
    %v4738 = vsub.f32 1.5, %v4737
    %v4739 = vmul.f32 %v4734, %v4738
    %vm4740 = vweird.f32 %v4504
    %vm4741 = vweird.f32 %v4734
    %vm4742 = vmor %vm4740, %vm4741
    %v4743 = vsel %vm4742, %v4734, %v4739
    %v4744 = vrsqrt.pop %v4505
    %v4745 = vmul.f32 %v4744, %v4505
    %v4746 = vmul.f32 %v4745, %v4744
    %v4747 = vmul.f32 0.5, %v4746
    %v4748 = vsub.f32 1.5, %v4747
    %v4749 = vmul.f32 %v4744, %v4748
    %vm4750 = vweird.f32 %v4505
    %vm4751 = vweird.f32 %v4744
    %vm4752 = vmor %vm4750, %vm4751
    %v4753 = vsel %vm4752, %v4744, %v4749
    %v4754 = vrsqrt.pop %v4506
    %v4755 = vmul.f32 %v4754, %v4506
    %v4756 = vmul.f32 %v4755, %v4754
    %v4757 = vmul.f32 0.5, %v4756
    %v4758 = vsub.f32 1.5, %v4757
    %v4759 = vmul.f32 %v4754, %v4758
    %vm4760 = vweird.f32 %v4506
    %vm4761 = vweird.f32 %v4754
    %vm4762 = vmor %vm4760, %vm4761
    %v4763 = vsel %vm4762, %v4754, %v4759
    %v4764 = vrsqrt.pop %v4507
    %v4765 = vmul.f32 %v4764, %v4507
    %v4766 = vmul.f32 %v4765, %v4764
    %v4767 = vmul.f32 0.5, %v4766
    %v4768 = vsub.f32 1.5, %v4767
    %v4769 = vmul.f32 %v4764, %v4768
    %vm4770 = vweird.f32 %v4507
    %vm4771 = vweird.f32 %v4764
    %vm4772 = vmor %vm4770, %vm4771
    %v4773 = vsel %vm4772, %v4764, %v4769
    %v4774 = vrsqrt.pop %v4508
    %v4775 = vmul.f32 %v4774, %v4508
    %v4776 = vmul.f32 %v4775, %v4774
    %v4777 = vmul.f32 0.5, %v4776
    %v4778 = vsub.f32 1.5, %v4777
    %v4779 = vmul.f32 %v4774, %v4778
    %vm4780 = vweird.f32 %v4508
    %vm4781 = vweird.f32 %v4774
    %vm4782 = vmor %vm4780, %vm4781
    %v4783 = vsel %vm4782, %v4774, %v4779
    %v4784 = vrsqrt.pop %v4509
    %v4785 = vmul.f32 %v4784, %v4509
    %v4786 = vmul.f32 %v4785, %v4784
    %v4787 = vmul.f32 0.5, %v4786
    %v4788 = vsub.f32 1.5, %v4787
    %v4789 = vmul.f32 %v4784, %v4788
    %vm4790 = vweird.f32 %v4509
    %vm4791 = vweird.f32 %v4784
    %vm4792 = vmor %vm4790, %vm4791
    %v4793 = vsel %vm4792, %v4784, %v4789
    %v4794 = vrsqrt.pop %v4510
    %v4795 = vmul.f32 %v4794, %v4510
    %v4796 = vmul.f32 %v4795, %v4794
    %v4797 = vmul.f32 0.5, %v4796
    %v4798 = vsub.f32 1.5, %v4797
    %v4799 = vmul.f32 %v4794, %v4798
    %vm4800 = vweird.f32 %v4510
    %vm4801 = vweird.f32 %v4794
    %vm4802 = vmor %vm4800, %vm4801
    %v4803 = vsel %vm4802, %v4794, %v4799
    %v4804 = vrsqrt.pop %v4511
    %v4805 = vmul.f32 %v4804, %v4511
    %v4806 = vmul.f32 %v4805, %v4804
    %v4807 = vmul.f32 0.5, %v4806
    %v4808 = vsub.f32 1.5, %v4807
    %v4809 = vmul.f32 %v4804, %v4808
    %vm4810 = vweird.f32 %v4511
    %vm4811 = vweird.f32 %v4804
    %vm4812 = vmor %vm4810, %vm4811
    %v4813 = vsel %vm4812, %v4804, %v4809
    %v4814 = vrsqrt.pop %v4512
    %v4815 = vmul.f32 %v4814, %v4512
    %v4816 = vmul.f32 %v4815, %v4814
    %v4817 = vmul.f32 0.5, %v4816
    %v4818 = vsub.f32 1.5, %v4817
    %v4819 = vmul.f32 %v4814, %v4818
    %vm4820 = vweird.f32 %v4512
    %vm4821 = vweird.f32 %v4814
    %vm4822 = vmor %vm4820, %vm4821
    %v4823 = vsel %vm4822, %v4814, %v4819
    %v4824 = vrsqrt.pop %v4513
    %v4825 = vmul.f32 %v4824, %v4513
    %v4826 = vmul.f32 %v4825, %v4824
    %v4827 = vmul.f32 0.5, %v4826
    %v4828 = vsub.f32 1.5, %v4827
    %v4829 = vmul.f32 %v4824, %v4828
    %vm4830 = vweird.f32 %v4513
    %vm4831 = vweird.f32 %v4824
    %vm4832 = vmor %vm4830, %vm4831
    %v4833 = vsel %vm4832, %v4824, %v4829
    %v4834 = vmul.f32 %v4322, %v4523
    %v4835 = vmul.f32 %v4323, %v4533
    %v4836 = vmul.f32 %v4324, %v4543
    %v4837 = vmul.f32 %v4325, %v4553
    %v4838 = vmul.f32 %v4326, %v4563
    %v4839 = vmul.f32 %v4327, %v4573
    %v4840 = vmul.f32 %v4328, %v4583
    %v4841 = vmul.f32 %v4329, %v4593
    %v4842 = vmul.f32 %v4330, %v4603
    %v4843 = vmul.f32 %v4331, %v4613
    %v4844 = vmul.f32 %v4332, %v4623
    %v4845 = vmul.f32 %v4333, %v4633
    %v4846 = vmul.f32 %v4334, %v4643
    %v4847 = vmul.f32 %v4335, %v4653
    %v4848 = vmul.f32 %v4336, %v4663
    %v4849 = vmul.f32 %v4337, %v4673
    %v4850 = vmul.f32 %v4338, %v4683
    %v4851 = vmul.f32 %v4339, %v4693
    %v4852 = vmul.f32 %v4340, %v4703
    %v4853 = vmul.f32 %v4341, %v4713
    %v4854 = vmul.f32 %v4342, %v4723
    %v4855 = vmul.f32 %v4343, %v4733
    %v4856 = vmul.f32 %v4344, %v4743
    %v4857 = vmul.f32 %v4345, %v4753
    %v4858 = vmul.f32 %v4346, %v4763
    %v4859 = vmul.f32 %v4347, %v4773
    %v4860 = vmul.f32 %v4348, %v4783
    %v4861 = vmul.f32 %v4349, %v4793
    %v4862 = vmul.f32 %v4350, %v4803
    %v4863 = vmul.f32 %v4351, %v4813
    %v4864 = vmul.f32 %v4352, %v4823
    %v4865 = vmul.f32 %v4353, %v4833
    %v4867 = vperm.slane %v4224, 0
    %v4869 = vmul.f32 %v4834, %v4867
    %v4870 = vmul.f32 %v4835, %v4867
    %v4871 = vmul.f32 %v4836, %v4867
    %v4872 = vmul.f32 %v4837, %v4867
    %v4873 = vmul.f32 %v4838, %v4867
    %v4874 = vmul.f32 %v4839, %v4867
    %v4875 = vmul.f32 %v4840, %v4867
    %v4876 = vmul.f32 %v4841, %v4867
    %v4877 = vmul.f32 %v4842, %v4867
    %v4878 = vmul.f32 %v4843, %v4867
    %v4879 = vmul.f32 %v4844, %v4867
    %v4880 = vmul.f32 %v4845, %v4867
    %v4881 = vmul.f32 %v4846, %v4867
    %v4882 = vmul.f32 %v4847, %v4867
    %v4883 = vmul.f32 %v4848, %v4867
    %v4884 = vmul.f32 %v4849, %v4867
    %v4885 = vmul.f32 %v4850, %v4867
    %v4886 = vmul.f32 %v4851, %v4867
    %v4887 = vmul.f32 %v4852, %v4867
    %v4888 = vmul.f32 %v4853, %v4867
    %v4889 = vmul.f32 %v4854, %v4867
    %v4890 = vmul.f32 %v4855, %v4867
    %v4891 = vmul.f32 %v4856, %v4867
    %v4892 = vmul.f32 %v4857, %v4867
    %v4893 = vmul.f32 %v4858, %v4867
    %v4894 = vmul.f32 %v4859, %v4867
    %v4895 = vmul.f32 %v4860, %v4867
    %v4896 = vmul.f32 %v4861, %v4867
    %v4897 = vmul.f32 %v4862, %v4867
    %v4898 = vmul.f32 %v4863, %v4867
    %v4899 = vmul.f32 %v4864, %v4867
    %v4900 = vmul.f32 %v4865, %v4867
    %v4902 = vperm.slane %v4225, 0
    %v4904 = vadd.f32 %v4869, %v4902
    %v4905 = vadd.f32 %v4870, %v4902
    %v4906 = vadd.f32 %v4871, %v4902
    %v4907 = vadd.f32 %v4872, %v4902
    %v4908 = vadd.f32 %v4873, %v4902
    %v4909 = vadd.f32 %v4874, %v4902
    %v4910 = vadd.f32 %v4875, %v4902
    %v4911 = vadd.f32 %v4876, %v4902
    %v4912 = vadd.f32 %v4877, %v4902
    %v4913 = vadd.f32 %v4878, %v4902
    %v4914 = vadd.f32 %v4879, %v4902
    %v4915 = vadd.f32 %v4880, %v4902
    %v4916 = vadd.f32 %v4881, %v4902
    %v4917 = vadd.f32 %v4882, %v4902
    %v4918 = vadd.f32 %v4883, %v4902
    %v4919 = vadd.f32 %v4884, %v4902
    %v4920 = vadd.f32 %v4885, %v4902
    %v4921 = vadd.f32 %v4886, %v4902
    %v4922 = vadd.f32 %v4887, %v4902
    %v4923 = vadd.f32 %v4888, %v4902
    %v4924 = vadd.f32 %v4889, %v4902
    %v4925 = vadd.f32 %v4890, %v4902
    %v4926 = vadd.f32 %v4891, %v4902
    %v4927 = vadd.f32 %v4892, %v4902
    %v4928 = vadd.f32 %v4893, %v4902
    %v4929 = vadd.f32 %v4894, %v4902
    %v4930 = vadd.f32 %v4895, %v4902
    %v4931 = vadd.f32 %v4896, %v4902
    %v4932 = vadd.f32 %v4897, %v4902
    %v4933 = vadd.f32 %v4898, %v4902
    %v4934 = vadd.f32 %v4899, %v4902
    %v4935 = vadd.f32 %v4900, %v4902
    %v4936 = vpack.c.bf16 %v4905, %v4904
    %v4937 = vpack.c.bf16 %v4907, %v4906
    %v4938 = vpack.c.bf16 %v4909, %v4908
    %v4939 = vpack.c.bf16 %v4911, %v4910
    %v4940 = vpack.c.bf16 %v4913, %v4912
    %v4941 = vpack.c.bf16 %v4915, %v4914
    %v4942 = vpack.c.bf16 %v4917, %v4916
    %v4943 = vpack.c.bf16 %v4919, %v4918
    %v4944 = vpack.c.bf16 %v4921, %v4920
    %v4945 = vpack.c.bf16 %v4923, %v4922
    %v4946 = vpack.c.bf16 %v4925, %v4924
    %v4947 = vpack.c.bf16 %v4927, %v4926
    %v4948 = vpack.c.bf16 %v4929, %v4928
    %v4949 = vpack.c.bf16 %v4931, %v4930
    %v4950 = vpack.c.bf16 %v4933, %v4932
    %v4951 = vpack.c.bf16 %v4935, %v4934
    %v4952 = vld [vmem:[#allocation7] sm:$0xff]
    %v4953 = vld [vmem:[#allocation7 + $0x8] sm:$0xff]
    %v4954 = vld [vmem:[#allocation7 + $0x10] sm:$0xff]
    %v4955 = vld [vmem:[#allocation7 + $0x18] sm:$0xff]
    %v4956 = vld [vmem:[#allocation7 + $0x20] sm:$0xff]
    %v4957 = vld [vmem:[#allocation7 + $0x28] sm:$0xff]
    %v4958 = vld [vmem:[#allocation7 + $0x30] sm:$0xff]
    %v4959 = vld [vmem:[#allocation7 + $0x38] sm:$0xff]
    %v4960 = vld [vmem:[#allocation7 + $0x40] sm:$0xff]
    %v4961 = vld [vmem:[#allocation7 + $0x48] sm:$0xff]
    %v4962 = vld [vmem:[#allocation7 + $0x50] sm:$0xff]
    %v4963 = vld [vmem:[#allocation7 + $0x58] sm:$0xff]
    %v4964 = vld [vmem:[#allocation7 + $0x60] sm:$0xff]
    %v4965 = vld [vmem:[#allocation7 + $0x68] sm:$0xff]
    %v4966 = vld [vmem:[#allocation7 + $0x70] sm:$0xff]
    %v4967 = vld [vmem:[#allocation7 + $0x78] sm:$0xff]
    %v4968 = vld [vmem:[#allocation7 + $0x80] sm:$0xff]
    %v4969 = vld [vmem:[#allocation7 + $0x88] sm:$0xff]
    %v4970 = vld [vmem:[#allocation7 + $0x90] sm:$0xff]
    %v4971 = vld [vmem:[#allocation7 + $0x98] sm:$0xff]
    %v4972 = vld [vmem:[#allocation7 + $0xa0] sm:$0xff]
    %v4973 = vld [vmem:[#allocation7 + $0xa8] sm:$0xff]
    %v4974 = vld [vmem:[#allocation7 + $0xb0] sm:$0xff]
    %v4975 = vld [vmem:[#allocation7 + $0xb8] sm:$0xff]
    %v4976 = vld [vmem:[#allocation7 + $0xc0] sm:$0xff]
    %v4977 = vld [vmem:[#allocation7 + $0xc8] sm:$0xff]
    %v4978 = vld [vmem:[#allocation7 + $0xd0] sm:$0xff]
    %v4979 = vld [vmem:[#allocation7 + $0xd8] sm:$0xff]
    %v4980 = vld [vmem:[#allocation7 + $0xe0] sm:$0xff]
    %v4981 = vld [vmem:[#allocation7 + $0xe8] sm:$0xff]
    %v4982 = vld [vmem:[#allocation7 + $0xf0] sm:$0xff]
    %v4983 = vld [vmem:[#allocation7 + $0xf8] sm:$0xff]
    %v4984 = vld [vmem:[#allocation8] sm:$0xf]
    %v4986 = vperm.slane %v4984, 0
    %v4987 = vperm.slane %v4984, 1
    %v4988 = vperm.slane %v4984, 2
    %v4989 = vperm.slane %v4984, 3
    %v5026 = vunpack.c.l.b16 %v4952
    %v5027 = vunpack.c.h.b16 %v4952
    %v5028 = vunpack.c.l.b16 %v4953
    %v5029 = vunpack.c.h.b16 %v4953
    %v5030 = vunpack.c.l.b16 %v4954
    %v5031 = vunpack.c.h.b16 %v4954
    %v5032 = vunpack.c.l.b16 %v4955
    %v5033 = vunpack.c.h.b16 %v4955
    %v5034 = vunpack.c.l.b16 %v4956
    %v5035 = vunpack.c.h.b16 %v4956
    %v5036 = vunpack.c.l.b16 %v4957
    %v5037 = vunpack.c.h.b16 %v4957
    %v5038 = vunpack.c.l.b16 %v4958
    %v5039 = vunpack.c.h.b16 %v4958
    %v5040 = vunpack.c.l.b16 %v4959
    %v5041 = vunpack.c.h.b16 %v4959
    %v5042 = vunpack.c.l.b16 %v4960
    %v5043 = vunpack.c.h.b16 %v4960
    %v5044 = vunpack.c.l.b16 %v4961
    %v5045 = vunpack.c.h.b16 %v4961
    %v5046 = vunpack.c.l.b16 %v4962
    %v5047 = vunpack.c.h.b16 %v4962
    %v5048 = vunpack.c.l.b16 %v4963
    %v5049 = vunpack.c.h.b16 %v4963
    %v5050 = vunpack.c.l.b16 %v4964
    %v5051 = vunpack.c.h.b16 %v4964
    %v5052 = vunpack.c.l.b16 %v4965
    %v5053 = vunpack.c.h.b16 %v4965
    %v5054 = vunpack.c.l.b16 %v4966
    %v5055 = vunpack.c.h.b16 %v4966
    %v5056 = vunpack.c.l.b16 %v4967
    %v5057 = vunpack.c.h.b16 %v4967
    %v5058 = vunpack.c.l.b16 %v4968
    %v5059 = vunpack.c.h.b16 %v4968
    %v5060 = vunpack.c.l.b16 %v4969
    %v5061 = vunpack.c.h.b16 %v4969
    %v5062 = vunpack.c.l.b16 %v4970
    %v5063 = vunpack.c.h.b16 %v4970
    %v5064 = vunpack.c.l.b16 %v4971
    %v5065 = vunpack.c.h.b16 %v4971
    %v5066 = vunpack.c.l.b16 %v4972
    %v5067 = vunpack.c.h.b16 %v4972
    %v5068 = vunpack.c.l.b16 %v4973
    %v5069 = vunpack.c.h.b16 %v4973
    %v5070 = vunpack.c.l.b16 %v4974
    %v5071 = vunpack.c.h.b16 %v4974
    %v5072 = vunpack.c.l.b16 %v4975
    %v5073 = vunpack.c.h.b16 %v4975
    %v5074 = vunpack.c.l.b16 %v4976
    %v5075 = vunpack.c.h.b16 %v4976
    %v5076 = vunpack.c.l.b16 %v4977
    %v5077 = vunpack.c.h.b16 %v4977
    %v5078 = vunpack.c.l.b16 %v4978
    %v5079 = vunpack.c.h.b16 %v4978
    %v5080 = vunpack.c.l.b16 %v4979
    %v5081 = vunpack.c.h.b16 %v4979
    %v5082 = vunpack.c.l.b16 %v4980
    %v5083 = vunpack.c.h.b16 %v4980
    %v5084 = vunpack.c.l.b16 %v4981
    %v5085 = vunpack.c.h.b16 %v4981
    %v5086 = vunpack.c.l.b16 %v4982
    %v5087 = vunpack.c.h.b16 %v4982
    %v5088 = vunpack.c.l.b16 %v4983
    %v5089 = vunpack.c.h.b16 %v4983
    %v5090 = vpack.c.b16 %v5030, %v5026
    %v5091 = vpack.c.b16 %v5031, %v5027
    %v5092 = vpack.c.b16 %v5032, %v5028
    %v5093 = vpack.c.b16 %v5033, %v5029
    %v5094 = vpack.c.b16 %v5038, %v5034
    %v5095 = vpack.c.b16 %v5039, %v5035
    %v5096 = vpack.c.b16 %v5040, %v5036
    %v5097 = vpack.c.b16 %v5041, %v5037
    %v5098 = vpack.c.b16 %v5046, %v5042
    %v5099 = vpack.c.b16 %v5047, %v5043
    %v5100 = vpack.c.b16 %v5048, %v5044
    %v5101 = vpack.c.b16 %v5049, %v5045
    %v5102 = vpack.c.b16 %v5054, %v5050
    %v5103 = vpack.c.b16 %v5055, %v5051
    %v5104 = vpack.c.b16 %v5056, %v5052
    %v5105 = vpack.c.b16 %v5057, %v5053
    %v5106 = vpack.c.b16 %v5062, %v5058
    %v5107 = vpack.c.b16 %v5063, %v5059
    %v5108 = vpack.c.b16 %v5064, %v5060
    %v5109 = vpack.c.b16 %v5065, %v5061
    %v5110 = vpack.c.b16 %v5070, %v5066
    %v5111 = vpack.c.b16 %v5071, %v5067
    %v5112 = vpack.c.b16 %v5072, %v5068
    %v5113 = vpack.c.b16 %v5073, %v5069
    %v5114 = vpack.c.b16 %v5078, %v5074
    %v5115 = vpack.c.b16 %v5079, %v5075
    %v5116 = vpack.c.b16 %v5080, %v5076
    %v5117 = vpack.c.b16 %v5081, %v5077
    %v5118 = vpack.c.b16 %v5086, %v5082
    %v5119 = vpack.c.b16 %v5087, %v5083
    %v5120 = vpack.c.b16 %v5088, %v5084
    %v5121 = vpack.c.b16 %v5089, %v5085
    %5154 = vmatpush.bf16.msra.mxu0 %v5118
    %5155 = vmatpush.bf16.msra.mxu0 %v5114
    %5156 = vmatpush.bf16.msra.mxu0 %v5110
    %5157 = vmatpush.bf16.msra.mxu0 %v5106
    %5158 = vmatpush.bf16.msra.mxu0 %v5102
    %5159 = vmatpush.bf16.msra.mxu0 %v5098
    %5160 = vmatpush.bf16.msra.mxu0 %v5094
    %5161 = vmatpush.bf16.msra.mxu0 %v5090
    %5162 = vmatmul.bf16.gmra.mxu0 %v4936
    %v5163 = vpop.f32.mrf.mxu0
    %v5164 = vadd.f32 %v4986, %v5163
    %v5165 = vpop.f32.mrf.mxu0
    %v5166 = vadd.f32 %v4986, %v5165
    %5167 = vmatmul.bf16.gmra.mxu0 %v4937
    %v5168 = vpop.f32.mrf.mxu0
    %v5169 = vadd.f32 %v4986, %v5168
    %v5170 = vpop.f32.mrf.mxu0
    %v5171 = vadd.f32 %v4986, %v5170
    %5172 = vmatmul.bf16.gmra.mxu0 %v4938
    %v5173 = vpop.f32.mrf.mxu0
    %v5174 = vadd.f32 %v4986, %v5173
    %v5175 = vpop.f32.mrf.mxu0
    %v5176 = vadd.f32 %v4986, %v5175
    %5177 = vmatmul.bf16.gmra.mxu0 %v4939
    %v5178 = vpop.f32.mrf.mxu0
    %v5179 = vadd.f32 %v4986, %v5178
    %v5180 = vpop.f32.mrf.mxu0
    %v5181 = vadd.f32 %v4986, %v5180
    %5182 = vmatmul.bf16.gmra.mxu0 %v4940
    %v5183 = vpop.f32.mrf.mxu0
    %v5184 = vadd.f32 %v4986, %v5183
    %v5185 = vpop.f32.mrf.mxu0
    %v5186 = vadd.f32 %v4986, %v5185
    %5187 = vmatmul.bf16.gmra.mxu0 %v4941
    %v5188 = vpop.f32.mrf.mxu0
    %v5189 = vadd.f32 %v4986, %v5188
    %v5190 = vpop.f32.mrf.mxu0
    %v5191 = vadd.f32 %v4986, %v5190
    %5192 = vmatmul.bf16.gmra.mxu0 %v4942
    %v5193 = vpop.f32.mrf.mxu0
    %v5194 = vadd.f32 %v4986, %v5193
    %v5195 = vpop.f32.mrf.mxu0
    %v5196 = vadd.f32 %v4986, %v5195
    %5197 = vmatmul.bf16.gmra.mxu0 %v4943
    %v5198 = vpop.f32.mrf.mxu0
    %v5199 = vadd.f32 %v4986, %v5198
    %v5200 = vpop.f32.mrf.mxu0
    %v5201 = vadd.f32 %v4986, %v5200
    %5202 = vmatmul.bf16.gmra.mxu0 %v4944
    %v5203 = vpop.f32.mrf.mxu0
    %v5204 = vadd.f32 %v4986, %v5203
    %v5205 = vpop.f32.mrf.mxu0
    %v5206 = vadd.f32 %v4986, %v5205
    %5207 = vmatmul.bf16.gmra.mxu0 %v4945
    %v5208 = vpop.f32.mrf.mxu0
    %v5209 = vadd.f32 %v4986, %v5208
    %v5210 = vpop.f32.mrf.mxu0
    %v5211 = vadd.f32 %v4986, %v5210
    %5212 = vmatmul.bf16.gmra.mxu0 %v4946
    %v5213 = vpop.f32.mrf.mxu0
    %v5214 = vadd.f32 %v4986, %v5213
    %v5215 = vpop.f32.mrf.mxu0
    %v5216 = vadd.f32 %v4986, %v5215
    %5217 = vmatmul.bf16.gmra.mxu0 %v4947
    %v5218 = vpop.f32.mrf.mxu0
    %v5219 = vadd.f32 %v4986, %v5218
    %v5220 = vpop.f32.mrf.mxu0
    %v5221 = vadd.f32 %v4986, %v5220
    %5222 = vmatmul.bf16.gmra.mxu0 %v4948
    %v5223 = vpop.f32.mrf.mxu0
    %v5224 = vadd.f32 %v4986, %v5223
    %v5225 = vpop.f32.mrf.mxu0
    %v5226 = vadd.f32 %v4986, %v5225
    %5227 = vmatmul.bf16.gmra.mxu0 %v4949
    %v5228 = vpop.f32.mrf.mxu0
    %v5229 = vadd.f32 %v4986, %v5228
    %v5230 = vpop.f32.mrf.mxu0
    %v5231 = vadd.f32 %v4986, %v5230
    %5232 = vmatmul.bf16.gmra.mxu0 %v4950
    %v5233 = vpop.f32.mrf.mxu0
    %v5234 = vadd.f32 %v4986, %v5233
    %v5235 = vpop.f32.mrf.mxu0
    %v5236 = vadd.f32 %v4986, %v5235
    %5237 = vmatmul.bf16.gmra.mxu0 %v4951
    %v5238 = vpop.f32.mrf.mxu0
    %v5239 = vadd.f32 %v4986, %v5238
    %v5240 = vpop.f32.mrf.mxu0
    %v5241 = vadd.f32 %v4986, %v5240
    %5242 = vdwg.mxu0
    %5243 = vmatpush.bf16.msra.mxu0 %v5119
    %5244 = vmatpush.bf16.msra.mxu0 %v5115
    %5245 = vmatpush.bf16.msra.mxu0 %v5111
    %5246 = vmatpush.bf16.msra.mxu0 %v5107
    %5247 = vmatpush.bf16.msra.mxu0 %v5103
    %5248 = vmatpush.bf16.msra.mxu0 %v5099
    %5249 = vmatpush.bf16.msra.mxu0 %v5095
    %5250 = vmatpush.bf16.msra.mxu0 %v5091
    %5251 = vmatmul.bf16.gmra.mxu0 %v4936
    %v5252 = vpop.f32.mrf.mxu0
    %v5253 = vadd.f32 %v4987, %v5252
    %v5254 = vpop.f32.mrf.mxu0
    %v5255 = vadd.f32 %v4987, %v5254
    %5256 = vmatmul.bf16.gmra.mxu0 %v4937
    %v5257 = vpop.f32.mrf.mxu0
    %v5258 = vadd.f32 %v4987, %v5257
    %v5259 = vpop.f32.mrf.mxu0
    %v5260 = vadd.f32 %v4987, %v5259
    %5261 = vmatmul.bf16.gmra.mxu0 %v4938
    %v5262 = vpop.f32.mrf.mxu0
    %v5263 = vadd.f32 %v4987, %v5262
    %v5264 = vpop.f32.mrf.mxu0
    %v5265 = vadd.f32 %v4987, %v5264
    %5266 = vmatmul.bf16.gmra.mxu0 %v4939
    %v5267 = vpop.f32.mrf.mxu0
    %v5268 = vadd.f32 %v4987, %v5267
    %v5269 = vpop.f32.mrf.mxu0
    %v5270 = vadd.f32 %v4987, %v5269
    %5271 = vmatmul.bf16.gmra.mxu0 %v4940
    %v5272 = vpop.f32.mrf.mxu0
    %v5273 = vadd.f32 %v4987, %v5272
    %v5274 = vpop.f32.mrf.mxu0
    %v5275 = vadd.f32 %v4987, %v5274
    %5276 = vmatmul.bf16.gmra.mxu0 %v4941
    %v5277 = vpop.f32.mrf.mxu0
    %v5278 = vadd.f32 %v4987, %v5277
    %v5279 = vpop.f32.mrf.mxu0
    %v5280 = vadd.f32 %v4987, %v5279
    %5281 = vmatmul.bf16.gmra.mxu0 %v4942
    %v5282 = vpop.f32.mrf.mxu0
    %v5283 = vadd.f32 %v4987, %v5282
    %v5284 = vpop.f32.mrf.mxu0
    %v5285 = vadd.f32 %v4987, %v5284
    %5286 = vmatmul.bf16.gmra.mxu0 %v4943
    %v5287 = vpop.f32.mrf.mxu0
    %v5288 = vadd.f32 %v4987, %v5287
    %v5289 = vpop.f32.mrf.mxu0
    %v5290 = vadd.f32 %v4987, %v5289
    %5291 = vmatmul.bf16.gmra.mxu0 %v4944
    %v5292 = vpop.f32.mrf.mxu0
    %v5293 = vadd.f32 %v4987, %v5292
    %v5294 = vpop.f32.mrf.mxu0
    %v5295 = vadd.f32 %v4987, %v5294
    %5296 = vmatmul.bf16.gmra.mxu0 %v4945
    %v5297 = vpop.f32.mrf.mxu0
    %v5298 = vadd.f32 %v4987, %v5297
    %v5299 = vpop.f32.mrf.mxu0
    %v5300 = vadd.f32 %v4987, %v5299
    %5301 = vmatmul.bf16.gmra.mxu0 %v4946
    %v5302 = vpop.f32.mrf.mxu0
    %v5303 = vadd.f32 %v4987, %v5302
    %v5304 = vpop.f32.mrf.mxu0
    %v5305 = vadd.f32 %v4987, %v5304
    %5306 = vmatmul.bf16.gmra.mxu0 %v4947
    %v5307 = vpop.f32.mrf.mxu0
    %v5308 = vadd.f32 %v4987, %v5307
    %v5309 = vpop.f32.mrf.mxu0
    %v5310 = vadd.f32 %v4987, %v5309
    %5311 = vmatmul.bf16.gmra.mxu0 %v4948
    %v5312 = vpop.f32.mrf.mxu0
    %v5313 = vadd.f32 %v4987, %v5312
    %v5314 = vpop.f32.mrf.mxu0
    %v5315 = vadd.f32 %v4987, %v5314
    %5316 = vmatmul.bf16.gmra.mxu0 %v4949
    %v5317 = vpop.f32.mrf.mxu0
    %v5318 = vadd.f32 %v4987, %v5317
    %v5319 = vpop.f32.mrf.mxu0
    %v5320 = vadd.f32 %v4987, %v5319
    %5321 = vmatmul.bf16.gmra.mxu0 %v4950
    %v5322 = vpop.f32.mrf.mxu0
    %v5323 = vadd.f32 %v4987, %v5322
    %v5324 = vpop.f32.mrf.mxu0
    %v5325 = vadd.f32 %v4987, %v5324
    %5326 = vmatmul.bf16.gmra.mxu0 %v4951
    %v5327 = vpop.f32.mrf.mxu0
    %v5328 = vadd.f32 %v4987, %v5327
    %v5329 = vpop.f32.mrf.mxu0
    %v5330 = vadd.f32 %v4987, %v5329
    %5331 = vdwg.mxu0
    %5332 = vmatpush.bf16.msra.mxu0 %v5120
    %5333 = vmatpush.bf16.msra.mxu0 %v5116
    %5334 = vmatpush.bf16.msra.mxu0 %v5112
    %5335 = vmatpush.bf16.msra.mxu0 %v5108
    %5336 = vmatpush.bf16.msra.mxu0 %v5104
    %5337 = vmatpush.bf16.msra.mxu0 %v5100
    %5338 = vmatpush.bf16.msra.mxu0 %v5096
    %5339 = vmatpush.bf16.msra.mxu0 %v5092
    %5340 = vmatmul.bf16.gmra.mxu0 %v4936
    %v5341 = vpop.f32.mrf.mxu0
    %v5342 = vadd.f32 %v4988, %v5341
    %v5343 = vpop.f32.mrf.mxu0
    %v5344 = vadd.f32 %v4988, %v5343
    %5345 = vmatmul.bf16.gmra.mxu0 %v4937
    %v5346 = vpop.f32.mrf.mxu0
    %v5347 = vadd.f32 %v4988, %v5346
    %v5348 = vpop.f32.mrf.mxu0
    %v5349 = vadd.f32 %v4988, %v5348
    %5350 = vmatmul.bf16.gmra.mxu0 %v4938
    %v5351 = vpop.f32.mrf.mxu0
    %v5352 = vadd.f32 %v4988, %v5351
    %v5353 = vpop.f32.mrf.mxu0
    %v5354 = vadd.f32 %v4988, %v5353
    %5355 = vmatmul.bf16.gmra.mxu0 %v4939
    %v5356 = vpop.f32.mrf.mxu0
    %v5357 = vadd.f32 %v4988, %v5356
    %v5358 = vpop.f32.mrf.mxu0
    %v5359 = vadd.f32 %v4988, %v5358
    %5360 = vmatmul.bf16.gmra.mxu0 %v4940
    %v5361 = vpop.f32.mrf.mxu0
    %v5362 = vadd.f32 %v4988, %v5361
    %v5363 = vpop.f32.mrf.mxu0
    %v5364 = vadd.f32 %v4988, %v5363
    %5365 = vmatmul.bf16.gmra.mxu0 %v4941
    %v5366 = vpop.f32.mrf.mxu0
    %v5367 = vadd.f32 %v4988, %v5366
    %v5368 = vpop.f32.mrf.mxu0
    %v5369 = vadd.f32 %v4988, %v5368
    %5370 = vmatmul.bf16.gmra.mxu0 %v4942
    %v5371 = vpop.f32.mrf.mxu0
    %v5372 = vadd.f32 %v4988, %v5371
    %v5373 = vpop.f32.mrf.mxu0
    %v5374 = vadd.f32 %v4988, %v5373
    %5375 = vmatmul.bf16.gmra.mxu0 %v4943
    %v5376 = vpop.f32.mrf.mxu0
    %v5377 = vadd.f32 %v4988, %v5376
    %v5378 = vpop.f32.mrf.mxu0
    %v5379 = vadd.f32 %v4988, %v5378
    %5380 = vmatmul.bf16.gmra.mxu0 %v4944
    %v5381 = vpop.f32.mrf.mxu0
    %v5382 = vadd.f32 %v4988, %v5381
    %v5383 = vpop.f32.mrf.mxu0
    %v5384 = vadd.f32 %v4988, %v5383
    %5385 = vmatmul.bf16.gmra.mxu0 %v4945
    %v5386 = vpop.f32.mrf.mxu0
    %v5387 = vadd.f32 %v4988, %v5386
    %v5388 = vpop.f32.mrf.mxu0
    %v5389 = vadd.f32 %v4988, %v5388
    %5390 = vmatmul.bf16.gmra.mxu0 %v4946
    %v5391 = vpop.f32.mrf.mxu0
    %v5392 = vadd.f32 %v4988, %v5391
    %v5393 = vpop.f32.mrf.mxu0
    %v5394 = vadd.f32 %v4988, %v5393
    %5395 = vmatmul.bf16.gmra.mxu0 %v4947
    %v5396 = vpop.f32.mrf.mxu0
    %v5397 = vadd.f32 %v4988, %v5396
    %v5398 = vpop.f32.mrf.mxu0
    %v5399 = vadd.f32 %v4988, %v5398
    %5400 = vmatmul.bf16.gmra.mxu0 %v4948
    %v5401 = vpop.f32.mrf.mxu0
    %v5402 = vadd.f32 %v4988, %v5401
    %v5403 = vpop.f32.mrf.mxu0
    %v5404 = vadd.f32 %v4988, %v5403
    %5405 = vmatmul.bf16.gmra.mxu0 %v4949
    %v5406 = vpop.f32.mrf.mxu0
    %v5407 = vadd.f32 %v4988, %v5406
    %v5408 = vpop.f32.mrf.mxu0
    %v5409 = vadd.f32 %v4988, %v5408
    %5410 = vmatmul.bf16.gmra.mxu0 %v4950
    %v5411 = vpop.f32.mrf.mxu0
    %v5412 = vadd.f32 %v4988, %v5411
    %v5413 = vpop.f32.mrf.mxu0
    %v5414 = vadd.f32 %v4988, %v5413
    %5415 = vmatmul.bf16.gmra.mxu0 %v4951
    %v5416 = vpop.f32.mrf.mxu0
    %v5417 = vadd.f32 %v4988, %v5416
    %v5418 = vpop.f32.mrf.mxu0
    %v5419 = vadd.f32 %v4988, %v5418
    %5420 = vdwg.mxu0
    %5421 = vmatpush.bf16.msra.mxu0 %v5121
    %5422 = vmatpush.bf16.msra.mxu0 %v5117
    %5423 = vmatpush.bf16.msra.mxu0 %v5113
    %5424 = vmatpush.bf16.msra.mxu0 %v5109
    %5425 = vmatpush.bf16.msra.mxu0 %v5105
    %5426 = vmatpush.bf16.msra.mxu0 %v5101
    %5427 = vmatpush.bf16.msra.mxu0 %v5097
    %5428 = vmatpush.bf16.msra.mxu0 %v5093
    %5429 = vmatmul.bf16.gmra.mxu0 %v4936
    %v5430 = vpop.f32.mrf.mxu0
    %v5431 = vadd.f32 %v4989, %v5430
    %v5432 = vpop.f32.mrf.mxu0
    %v5433 = vadd.f32 %v4989, %v5432
    %5434 = vmatmul.bf16.gmra.mxu0 %v4937
    %v5435 = vpop.f32.mrf.mxu0
    %v5436 = vadd.f32 %v4989, %v5435
    %v5437 = vpop.f32.mrf.mxu0
    %v5438 = vadd.f32 %v4989, %v5437
    %5439 = vmatmul.bf16.gmra.mxu0 %v4938
    %v5440 = vpop.f32.mrf.mxu0
    %v5441 = vadd.f32 %v4989, %v5440
    %v5442 = vpop.f32.mrf.mxu0
    %v5443 = vadd.f32 %v4989, %v5442
    %5444 = vmatmul.bf16.gmra.mxu0 %v4939
    %v5445 = vpop.f32.mrf.mxu0
    %v5446 = vadd.f32 %v4989, %v5445
    %v5447 = vpop.f32.mrf.mxu0
    %v5448 = vadd.f32 %v4989, %v5447
    %5449 = vmatmul.bf16.gmra.mxu0 %v4940
    %v5450 = vpop.f32.mrf.mxu0
    %v5451 = vadd.f32 %v4989, %v5450
    %v5452 = vpop.f32.mrf.mxu0
    %v5453 = vadd.f32 %v4989, %v5452
    %5454 = vmatmul.bf16.gmra.mxu0 %v4941
    %v5455 = vpop.f32.mrf.mxu0
    %v5456 = vadd.f32 %v4989, %v5455
    %v5457 = vpop.f32.mrf.mxu0
    %v5458 = vadd.f32 %v4989, %v5457
    %5459 = vmatmul.bf16.gmra.mxu0 %v4942
    %v5460 = vpop.f32.mrf.mxu0
    %v5461 = vadd.f32 %v4989, %v5460
    %v5462 = vpop.f32.mrf.mxu0
    %v5463 = vadd.f32 %v4989, %v5462
    %5464 = vmatmul.bf16.gmra.mxu0 %v4943
    %v5465 = vpop.f32.mrf.mxu0
    %v5466 = vadd.f32 %v4989, %v5465
    %v5467 = vpop.f32.mrf.mxu0
    %v5468 = vadd.f32 %v4989, %v5467
    %5469 = vmatmul.bf16.gmra.mxu0 %v4944
    %v5470 = vpop.f32.mrf.mxu0
    %v5471 = vadd.f32 %v4989, %v5470
    %v5472 = vpop.f32.mrf.mxu0
    %v5473 = vadd.f32 %v4989, %v5472
    %5474 = vmatmul.bf16.gmra.mxu0 %v4945
    %v5475 = vpop.f32.mrf.mxu0
    %v5476 = vadd.f32 %v4989, %v5475
    %v5477 = vpop.f32.mrf.mxu0
    %v5478 = vadd.f32 %v4989, %v5477
    %5479 = vmatmul.bf16.gmra.mxu0 %v4946
    %v5480 = vpop.f32.mrf.mxu0
    %v5481 = vadd.f32 %v4989, %v5480
    %v5482 = vpop.f32.mrf.mxu0
    %v5483 = vadd.f32 %v4989, %v5482
    %5484 = vmatmul.bf16.gmra.mxu0 %v4947
    %v5485 = vpop.f32.mrf.mxu0
    %v5486 = vadd.f32 %v4989, %v5485
    %v5487 = vpop.f32.mrf.mxu0
    %v5488 = vadd.f32 %v4989, %v5487
    %5489 = vmatmul.bf16.gmra.mxu0 %v4948
    %v5490 = vpop.f32.mrf.mxu0
    %v5491 = vadd.f32 %v4989, %v5490
    %v5492 = vpop.f32.mrf.mxu0
    %v5493 = vadd.f32 %v4989, %v5492
    %5494 = vmatmul.bf16.gmra.mxu0 %v4949
    %v5495 = vpop.f32.mrf.mxu0
    %v5496 = vadd.f32 %v4989, %v5495
    %v5497 = vpop.f32.mrf.mxu0
    %v5498 = vadd.f32 %v4989, %v5497
    %5499 = vmatmul.bf16.gmra.mxu0 %v4950
    %v5500 = vpop.f32.mrf.mxu0
    %v5501 = vadd.f32 %v4989, %v5500
    %v5502 = vpop.f32.mrf.mxu0
    %v5503 = vadd.f32 %v4989, %v5502
    %5504 = vmatmul.bf16.gmra.mxu0 %v4951
    %v5505 = vpop.f32.mrf.mxu0
    %v5506 = vadd.f32 %v4989, %v5505
    %v5507 = vpop.f32.mrf.mxu0
    %v5508 = vadd.f32 %v4989, %v5507
    %5509 = vdwg.mxu0
    %v5510 = vmax.f32 %v5164, 0.0
    %v5511 = vmax.f32 %v5253, 0.0
    %v5512 = vmax.f32 %v5342, 0.0
    %v5513 = vmax.f32 %v5431, 0.0
    %v5514 = vmax.f32 %v5166, 0.0
    %v5515 = vmax.f32 %v5255, 0.0
    %v5516 = vmax.f32 %v5344, 0.0
    %v5517 = vmax.f32 %v5433, 0.0
    %v5518 = vmax.f32 %v5169, 0.0
    %v5519 = vmax.f32 %v5258, 0.0
    %v5520 = vmax.f32 %v5347, 0.0
    %v5521 = vmax.f32 %v5436, 0.0
    %v5522 = vmax.f32 %v5171, 0.0
    %v5523 = vmax.f32 %v5260, 0.0
    %v5524 = vmax.f32 %v5349, 0.0
    %v5525 = vmax.f32 %v5438, 0.0
    %v5526 = vmax.f32 %v5174, 0.0
    %v5527 = vmax.f32 %v5263, 0.0
    %v5528 = vmax.f32 %v5352, 0.0
    %v5529 = vmax.f32 %v5441, 0.0
    %v5530 = vmax.f32 %v5176, 0.0
    %v5531 = vmax.f32 %v5265, 0.0
    %v5532 = vmax.f32 %v5354, 0.0
    %v5533 = vmax.f32 %v5443, 0.0
    %v5534 = vmax.f32 %v5179, 0.0
    %v5535 = vmax.f32 %v5268, 0.0
    %v5536 = vmax.f32 %v5357, 0.0
    %v5537 = vmax.f32 %v5446, 0.0
    %v5538 = vmax.f32 %v5181, 0.0
    %v5539 = vmax.f32 %v5270, 0.0
    %v5540 = vmax.f32 %v5359, 0.0
    %v5541 = vmax.f32 %v5448, 0.0
    %v5542 = vmax.f32 %v5184, 0.0
    %v5543 = vmax.f32 %v5273, 0.0
    %v5544 = vmax.f32 %v5362, 0.0
    %v5545 = vmax.f32 %v5451, 0.0
    %v5546 = vmax.f32 %v5186, 0.0
    %v5547 = vmax.f32 %v5275, 0.0
    %v5548 = vmax.f32 %v5364, 0.0
    %v5549 = vmax.f32 %v5453, 0.0
    %v5550 = vmax.f32 %v5189, 0.0
    %v5551 = vmax.f32 %v5278, 0.0
    %v5552 = vmax.f32 %v5367, 0.0
    %v5553 = vmax.f32 %v5456, 0.0
    %v5554 = vmax.f32 %v5191, 0.0
    %v5555 = vmax.f32 %v5280, 0.0
    %v5556 = vmax.f32 %v5369, 0.0
    %v5557 = vmax.f32 %v5458, 0.0
    %v5558 = vmax.f32 %v5194, 0.0
    %v5559 = vmax.f32 %v5283, 0.0
    %v5560 = vmax.f32 %v5372, 0.0
    %v5561 = vmax.f32 %v5461, 0.0
    %v5562 = vmax.f32 %v5196, 0.0
    %v5563 = vmax.f32 %v5285, 0.0
    %v5564 = vmax.f32 %v5374, 0.0
    %v5565 = vmax.f32 %v5463, 0.0
    %v5566 = vmax.f32 %v5199, 0.0
    %v5567 = vmax.f32 %v5288, 0.0
    %v5568 = vmax.f32 %v5377, 0.0
    %v5569 = vmax.f32 %v5466, 0.0
    %v5570 = vmax.f32 %v5201, 0.0
    %v5571 = vmax.f32 %v5290, 0.0
    %v5572 = vmax.f32 %v5379, 0.0
    %v5573 = vmax.f32 %v5468, 0.0
    %v5574 = vmax.f32 %v5204, 0.0
    %v5575 = vmax.f32 %v5293, 0.0
    %v5576 = vmax.f32 %v5382, 0.0
    %v5577 = vmax.f32 %v5471, 0.0
    %v5578 = vmax.f32 %v5206, 0.0
    %v5579 = vmax.f32 %v5295, 0.0
    %v5580 = vmax.f32 %v5384, 0.0
    %v5581 = vmax.f32 %v5473, 0.0
    %v5582 = vmax.f32 %v5209, 0.0
    %v5583 = vmax.f32 %v5298, 0.0
    %v5584 = vmax.f32 %v5387, 0.0
    %v5585 = vmax.f32 %v5476, 0.0
    %v5586 = vmax.f32 %v5211, 0.0
    %v5587 = vmax.f32 %v5300, 0.0
    %v5588 = vmax.f32 %v5389, 0.0
    %v5589 = vmax.f32 %v5478, 0.0
    %v5590 = vmax.f32 %v5214, 0.0
    %v5591 = vmax.f32 %v5303, 0.0
    %v5592 = vmax.f32 %v5392, 0.0
    %v5593 = vmax.f32 %v5481, 0.0
    %v5594 = vmax.f32 %v5216, 0.0
    %v5595 = vmax.f32 %v5305, 0.0
    %v5596 = vmax.f32 %v5394, 0.0
    %v5597 = vmax.f32 %v5483, 0.0
    %v5598 = vmax.f32 %v5219, 0.0
    %v5599 = vmax.f32 %v5308, 0.0
    %v5600 = vmax.f32 %v5397, 0.0
    %v5601 = vmax.f32 %v5486, 0.0
    %v5602 = vmax.f32 %v5221, 0.0
    %v5603 = vmax.f32 %v5310, 0.0
    %v5604 = vmax.f32 %v5399, 0.0
    %v5605 = vmax.f32 %v5488, 0.0
    %v5606 = vmax.f32 %v5224, 0.0
    %v5607 = vmax.f32 %v5313, 0.0
    %v5608 = vmax.f32 %v5402, 0.0
    %v5609 = vmax.f32 %v5491, 0.0
    %v5610 = vmax.f32 %v5226, 0.0
    %v5611 = vmax.f32 %v5315, 0.0
    %v5612 = vmax.f32 %v5404, 0.0
    %v5613 = vmax.f32 %v5493, 0.0
    %v5614 = vmax.f32 %v5229, 0.0
    %v5615 = vmax.f32 %v5318, 0.0
    %v5616 = vmax.f32 %v5407, 0.0
    %v5617 = vmax.f32 %v5496, 0.0
    %v5618 = vmax.f32 %v5231, 0.0
    %v5619 = vmax.f32 %v5320, 0.0
    %v5620 = vmax.f32 %v5409, 0.0
    %v5621 = vmax.f32 %v5498, 0.0
    %v5622 = vmax.f32 %v5234, 0.0
    %v5623 = vmax.f32 %v5323, 0.0
    %v5624 = vmax.f32 %v5412, 0.0
    %v5625 = vmax.f32 %v5501, 0.0
    %v5626 = vmax.f32 %v5236, 0.0
    %v5627 = vmax.f32 %v5325, 0.0
    %v5628 = vmax.f32 %v5414, 0.0
    %v5629 = vmax.f32 %v5503, 0.0
    %v5630 = vmax.f32 %v5239, 0.0
    %v5631 = vmax.f32 %v5328, 0.0
    %v5632 = vmax.f32 %v5417, 0.0
    %v5633 = vmax.f32 %v5506, 0.0
    %v5634 = vmax.f32 %v5241, 0.0
    %v5635 = vmax.f32 %v5330, 0.0
    %v5636 = vmax.f32 %v5419, 0.0
    %v5637 = vmax.f32 %v5508, 0.0
    %v5638 = vpack.c.bf16 %v5514, %v5510
    %v5639 = vpack.c.bf16 %v5515, %v5511
    %v5640 = vpack.c.bf16 %v5516, %v5512
    %v5641 = vpack.c.bf16 %v5517, %v5513
    %v5642 = vpack.c.bf16 %v5522, %v5518
    %v5643 = vpack.c.bf16 %v5523, %v5519
    %v5644 = vpack.c.bf16 %v5524, %v5520
    %v5645 = vpack.c.bf16 %v5525, %v5521
    %v5646 = vpack.c.bf16 %v5530, %v5526
    %v5647 = vpack.c.bf16 %v5531, %v5527
    %v5648 = vpack.c.bf16 %v5532, %v5528
    %v5649 = vpack.c.bf16 %v5533, %v5529
    %v5650 = vpack.c.bf16 %v5538, %v5534
    %v5651 = vpack.c.bf16 %v5539, %v5535
    %v5652 = vpack.c.bf16 %v5540, %v5536
    %v5653 = vpack.c.bf16 %v5541, %v5537
    %v5654 = vpack.c.bf16 %v5546, %v5542
    %v5655 = vpack.c.bf16 %v5547, %v5543
    %v5656 = vpack.c.bf16 %v5548, %v5544
    %v5657 = vpack.c.bf16 %v5549, %v5545
    %v5658 = vpack.c.bf16 %v5554, %v5550
    %v5659 = vpack.c.bf16 %v5555, %v5551
    %v5660 = vpack.c.bf16 %v5556, %v5552
    %v5661 = vpack.c.bf16 %v5557, %v5553
    %v5662 = vpack.c.bf16 %v5562, %v5558
    %v5663 = vpack.c.bf16 %v5563, %v5559
    %v5664 = vpack.c.bf16 %v5564, %v5560
    %v5665 = vpack.c.bf16 %v5565, %v5561
    %v5666 = vpack.c.bf16 %v5570, %v5566
    %v5667 = vpack.c.bf16 %v5571, %v5567
    %v5668 = vpack.c.bf16 %v5572, %v5568
    %v5669 = vpack.c.bf16 %v5573, %v5569
    %v5670 = vpack.c.bf16 %v5578, %v5574
    %v5671 = vpack.c.bf16 %v5579, %v5575
    %v5672 = vpack.c.bf16 %v5580, %v5576
    %v5673 = vpack.c.bf16 %v5581, %v5577
    %v5674 = vpack.c.bf16 %v5586, %v5582
    %v5675 = vpack.c.bf16 %v5587, %v5583
    %v5676 = vpack.c.bf16 %v5588, %v5584
    %v5677 = vpack.c.bf16 %v5589, %v5585
    %v5678 = vpack.c.bf16 %v5594, %v5590
    %v5679 = vpack.c.bf16 %v5595, %v5591
    %v5680 = vpack.c.bf16 %v5596, %v5592
    %v5681 = vpack.c.bf16 %v5597, %v5593
    %v5682 = vpack.c.bf16 %v5602, %v5598
    %v5683 = vpack.c.bf16 %v5603, %v5599
    %v5684 = vpack.c.bf16 %v5604, %v5600
    %v5685 = vpack.c.bf16 %v5605, %v5601
    %v5686 = vpack.c.bf16 %v5610, %v5606
    %v5687 = vpack.c.bf16 %v5611, %v5607
    %v5688 = vpack.c.bf16 %v5612, %v5608
    %v5689 = vpack.c.bf16 %v5613, %v5609
    %v5690 = vpack.c.bf16 %v5618, %v5614
    %v5691 = vpack.c.bf16 %v5619, %v5615
    %v5692 = vpack.c.bf16 %v5620, %v5616
    %v5693 = vpack.c.bf16 %v5621, %v5617
    %v5694 = vpack.c.bf16 %v5626, %v5622
    %v5695 = vpack.c.bf16 %v5627, %v5623
    %v5696 = vpack.c.bf16 %v5628, %v5624
    %v5697 = vpack.c.bf16 %v5629, %v5625
    %v5698 = vpack.c.bf16 %v5634, %v5630
    %v5699 = vpack.c.bf16 %v5635, %v5631
    %v5700 = vpack.c.bf16 %v5636, %v5632
    %v5701 = vpack.c.bf16 %v5637, %v5633
    %v5702 = vld [vmem:[#allocation10] sm:$0xf]
    %v5703 = vld [vmem:[#allocation10 + $0x4] sm:$0xf]
    %v5704 = vld [vmem:[#allocation10 + $0x8] sm:$0xf]
    %v5705 = vld [vmem:[#allocation10 + $0xc] sm:$0xf]
    %v5706 = vld [vmem:[#allocation10 + $0x10] sm:$0xf]
    %v5707 = vld [vmem:[#allocation10 + $0x14] sm:$0xf]
    %v5708 = vld [vmem:[#allocation10 + $0x18] sm:$0xf]
    %v5709 = vld [vmem:[#allocation10 + $0x1c] sm:$0xf]
    %v5710 = vld [vmem:[#allocation10 + $0x20] sm:$0xf]
    %v5711 = vld [vmem:[#allocation10 + $0x24] sm:$0xf]
    %v5712 = vld [vmem:[#allocation10 + $0x28] sm:$0xf]
    %v5713 = vld [vmem:[#allocation10 + $0x2c] sm:$0xf]
    %v5714 = vld [vmem:[#allocation10 + $0x30] sm:$0xf]
    %v5715 = vld [vmem:[#allocation10 + $0x34] sm:$0xf]
    %v5716 = vld [vmem:[#allocation10 + $0x38] sm:$0xf]
    %v5717 = vld [vmem:[#allocation10 + $0x3c] sm:$0xf]
    %v5718 = vld [vmem:[#allocation10 + $0x40] sm:$0xf]
    %v5719 = vld [vmem:[#allocation10 + $0x44] sm:$0xf]
    %v5720 = vld [vmem:[#allocation10 + $0x48] sm:$0xf]
    %v5721 = vld [vmem:[#allocation10 + $0x4c] sm:$0xf]
    %v5722 = vld [vmem:[#allocation10 + $0x50] sm:$0xf]
    %v5723 = vld [vmem:[#allocation10 + $0x54] sm:$0xf]
    %v5724 = vld [vmem:[#allocation10 + $0x58] sm:$0xf]
    %v5725 = vld [vmem:[#allocation10 + $0x5c] sm:$0xf]
    %v5726 = vld [vmem:[#allocation10 + $0x60] sm:$0xf]
    %v5727 = vld [vmem:[#allocation10 + $0x64] sm:$0xf]
    %v5728 = vld [vmem:[#allocation10 + $0x68] sm:$0xf]
    %v5729 = vld [vmem:[#allocation10 + $0x6c] sm:$0xf]
    %v5730 = vld [vmem:[#allocation10 + $0x70] sm:$0xf]
    %v5731 = vld [vmem:[#allocation10 + $0x74] sm:$0xf]
    %v5732 = vld [vmem:[#allocation10 + $0x78] sm:$0xf]
    %v5733 = vld [vmem:[#allocation10 + $0x7c] sm:$0xf]
    %v5734 = vld [vmem:[#allocation10 + $0x80] sm:$0xf]
    %v5735 = vld [vmem:[#allocation10 + $0x84] sm:$0xf]
    %v5736 = vld [vmem:[#allocation10 + $0x88] sm:$0xf]
    %v5737 = vld [vmem:[#allocation10 + $0x8c] sm:$0xf]
    %v5738 = vld [vmem:[#allocation10 + $0x90] sm:$0xf]
    %v5739 = vld [vmem:[#allocation10 + $0x94] sm:$0xf]
    %v5740 = vld [vmem:[#allocation10 + $0x98] sm:$0xf]
    %v5741 = vld [vmem:[#allocation10 + $0x9c] sm:$0xf]
    %v5742 = vld [vmem:[#allocation10 + $0xa0] sm:$0xf]
    %v5743 = vld [vmem:[#allocation10 + $0xa4] sm:$0xf]
    %v5744 = vld [vmem:[#allocation10 + $0xa8] sm:$0xf]
    %v5745 = vld [vmem:[#allocation10 + $0xac] sm:$0xf]
    %v5746 = vld [vmem:[#allocation10 + $0xb0] sm:$0xf]
    %v5747 = vld [vmem:[#allocation10 + $0xb4] sm:$0xf]
    %v5748 = vld [vmem:[#allocation10 + $0xb8] sm:$0xf]
    %v5749 = vld [vmem:[#allocation10 + $0xbc] sm:$0xf]
    %v5750 = vld [vmem:[#allocation10 + $0xc0] sm:$0xf]
    %v5751 = vld [vmem:[#allocation10 + $0xc4] sm:$0xf]
    %v5752 = vld [vmem:[#allocation10 + $0xc8] sm:$0xf]
    %v5753 = vld [vmem:[#allocation10 + $0xcc] sm:$0xf]
    %v5754 = vld [vmem:[#allocation10 + $0xd0] sm:$0xf]
    %v5755 = vld [vmem:[#allocation10 + $0xd4] sm:$0xf]
    %v5756 = vld [vmem:[#allocation10 + $0xd8] sm:$0xf]
    %v5757 = vld [vmem:[#allocation10 + $0xdc] sm:$0xf]
    %v5758 = vld [vmem:[#allocation10 + $0xe0] sm:$0xf]
    %v5759 = vld [vmem:[#allocation10 + $0xe4] sm:$0xf]
    %v5760 = vld [vmem:[#allocation10 + $0xe8] sm:$0xf]
    %v5761 = vld [vmem:[#allocation10 + $0xec] sm:$0xf]
    %v5762 = vld [vmem:[#allocation10 + $0xf0] sm:$0xf]
    %v5763 = vld [vmem:[#allocation10 + $0xf4] sm:$0xf]
    %v5764 = vld [vmem:[#allocation10 + $0xf8] sm:$0xf]
    %v5765 = vld [vmem:[#allocation10 + $0xfc] sm:$0xf]
    %v5766 = vld [vmem:[#allocation11] sm:$0x1]
    %v5768 = vperm.slane %v5766, 0
    %v5834 = vunpack.c.l.b16 %v5702
    %v5835 = vunpack.c.l.b16 %v5703
    %v5836 = vunpack.c.l.b16 %v5704
    %v5837 = vunpack.c.l.b16 %v5705
    %v5838 = vunpack.c.l.b16 %v5706
    %v5839 = vunpack.c.l.b16 %v5707
    %v5840 = vunpack.c.l.b16 %v5708
    %v5841 = vunpack.c.l.b16 %v5709
    %v5842 = vunpack.c.l.b16 %v5710
    %v5843 = vunpack.c.l.b16 %v5711
    %v5844 = vunpack.c.l.b16 %v5712
    %v5845 = vunpack.c.l.b16 %v5713
    %v5846 = vunpack.c.l.b16 %v5714
    %v5847 = vunpack.c.l.b16 %v5715
    %v5848 = vunpack.c.l.b16 %v5716
    %v5849 = vunpack.c.l.b16 %v5717
    %v5850 = vunpack.c.l.b16 %v5718
    %v5851 = vunpack.c.l.b16 %v5719
    %v5852 = vunpack.c.l.b16 %v5720
    %v5853 = vunpack.c.l.b16 %v5721
    %v5854 = vunpack.c.l.b16 %v5722
    %v5855 = vunpack.c.l.b16 %v5723
    %v5856 = vunpack.c.l.b16 %v5724
    %v5857 = vunpack.c.l.b16 %v5725
    %v5858 = vunpack.c.l.b16 %v5726
    %v5859 = vunpack.c.l.b16 %v5727
    %v5860 = vunpack.c.l.b16 %v5728
    %v5861 = vunpack.c.l.b16 %v5729
    %v5862 = vunpack.c.l.b16 %v5730
    %v5863 = vunpack.c.l.b16 %v5731
    %v5864 = vunpack.c.l.b16 %v5732
    %v5865 = vunpack.c.l.b16 %v5733
    %v5866 = vunpack.c.l.b16 %v5734
    %v5867 = vunpack.c.l.b16 %v5735
    %v5868 = vunpack.c.l.b16 %v5736
    %v5869 = vunpack.c.l.b16 %v5737
    %v5870 = vunpack.c.l.b16 %v5738
    %v5871 = vunpack.c.l.b16 %v5739
    %v5872 = vunpack.c.l.b16 %v5740
    %v5873 = vunpack.c.l.b16 %v5741
    %v5874 = vunpack.c.l.b16 %v5742
    %v5875 = vunpack.c.l.b16 %v5743
    %v5876 = vunpack.c.l.b16 %v5744
    %v5877 = vunpack.c.l.b16 %v5745
    %v5878 = vunpack.c.l.b16 %v5746
    %v5879 = vunpack.c.l.b16 %v5747
    %v5880 = vunpack.c.l.b16 %v5748
    %v5881 = vunpack.c.l.b16 %v5749
    %v5882 = vunpack.c.l.b16 %v5750
    %v5883 = vunpack.c.l.b16 %v5751
    %v5884 = vunpack.c.l.b16 %v5752
    %v5885 = vunpack.c.l.b16 %v5753
    %v5886 = vunpack.c.l.b16 %v5754
    %v5887 = vunpack.c.l.b16 %v5755
    %v5888 = vunpack.c.l.b16 %v5756
    %v5889 = vunpack.c.l.b16 %v5757
    %v5890 = vunpack.c.l.b16 %v5758
    %v5891 = vunpack.c.l.b16 %v5759
    %v5892 = vunpack.c.l.b16 %v5760
    %v5893 = vunpack.c.l.b16 %v5761
    %v5894 = vunpack.c.l.b16 %v5762
    %v5895 = vunpack.c.l.b16 %v5763
    %v5896 = vunpack.c.l.b16 %v5764
    %v5897 = vunpack.c.l.b16 %v5765
    %v5898 = vpack.c.b16 %v5835, %v5834
    %v5899 = vpack.c.b16 %v5837, %v5836
    %v5900 = vpack.c.b16 %v5839, %v5838
    %v5901 = vpack.c.b16 %v5841, %v5840
    %v5902 = vpack.c.b16 %v5843, %v5842
    %v5903 = vpack.c.b16 %v5845, %v5844
    %v5904 = vpack.c.b16 %v5847, %v5846
    %v5905 = vpack.c.b16 %v5849, %v5848
    %v5906 = vpack.c.b16 %v5851, %v5850
    %v5907 = vpack.c.b16 %v5853, %v5852
    %v5908 = vpack.c.b16 %v5855, %v5854
    %v5909 = vpack.c.b16 %v5857, %v5856
    %v5910 = vpack.c.b16 %v5859, %v5858
    %v5911 = vpack.c.b16 %v5861, %v5860
    %v5912 = vpack.c.b16 %v5863, %v5862
    %v5913 = vpack.c.b16 %v5865, %v5864
    %v5914 = vpack.c.b16 %v5867, %v5866
    %v5915 = vpack.c.b16 %v5869, %v5868
    %v5916 = vpack.c.b16 %v5871, %v5870
    %v5917 = vpack.c.b16 %v5873, %v5872
    %v5918 = vpack.c.b16 %v5875, %v5874
    %v5919 = vpack.c.b16 %v5877, %v5876
    %v5920 = vpack.c.b16 %v5879, %v5878
    %v5921 = vpack.c.b16 %v5881, %v5880
    %v5922 = vpack.c.b16 %v5883, %v5882
    %v5923 = vpack.c.b16 %v5885, %v5884
    %v5924 = vpack.c.b16 %v5887, %v5886
    %v5925 = vpack.c.b16 %v5889, %v5888
    %v5926 = vpack.c.b16 %v5891, %v5890
    %v5927 = vpack.c.b16 %v5893, %v5892
    %v5928 = vpack.c.b16 %v5895, %v5894
    %v5929 = vpack.c.b16 %v5897, %v5896
    %5962 = vmatpush.bf16.msra.mxu0 %v5905
    %5963 = vmatpush.bf16.msra.mxu0 %v5904
    %5964 = vmatpush.bf16.msra.mxu0 %v5903
    %5965 = vmatpush.bf16.msra.mxu0 %v5902
    %5966 = vmatpush.bf16.msra.mxu0 %v5901
    %5967 = vmatpush.bf16.msra.mxu0 %v5900
    %5968 = vmatpush.bf16.msra.mxu0 %v5899
    %5969 = vmatpush.bf16.msra.mxu0 %v5898
    %5970 = vmatmul.bf16.gmra.mxu0 %v5638
    %v5971 = vpop.f32.mrf.mxu0
    %v5972 = vadd.f32 %v5768, %v5971
    %v5973 = vpop.f32.mrf.mxu0
    %v5974 = vadd.f32 %v5768, %v5973
    %5975 = vmatmul.bf16.gmra.mxu0 %v5642
    %v5976 = vpop.f32.mrf.mxu0
    %v5977 = vadd.f32 %v5768, %v5976
    %v5978 = vpop.f32.mrf.mxu0
    %v5979 = vadd.f32 %v5768, %v5978
    %5980 = vmatmul.bf16.gmra.mxu0 %v5646
    %v5981 = vpop.f32.mrf.mxu0
    %v5982 = vadd.f32 %v5768, %v5981
    %v5983 = vpop.f32.mrf.mxu0
    %v5984 = vadd.f32 %v5768, %v5983
    %5985 = vmatmul.bf16.gmra.mxu0 %v5650
    %v5986 = vpop.f32.mrf.mxu0
    %v5987 = vadd.f32 %v5768, %v5986
    %v5988 = vpop.f32.mrf.mxu0
    %v5989 = vadd.f32 %v5768, %v5988
    %5990 = vmatmul.bf16.gmra.mxu0 %v5654
    %v5991 = vpop.f32.mrf.mxu0
    %v5992 = vadd.f32 %v5768, %v5991
    %v5993 = vpop.f32.mrf.mxu0
    %v5994 = vadd.f32 %v5768, %v5993
    %5995 = vmatmul.bf16.gmra.mxu0 %v5658
    %v5996 = vpop.f32.mrf.mxu0
    %v5997 = vadd.f32 %v5768, %v5996
    %v5998 = vpop.f32.mrf.mxu0
    %v5999 = vadd.f32 %v5768, %v5998
    %6000 = vmatmul.bf16.gmra.mxu0 %v5662
    %v6001 = vpop.f32.mrf.mxu0
    %v6002 = vadd.f32 %v5768, %v6001
    %v6003 = vpop.f32.mrf.mxu0
    %v6004 = vadd.f32 %v5768, %v6003
    %6005 = vmatmul.bf16.gmra.mxu0 %v5666
    %v6006 = vpop.f32.mrf.mxu0
    %v6007 = vadd.f32 %v5768, %v6006
    %v6008 = vpop.f32.mrf.mxu0
    %v6009 = vadd.f32 %v5768, %v6008
    %6010 = vmatmul.bf16.gmra.mxu0 %v5670
    %v6011 = vpop.f32.mrf.mxu0
    %v6012 = vadd.f32 %v5768, %v6011
    %v6013 = vpop.f32.mrf.mxu0
    %v6014 = vadd.f32 %v5768, %v6013
    %6015 = vmatmul.bf16.gmra.mxu0 %v5674
    %v6016 = vpop.f32.mrf.mxu0
    %v6017 = vadd.f32 %v5768, %v6016
    %v6018 = vpop.f32.mrf.mxu0
    %v6019 = vadd.f32 %v5768, %v6018
    %6020 = vmatmul.bf16.gmra.mxu0 %v5678
    %v6021 = vpop.f32.mrf.mxu0
    %v6022 = vadd.f32 %v5768, %v6021
    %v6023 = vpop.f32.mrf.mxu0
    %v6024 = vadd.f32 %v5768, %v6023
    %6025 = vmatmul.bf16.gmra.mxu0 %v5682
    %v6026 = vpop.f32.mrf.mxu0
    %v6027 = vadd.f32 %v5768, %v6026
    %v6028 = vpop.f32.mrf.mxu0
    %v6029 = vadd.f32 %v5768, %v6028
    %6030 = vmatmul.bf16.gmra.mxu0 %v5686
    %v6031 = vpop.f32.mrf.mxu0
    %v6032 = vadd.f32 %v5768, %v6031
    %v6033 = vpop.f32.mrf.mxu0
    %v6034 = vadd.f32 %v5768, %v6033
    %6035 = vmatmul.bf16.gmra.mxu0 %v5690
    %v6036 = vpop.f32.mrf.mxu0
    %v6037 = vadd.f32 %v5768, %v6036
    %v6038 = vpop.f32.mrf.mxu0
    %v6039 = vadd.f32 %v5768, %v6038
    %6040 = vmatmul.bf16.gmra.mxu0 %v5694
    %v6041 = vpop.f32.mrf.mxu0
    %v6042 = vadd.f32 %v5768, %v6041
    %v6043 = vpop.f32.mrf.mxu0
    %v6044 = vadd.f32 %v5768, %v6043
    %6045 = vmatmul.bf16.gmra.mxu0 %v5698
    %v6046 = vpop.f32.mrf.mxu0
    %v6047 = vadd.f32 %v5768, %v6046
    %v6048 = vpop.f32.mrf.mxu0
    %v6049 = vadd.f32 %v5768, %v6048
    %6050 = vdwg.mxu0
    %6051 = vmatpush.bf16.msra.mxu0 %v5913
    %6052 = vmatpush.bf16.msra.mxu0 %v5912
    %6053 = vmatpush.bf16.msra.mxu0 %v5911
    %6054 = vmatpush.bf16.msra.mxu0 %v5910
    %6055 = vmatpush.bf16.msra.mxu0 %v5909
    %6056 = vmatpush.bf16.msra.mxu0 %v5908
    %6057 = vmatpush.bf16.msra.mxu0 %v5907
    %6058 = vmatpush.bf16.msra.mxu0 %v5906
    %6059 = vmatmul.bf16.gmra.mxu0 %v5639
    %v6060 = vpop.f32.mrf.mxu0
    %v6061 = vadd.f32 %v5972, %v6060
    %v6062 = vpop.f32.mrf.mxu0
    %v6063 = vadd.f32 %v5974, %v6062
    %6064 = vmatmul.bf16.gmra.mxu0 %v5643
    %v6065 = vpop.f32.mrf.mxu0
    %v6066 = vadd.f32 %v5977, %v6065
    %v6067 = vpop.f32.mrf.mxu0
    %v6068 = vadd.f32 %v5979, %v6067
    %6069 = vmatmul.bf16.gmra.mxu0 %v5647
    %v6070 = vpop.f32.mrf.mxu0
    %v6071 = vadd.f32 %v5982, %v6070
    %v6072 = vpop.f32.mrf.mxu0
    %v6073 = vadd.f32 %v5984, %v6072
    %6074 = vmatmul.bf16.gmra.mxu0 %v5651
    %v6075 = vpop.f32.mrf.mxu0
    %v6076 = vadd.f32 %v5987, %v6075
    %v6077 = vpop.f32.mrf.mxu0
    %v6078 = vadd.f32 %v5989, %v6077
    %6079 = vmatmul.bf16.gmra.mxu0 %v5655
    %v6080 = vpop.f32.mrf.mxu0
    %v6081 = vadd.f32 %v5992, %v6080
    %v6082 = vpop.f32.mrf.mxu0
    %v6083 = vadd.f32 %v5994, %v6082
    %6084 = vmatmul.bf16.gmra.mxu0 %v5659
    %v6085 = vpop.f32.mrf.mxu0
    %v6086 = vadd.f32 %v5997, %v6085
    %v6087 = vpop.f32.mrf.mxu0
    %v6088 = vadd.f32 %v5999, %v6087
    %6089 = vmatmul.bf16.gmra.mxu0 %v5663
    %v6090 = vpop.f32.mrf.mxu0
    %v6091 = vadd.f32 %v6002, %v6090
    %v6092 = vpop.f32.mrf.mxu0
    %v6093 = vadd.f32 %v6004, %v6092
    %6094 = vmatmul.bf16.gmra.mxu0 %v5667
    %v6095 = vpop.f32.mrf.mxu0
    %v6096 = vadd.f32 %v6007, %v6095
    %v6097 = vpop.f32.mrf.mxu0
    %v6098 = vadd.f32 %v6009, %v6097
    %6099 = vmatmul.bf16.gmra.mxu0 %v5671
    %v6100 = vpop.f32.mrf.mxu0
    %v6101 = vadd.f32 %v6012, %v6100
    %v6102 = vpop.f32.mrf.mxu0
    %v6103 = vadd.f32 %v6014, %v6102
    %6104 = vmatmul.bf16.gmra.mxu0 %v5675
    %v6105 = vpop.f32.mrf.mxu0
    %v6106 = vadd.f32 %v6017, %v6105
    %v6107 = vpop.f32.mrf.mxu0
    %v6108 = vadd.f32 %v6019, %v6107
    %6109 = vmatmul.bf16.gmra.mxu0 %v5679
    %v6110 = vpop.f32.mrf.mxu0
    %v6111 = vadd.f32 %v6022, %v6110
    %v6112 = vpop.f32.mrf.mxu0
    %v6113 = vadd.f32 %v6024, %v6112
    %6114 = vmatmul.bf16.gmra.mxu0 %v5683
    %v6115 = vpop.f32.mrf.mxu0
    %v6116 = vadd.f32 %v6027, %v6115
    %v6117 = vpop.f32.mrf.mxu0
    %v6118 = vadd.f32 %v6029, %v6117
    %6119 = vmatmul.bf16.gmra.mxu0 %v5687
    %v6120 = vpop.f32.mrf.mxu0
    %v6121 = vadd.f32 %v6032, %v6120
    %v6122 = vpop.f32.mrf.mxu0
    %v6123 = vadd.f32 %v6034, %v6122
    %6124 = vmatmul.bf16.gmra.mxu0 %v5691
    %v6125 = vpop.f32.mrf.mxu0
    %v6126 = vadd.f32 %v6037, %v6125
    %v6127 = vpop.f32.mrf.mxu0
    %v6128 = vadd.f32 %v6039, %v6127
    %6129 = vmatmul.bf16.gmra.mxu0 %v5695
    %v6130 = vpop.f32.mrf.mxu0
    %v6131 = vadd.f32 %v6042, %v6130
    %v6132 = vpop.f32.mrf.mxu0
    %v6133 = vadd.f32 %v6044, %v6132
    %6134 = vmatmul.bf16.gmra.mxu0 %v5699
    %v6135 = vpop.f32.mrf.mxu0
    %v6136 = vadd.f32 %v6047, %v6135
    %v6137 = vpop.f32.mrf.mxu0
    %v6138 = vadd.f32 %v6049, %v6137
    %6139 = vdwg.mxu0
    %6140 = vmatpush.bf16.msra.mxu0 %v5921
    %6141 = vmatpush.bf16.msra.mxu0 %v5920
    %6142 = vmatpush.bf16.msra.mxu0 %v5919
    %6143 = vmatpush.bf16.msra.mxu0 %v5918
    %6144 = vmatpush.bf16.msra.mxu0 %v5917
    %6145 = vmatpush.bf16.msra.mxu0 %v5916
    %6146 = vmatpush.bf16.msra.mxu0 %v5915
    %6147 = vmatpush.bf16.msra.mxu0 %v5914
    %6148 = vmatmul.bf16.gmra.mxu0 %v5640
    %v6149 = vpop.f32.mrf.mxu0
    %v6150 = vadd.f32 %v6061, %v6149
    %v6151 = vpop.f32.mrf.mxu0
    %v6152 = vadd.f32 %v6063, %v6151
    %6153 = vmatmul.bf16.gmra.mxu0 %v5644
    %v6154 = vpop.f32.mrf.mxu0
    %v6155 = vadd.f32 %v6066, %v6154
    %v6156 = vpop.f32.mrf.mxu0
    %v6157 = vadd.f32 %v6068, %v6156
    %6158 = vmatmul.bf16.gmra.mxu0 %v5648
    %v6159 = vpop.f32.mrf.mxu0
    %v6160 = vadd.f32 %v6071, %v6159
    %v6161 = vpop.f32.mrf.mxu0
    %v6162 = vadd.f32 %v6073, %v6161
    %6163 = vmatmul.bf16.gmra.mxu0 %v5652
    %v6164 = vpop.f32.mrf.mxu0
    %v6165 = vadd.f32 %v6076, %v6164
    %v6166 = vpop.f32.mrf.mxu0
    %v6167 = vadd.f32 %v6078, %v6166
    %6168 = vmatmul.bf16.gmra.mxu0 %v5656
    %v6169 = vpop.f32.mrf.mxu0
    %v6170 = vadd.f32 %v6081, %v6169
    %v6171 = vpop.f32.mrf.mxu0
    %v6172 = vadd.f32 %v6083, %v6171
    %6173 = vmatmul.bf16.gmra.mxu0 %v5660
    %v6174 = vpop.f32.mrf.mxu0
    %v6175 = vadd.f32 %v6086, %v6174
    %v6176 = vpop.f32.mrf.mxu0
    %v6177 = vadd.f32 %v6088, %v6176
    %6178 = vmatmul.bf16.gmra.mxu0 %v5664
    %v6179 = vpop.f32.mrf.mxu0
    %v6180 = vadd.f32 %v6091, %v6179
    %v6181 = vpop.f32.mrf.mxu0
    %v6182 = vadd.f32 %v6093, %v6181
    %6183 = vmatmul.bf16.gmra.mxu0 %v5668
    %v6184 = vpop.f32.mrf.mxu0
    %v6185 = vadd.f32 %v6096, %v6184
    %v6186 = vpop.f32.mrf.mxu0
    %v6187 = vadd.f32 %v6098, %v6186
    %6188 = vmatmul.bf16.gmra.mxu0 %v5672
    %v6189 = vpop.f32.mrf.mxu0
    %v6190 = vadd.f32 %v6101, %v6189
    %v6191 = vpop.f32.mrf.mxu0
    %v6192 = vadd.f32 %v6103, %v6191
    %6193 = vmatmul.bf16.gmra.mxu0 %v5676
    %v6194 = vpop.f32.mrf.mxu0
    %v6195 = vadd.f32 %v6106, %v6194
    %v6196 = vpop.f32.mrf.mxu0
    %v6197 = vadd.f32 %v6108, %v6196
    %6198 = vmatmul.bf16.gmra.mxu0 %v5680
    %v6199 = vpop.f32.mrf.mxu0
    %v6200 = vadd.f32 %v6111, %v6199
    %v6201 = vpop.f32.mrf.mxu0
    %v6202 = vadd.f32 %v6113, %v6201
    %6203 = vmatmul.bf16.gmra.mxu0 %v5684
    %v6204 = vpop.f32.mrf.mxu0
    %v6205 = vadd.f32 %v6116, %v6204
    %v6206 = vpop.f32.mrf.mxu0
    %v6207 = vadd.f32 %v6118, %v6206
    %6208 = vmatmul.bf16.gmra.mxu0 %v5688
    %v6209 = vpop.f32.mrf.mxu0
    %v6210 = vadd.f32 %v6121, %v6209
    %v6211 = vpop.f32.mrf.mxu0
    %v6212 = vadd.f32 %v6123, %v6211
    %6213 = vmatmul.bf16.gmra.mxu0 %v5692
    %v6214 = vpop.f32.mrf.mxu0
    %v6215 = vadd.f32 %v6126, %v6214
    %v6216 = vpop.f32.mrf.mxu0
    %v6217 = vadd.f32 %v6128, %v6216
    %6218 = vmatmul.bf16.gmra.mxu0 %v5696
    %v6219 = vpop.f32.mrf.mxu0
    %v6220 = vadd.f32 %v6131, %v6219
    %v6221 = vpop.f32.mrf.mxu0
    %v6222 = vadd.f32 %v6133, %v6221
    %6223 = vmatmul.bf16.gmra.mxu0 %v5700
    %v6224 = vpop.f32.mrf.mxu0
    %v6225 = vadd.f32 %v6136, %v6224
    %v6226 = vpop.f32.mrf.mxu0
    %v6227 = vadd.f32 %v6138, %v6226
    %6228 = vdwg.mxu0
    %6229 = vmatpush.bf16.msra.mxu0 %v5929
    %6230 = vmatpush.bf16.msra.mxu0 %v5928
    %6231 = vmatpush.bf16.msra.mxu0 %v5927
    %6232 = vmatpush.bf16.msra.mxu0 %v5926
    %6233 = vmatpush.bf16.msra.mxu0 %v5925
    %6234 = vmatpush.bf16.msra.mxu0 %v5924
    %6235 = vmatpush.bf16.msra.mxu0 %v5923
    %6236 = vmatpush.bf16.msra.mxu0 %v5922
    %6237 = vmatmul.bf16.gmra.mxu0 %v5641
    %v6238 = vpop.f32.mrf.mxu0
    %v6239 = vadd.f32 %v6150, %v6238
    %v6240 = vpop.f32.mrf.mxu0
    %v6241 = vadd.f32 %v6152, %v6240
    %6242 = vmatmul.bf16.gmra.mxu0 %v5645
    %v6243 = vpop.f32.mrf.mxu0
    %v6244 = vadd.f32 %v6155, %v6243
    %v6245 = vpop.f32.mrf.mxu0
    %v6246 = vadd.f32 %v6157, %v6245
    %6247 = vmatmul.bf16.gmra.mxu0 %v5649
    %v6248 = vpop.f32.mrf.mxu0
    %v6249 = vadd.f32 %v6160, %v6248
    %v6250 = vpop.f32.mrf.mxu0
    %v6251 = vadd.f32 %v6162, %v6250
    %6252 = vmatmul.bf16.gmra.mxu0 %v5653
    %v6253 = vpop.f32.mrf.mxu0
    %v6254 = vadd.f32 %v6165, %v6253
    %v6255 = vpop.f32.mrf.mxu0
    %v6256 = vadd.f32 %v6167, %v6255
    %6257 = vmatmul.bf16.gmra.mxu0 %v5657
    %v6258 = vpop.f32.mrf.mxu0
    %v6259 = vadd.f32 %v6170, %v6258
    %v6260 = vpop.f32.mrf.mxu0
    %v6261 = vadd.f32 %v6172, %v6260
    %6262 = vmatmul.bf16.gmra.mxu0 %v5661
    %v6263 = vpop.f32.mrf.mxu0
    %v6264 = vadd.f32 %v6175, %v6263
    %v6265 = vpop.f32.mrf.mxu0
    %v6266 = vadd.f32 %v6177, %v6265
    %6267 = vmatmul.bf16.gmra.mxu0 %v5665
    %v6268 = vpop.f32.mrf.mxu0
    %v6269 = vadd.f32 %v6180, %v6268
    %v6270 = vpop.f32.mrf.mxu0
    %v6271 = vadd.f32 %v6182, %v6270
    %6272 = vmatmul.bf16.gmra.mxu0 %v5669
    %v6273 = vpop.f32.mrf.mxu0
    %v6274 = vadd.f32 %v6185, %v6273
    %v6275 = vpop.f32.mrf.mxu0
    %v6276 = vadd.f32 %v6187, %v6275
    %6277 = vmatmul.bf16.gmra.mxu0 %v5673
    %v6278 = vpop.f32.mrf.mxu0
    %v6279 = vadd.f32 %v6190, %v6278
    %v6280 = vpop.f32.mrf.mxu0
    %v6281 = vadd.f32 %v6192, %v6280
    %6282 = vmatmul.bf16.gmra.mxu0 %v5677
    %v6283 = vpop.f32.mrf.mxu0
    %v6284 = vadd.f32 %v6195, %v6283
    %v6285 = vpop.f32.mrf.mxu0
    %v6286 = vadd.f32 %v6197, %v6285
    %6287 = vmatmul.bf16.gmra.mxu0 %v5681
    %v6288 = vpop.f32.mrf.mxu0
    %v6289 = vadd.f32 %v6200, %v6288
    %v6290 = vpop.f32.mrf.mxu0
    %v6291 = vadd.f32 %v6202, %v6290
    %6292 = vmatmul.bf16.gmra.mxu0 %v5685
    %v6293 = vpop.f32.mrf.mxu0
    %v6294 = vadd.f32 %v6205, %v6293
    %v6295 = vpop.f32.mrf.mxu0
    %v6296 = vadd.f32 %v6207, %v6295
    %6297 = vmatmul.bf16.gmra.mxu0 %v5689
    %v6298 = vpop.f32.mrf.mxu0
    %v6299 = vadd.f32 %v6210, %v6298
    %v6300 = vpop.f32.mrf.mxu0
    %v6301 = vadd.f32 %v6212, %v6300
    %6302 = vmatmul.bf16.gmra.mxu0 %v5693
    %v6303 = vpop.f32.mrf.mxu0
    %v6304 = vadd.f32 %v6215, %v6303
    %v6305 = vpop.f32.mrf.mxu0
    %v6306 = vadd.f32 %v6217, %v6305
    %6307 = vmatmul.bf16.gmra.mxu0 %v5697
    %v6308 = vpop.f32.mrf.mxu0
    %v6309 = vadd.f32 %v6220, %v6308
    %v6310 = vpop.f32.mrf.mxu0
    %v6311 = vadd.f32 %v6222, %v6310
    %6312 = vmatmul.bf16.gmra.mxu0 %v5701
    %v6313 = vpop.f32.mrf.mxu0
    %v6314 = vadd.f32 %v6225, %v6313
    %v6315 = vpop.f32.mrf.mxu0
    %v6316 = vadd.f32 %v6227, %v6315
    %6317 = vdwg.mxu0
    %v6318 = vadd.f32 %v6239, %v4904
    %v6319 = vadd.f32 %v6241, %v4905
    %v6320 = vadd.f32 %v6244, %v4906
    %v6321 = vadd.f32 %v6246, %v4907
    %v6322 = vadd.f32 %v6249, %v4908
    %v6323 = vadd.f32 %v6251, %v4909
    %v6324 = vadd.f32 %v6254, %v4910
    %v6325 = vadd.f32 %v6256, %v4911
    %v6326 = vadd.f32 %v6259, %v4912
    %v6327 = vadd.f32 %v6261, %v4913
    %v6328 = vadd.f32 %v6264, %v4914
    %v6329 = vadd.f32 %v6266, %v4915
    %v6330 = vadd.f32 %v6269, %v4916
    %v6331 = vadd.f32 %v6271, %v4917
    %v6332 = vadd.f32 %v6274, %v4918
    %v6333 = vadd.f32 %v6276, %v4919
    %v6334 = vadd.f32 %v6279, %v4920
    %v6335 = vadd.f32 %v6281, %v4921
    %v6336 = vadd.f32 %v6284, %v4922
    %v6337 = vadd.f32 %v6286, %v4923
    %v6338 = vadd.f32 %v6289, %v4924
    %v6339 = vadd.f32 %v6291, %v4925
    %v6340 = vadd.f32 %v6294, %v4926
    %v6341 = vadd.f32 %v6296, %v4927
    %v6342 = vadd.f32 %v6299, %v4928
    %v6343 = vadd.f32 %v6301, %v4929
    %v6344 = vadd.f32 %v6304, %v4930
    %v6345 = vadd.f32 %v6306, %v4931
    %v6346 = vadd.f32 %v6309, %v4932
    %v6347 = vadd.f32 %v6311, %v4933
    %v6348 = vadd.f32 %v6314, %v4934
    %v6349 = vadd.f32 %v6316, %v4935
    %6350 = vst [vmem:[#allocation13] sm:$0xff] %v6318
    %6351 = vst [vmem:[#allocation13 + $0x8] sm:$0xff] %v6319
    %6352 = vst [vmem:[#allocation13 + $0x10] sm:$0xff] %v6320
    %6353 = vst [vmem:[#allocation13 + $0x18] sm:$0xff] %v6321
    %6354 = vst [vmem:[#allocation13 + $0x20] sm:$0xff] %v6322
    %6355 = vst [vmem:[#allocation13 + $0x28] sm:$0xff] %v6323
    %6356 = vst [vmem:[#allocation13 + $0x30] sm:$0xff] %v6324
    %6357 = vst [vmem:[#allocation13 + $0x38] sm:$0xff] %v6325
    %6358 = vst [vmem:[#allocation13 + $0x40] sm:$0xff] %v6326
    %6359 = vst [vmem:[#allocation13 + $0x48] sm:$0xff] %v6327
    %6360 = vst [vmem:[#allocation13 + $0x50] sm:$0xff] %v6328
    %6361 = vst [vmem:[#allocation13 + $0x58] sm:$0xff] %v6329
    %6362 = vst [vmem:[#allocation13 + $0x60] sm:$0xff] %v6330
    %6363 = vst [vmem:[#allocation13 + $0x68] sm:$0xff] %v6331
    %6364 = vst [vmem:[#allocation13 + $0x70] sm:$0xff] %v6332
    %6365 = vst [vmem:[#allocation13 + $0x78] sm:$0xff] %v6333
    %6366 = vst [vmem:[#allocation13 + $0x80] sm:$0xff] %v6334
    %6367 = vst [vmem:[#allocation13 + $0x88] sm:$0xff] %v6335
    %6368 = vst [vmem:[#allocation13 + $0x90] sm:$0xff] %v6336
    %6369 = vst [vmem:[#allocation13 + $0x98] sm:$0xff] %v6337
    %6370 = vst [vmem:[#allocation13 + $0xa0] sm:$0xff] %v6338
    %6371 = vst [vmem:[#allocation13 + $0xa8] sm:$0xff] %v6339
    %6372 = vst [vmem:[#allocation13 + $0xb0] sm:$0xff] %v6340
    %6373 = vst [vmem:[#allocation13 + $0xb8] sm:$0xff] %v6341
    %6374 = vst [vmem:[#allocation13 + $0xc0] sm:$0xff] %v6342
    %6375 = vst [vmem:[#allocation13 + $0xc8] sm:$0xff] %v6343
    %6376 = vst [vmem:[#allocation13 + $0xd0] sm:$0xff] %v6344
    %6377 = vst [vmem:[#allocation13 + $0xd8] sm:$0xff] %v6345
    %6378 = vst [vmem:[#allocation13 + $0xe0] sm:$0xff] %v6346
    %6379 = vst [vmem:[#allocation13 + $0xe8] sm:$0xff] %v6347
    %6380 = vst [vmem:[#allocation13 + $0xf0] sm:$0xff] %v6348
    %6381 = vst [vmem:[#allocation13 + $0xf8] sm:$0xff] %v6349
    // Predicated region
    $region66: #{block_forward.1} parent=1 // pred_check
      _
    $region67: #{block_forward.1} parent=1 // pred_check_branch
      %6383 = sbr.rel (0) target = $region69
    $region68: #{block_forward.1} parent=1 // pred_region
      %6385 = vsyncadd [#allocation4], 0
      %s6386 = sshll.u32 [#allocation13], 4
      %s6387 = int_to_ptr.vmem [resolvable:$true] %s6386
      %s6388 = sshll.u32 %s10, 4
      %s6389 = int_to_ptr.hbm [resolvable:$true] %s6388
      %6394 = dma.vmem_to_hbm [thread:$0]  %s6387, 4096, %s6389, [#allocation4], 128, 128, 8
    $region69: #{block_forward.1} parent=1 // pred_fallthru
      _
    // Predicated region
    $region70: #{block_forward.1} parent=1 // pred_check
      _
    $region71: #{block_forward.1} parent=1 // pred_check_branch
      %6396 = sbr.rel (0) target = $region73
    $region72: #{block_forward.1} parent=1 // pred_region
      %6398 = dma.done [#allocation4], 4096
    $region73: #{block_forward.1} parent=1 // pred_fallthru
      _
    %6399 = vsyncpa [#allocation3], 1
    %6400 = vsyncpa [#allocation6], 1
    %6401 = vsyncpa [#allocation9], 1
    %6402 = vsyncpa [#allocation12], 1
    %6403 = vsyncpa [#allocation4], 1

</llo_original>
